<compile_context>
chip_gen: v5e
topology: v5e:2x2
jax: 0.10.0
libtpu: 0.0.40
codegen_flags: <defaults>
</compile_context>

<pallas_src>
import functools

import jax
import jax.numpy as jnp
import numpy as np
from jax.experimental import pallas as pl
from jax.experimental.pallas import tpu as pltpu

EPS = 1e-5


def _convt_stats_kernel(x_ref, w_ref, mask_ref, y_ref, stats_ref, *, K, Cin, TH, WP):
    """Conv-transpose for one tile of output rows + per-tile channel sum / sumsq."""
    R = y_ref.shape[0]                      # flattened (out_row, padded_col) pixels
    Cout = y_ref.shape[1]
    base = pl.program_id(1) * TH * WP       # first flat input row of this tile's halo

    acc = jnp.zeros((R, Cout), jnp.float32)
    for kh in range(K):                     # K*K shifted-window taps, all on the MXU
        for kw in range(K):
            xs = x_ref[pl.ds(base + kh * WP + kw, R), :]                    # (R, Cin)
            wt = w_ref[(kh * K + kw) * Cin:(kh * K + kw + 1) * Cin, :]      # (Cin, Cout)
            acc = acc + jnp.dot(xs, wt, preferred_element_type=jnp.float32)
    y_ref[...] = acc.astype(y_ref.dtype)    # single store of the tile

    # Channel-wise partial sums via masked-ones matmuls (mask kills the slop columns).
    m = mask_ref[...]                                               # (1, R)
    s1 = jnp.dot(m, acc, preferred_element_type=jnp.float32)        # (1, Cout)
    s2 = jnp.dot(m, acc * acc, preferred_element_type=jnp.float32)  # (1, Cout)
    blk = jnp.concatenate([s1, s2, jnp.zeros((6, Cout), jnp.float32)], axis=0)  # (8, Cout)
    lane_pad = stats_ref.shape[-1] - Cout
    if lane_pad:                            # pad lanes -> full unmasked (8, 128k) store
        blk = jnp.concatenate([blk, jnp.zeros((8, lane_pad), jnp.float32)], axis=1)
    stats_ref[0] = blk


def _bn_relu_kernel(y_ref, scale_ref, shift_ref, o_ref):
    """Fused y*scale + shift + ReLU on lane-dense blocks (in place on y's buffer)."""
    o_ref[...] = jnp.maximum(
        y_ref[...] * scale_ref[...] + shift_ref[...], 0.0).astype(o_ref.dtype)


def basic_conv_transpose2d(x_nchw, weight, gamma, beta, *, eps=EPS, use_bf16=False):
    """ConvTranspose2d(bias=False) + BatchNorm2d (batch statistics) + ReLU."""
    N, C_in, H, W = x_nchw.shape
    Cw_in, C_out, K, Kw = weight.shape
    assert Kw == K and Cw_in == C_in
    HO, WO = H + K - 1, W + K - 1            # conv-transpose output size
    WP = W + 2 * (K - 1)                     # padded row width

    # Row tiling: ~2k flattened pixels per grid step; TH multiple of 8 when tiled.
    if HO * WP <= 4096:
        TH, G = HO, 1
    else:
        TH = max(8, (2048 // WP) // 8 * 8)
        G = pl.cdiv(HO, TH)
    HO_pad = G * TH
    HP_pad = HO_pad + K - 1
    R = TH * WP                              # flattened pixels per tile
    SL = ((C_out + 127) // 128) * 128        # stats lane width (>=128, lane-dense)

    comp_dtype = jnp.bfloat16 if use_bf16 else jnp.float32

    # ---------------- glue: layout plumbing only ----------------
    x_nhwc = jnp.transpose(x_nchw, (0, 2, 3, 1)).astype(jnp.float32)       # (N,H,W,Cin)
    x_pad = jnp.pad(x_nhwc, ((0, 0), (K - 1, K - 1 + HO_pad - HO),
                             (K - 1, K - 1), (0, 0)))                      # (N,HP_pad,WP,Cin)
    x2 = x_pad.reshape(N, HP_pad * WP, C_in)
    # K-1 rows of zero slack so the last tap's shifted window stays in bounds.
    x2 = jnp.pad(x2, ((0, 0), (0, K - 1), (0, 0))).astype(comp_dtype)
    rows_total = HP_pad * WP + K - 1

    # w2d[(kh*K+kw)*Cin + ci, co] = weight[ci, co, K-1-kh, K-1-kw]
    w2d = jnp.transpose(jnp.flip(weight, axis=(2, 3)), (2, 3, 0, 1)
                        ).reshape(K * K * C_in, C_out).astype(comp_dtype)
    # Valid-column mask inside a tile: flat pixel j is valid iff (j % WP) < WO.
    mask = (jnp.arange(R) % WP < WO).astype(jnp.float32).reshape(1, R)

    # -------- kernel 1: conv-transpose taps (MXU) + per-tile channel stats --------
    kern1 = functools.partial(_convt_stats_kernel, K=K, Cin=C_in, TH=TH, WP=WP)
    y3, stats_part = pl.pallas_call(
        kern1,
        out_shape=(jax.ShapeDtypeStruct((N, G * R, C_out), jnp.float32),
                   jax.ShapeDtypeStruct((N * G, 8, SL), jnp.float32)),
        grid_spec=pltpu.PrefetchScalarGridSpec(
            num_scalar_prefetch=0,
            grid=(N, G),
            in_specs=[
                # padded image, resident per batch (fetched once per batch per core)
                pl.BlockSpec((None, rows_total, C_in), lambda n, i: (n, 0, 0)),
                pl.BlockSpec((K * K * C_in, C_out), lambda n, i: (0, 0)),
                pl.BlockSpec((1, R), lambda n, i: (0, 0)),
            ],
            out_specs=[
                pl.BlockSpec((None, R, C_out), lambda n, i: (n, i, 0)),
                pl.BlockSpec((1, 8, SL), lambda n, i: (n * G + i, 0, 0)),
            ]),
        compiler_params=pltpu.CompilerParams(
            dimension_semantics=("parallel", "parallel")),
    )(x2, w2d, mask)

    # -------- tiny O(Cout) glue: reduce partials, finalize BN scale/shift --------
    stats = jnp.sum(stats_part, axis=0)                      # (8, SL)
    inv_count = 1.0 / float(N * HO * WO)                     # true (unpadded) count
    mean = stats[0, :C_out] * inv_count
    var = jnp.maximum(stats[1, :C_out] * inv_count - mean * mean, 0.0)   # clamp >= 0
    scale = gamma.astype(jnp.float32) * jax.lax.rsqrt(var + eps)
    shift = beta.astype(jnp.float32) - mean * scale

    # -------- kernel 2: BN affine + ReLU on a lane-dense view, in place --------
    total = N * HO_pad * WP * C_out
    if total % 128 == 0 and 128 % C_out == 0:
        DR, CW = total // 128, 128
        y_v = y3.reshape(DR, CW)             # zero-cost row-major reinterpretation
        scale_v = jnp.tile(scale, 128 // C_out).reshape(1, CW)
        shift_v = jnp.tile(shift, 128 // C_out).reshape(1, CW)
    else:                                    # fallback: channel-minor view
        DR, CW = N * HO_pad * WP, C_out
        y_v = y3.reshape(DR, CW)
        scale_v = scale.reshape(1, CW)
        shift_v = shift.reshape(1, CW)
    TB = min(2048, pl.cdiv(DR, 8) * 8)

    out_v = pl.pallas_call(
        _bn_relu_kernel,
        out_shape=jax.ShapeDtypeStruct((DR, CW), jnp.float32),
        grid_spec=pltpu.PrefetchScalarGridSpec(
            num_scalar_prefetch=0,
            grid=(pl.cdiv(DR, TB),),
            in_specs=[
                pl.BlockSpec((TB, CW), lambda i: (i, 0)),
                pl.BlockSpec((1, CW), lambda i: (0, 0)),
                pl.BlockSpec((1, CW), lambda i: (0, 0)),
            ],
            out_specs=pl.BlockSpec((TB, CW), lambda i: (i, 0))),
        compiler_params=pltpu.CompilerParams(dimension_semantics=("parallel",)),
        input_output_aliases={0: 0},          # reuse the conv-output HBM buffer
    )(y_v, scale_v, shift_v)

    # ---------------- glue: drop slop/pad columns+rows, restore NCHW ----------------
    out = out_v.reshape(N, HO_pad, WP, C_out)[:, :HO, :WO, :]
    return jnp.transpose(out, (0, 3, 1, 2))


def reference(x, weight, gamma, beta, eps=EPS):
    """Pure-JAX reference mirroring the PyTorch module's forward (train mode)."""
    K = weight.shape[2]
    w_conv = jnp.transpose(jnp.flip(weight, axis=(2, 3)), (1, 0, 2, 3))  # OIHW
    y = jax.lax.conv_general_dilated(
        x, w_conv, window_strides=(1, 1),
        padding=[(K - 1, K - 1), (K - 1, K - 1)],
        dimension_numbers=("NCHW", "OIHW", "NCHW"))
    mean = jnp.mean(y, axis=(0, 2, 3), keepdims=True)
    var = jnp.mean((y - mean) ** 2, axis=(0, 2, 3), keepdims=True)
    yn = (y - mean) / jnp.sqrt(var + eps)
    yn = yn * gamma.reshape(1, -1, 1, 1) + beta.reshape(1, -1, 1, 1)
    return jnp.maximum(yn, 0.0)


if __name__ == "__main__":
    N, C_IN, C_OUT, H, W, K = 2, 4, 8, 16, 16, 3

    key = jax.random.PRNGKey(0)
    k1, k2, k3, k4 = jax.random.split(key, 4)
    x = jax.random.normal(k1, (N, C_IN, H, W), jnp.float32)
    weight = 0.1 * jax.random.normal(k2, (C_IN, C_OUT, K, K), jnp.float32)  # (Cin,Cout,kH,kW)
    gamma = 1.0 + 0.1 * jax.random.normal(k3, (C_OUT,), jnp.float32)
    beta = 0.1 * jax.random.normal(k4, (C_OUT,), jnp.float32)

    fwd = jax.jit(basic_conv_transpose2d, static_argnames=("eps", "use_bf16"))
    out = jax.block_until_ready(fwd(x, weight, gamma, beta))

    ref = jax.block_until_ready(reference(x, weight, gamma, beta))
    assert out.shape == ref.shape == (N, C_OUT, H + K - 1, W + K - 1)
    np.testing.assert_allclose(np.asarray(out), np.asarray(ref), atol=2e-3, rtol=2e-3)

    print("KERNEL_OK")
</pallas_src>

<mosaic_0001>
module attributes {stable_mosaic.version = 11 : i64} {
  func.func @_convt_stats_kernel(%arg0: i32, %arg1: i32, %arg2: memref<1x402x4xf32, #tpu.memory_space<vmem>>, %arg3: memref<36x8xf32, #tpu.memory_space<vmem>>, %arg4: memref<1x360xf32, #tpu.memory_space<vmem>>, %arg5: memref<1x360x8xf32, #tpu.memory_space<vmem>>, %arg6: memref<1x8x128xf32, #tpu.memory_space<vmem>>) attributes {dimension_semantics = [#tpu.dimension_semantics<parallel>, #tpu.dimension_semantics<parallel>], iteration_bounds = array<i64: 2, 1>, scalar_prefetch = 0 : i64, scratch_operands = 0 : i64, tpu.core_type = #tpu.core_type<tc>, window_params = [{transform_indices = @transform_0, window_bounds = array<i64: 1, 402, 4>}, {pipeline_mode = #tpu.pipeline_mode<synchronous>, transform_indices = @transform_1, window_bounds = array<i64: 36, 8>}, {pipeline_mode = #tpu.pipeline_mode<synchronous>, transform_indices = @transform_2, window_bounds = array<i64: 1, 360>}, {transform_indices = @transform_3, window_bounds = array<i64: 1, 360, 8>}, {transform_indices = @transform_4, window_bounds = array<i64: 1, 8, 128>}]} {
    %c18_i32 = arith.constant 18 : i32
    %0 = arith.muli %arg1, %c18_i32 : i32
    %c20_i32 = arith.constant 20 : i32
    %1 = arith.muli %0, %c20_i32 : i32
    %cst = arith.constant 0.000000e+00 : f32
    %2 = vector.broadcast %cst : f32 to vector<360x8xf32>
    %c0_i32 = arith.constant 0 : i32
    %3 = arith.addi %1, %c0_i32 : i32
    %c0_i32_0 = arith.constant 0 : i32
    %4 = arith.addi %3, %c0_i32_0 : i32
    %c0 = arith.constant 0 : index
    %5 = arith.index_cast %4 : i32 to index
    %c0_1 = arith.constant 0 : index
    %6 = vector.load %arg2[%c0, %5, %c0_1] : memref<1x402x4xf32, #tpu.memory_space<vmem>>, vector<1x360x4xf32>
    %7 = vector.shape_cast %6 : vector<1x360x4xf32> to vector<360x4xf32>
    %c0_2 = arith.constant 0 : index
    %c0_3 = arith.constant 0 : index
    %8 = vector.load %arg3[%c0_2, %c0_3] : memref<36x8xf32, #tpu.memory_space<vmem>>, vector<4x8xf32>
    %cst_4 = arith.constant dense<0.000000e+00> : vector<360x8xf32>
    %9 = tpu.matmul %7, %8, %cst_4 {dimension_numbers = #tpu.dot_dimension_numbers<[1], [0], [0], [1], [0, 0, 1, 1], [], []>} : vector<360x4xf32>, vector<4x8xf32>, vector<360x8xf32> -> vector<360x8xf32>
    %10 = arith.addf %2, %9 : vector<360x8xf32>
    %c0_i32_5 = arith.constant 0 : i32
    %11 = arith.addi %1, %c0_i32_5 : i32
    %c1_i32 = arith.constant 1 : i32
    %12 = arith.addi %11, %c1_i32 : i32
    %c0_6 = arith.constant 0 : index
    %13 = arith.index_cast %12 : i32 to index
    %c0_7 = arith.constant 0 : index
    %14 = vector.load %arg2[%c0_6, %13, %c0_7] : memref<1x402x4xf32, #tpu.memory_space<vmem>>, vector<1x360x4xf32>
    %15 = vector.shape_cast %14 : vector<1x360x4xf32> to vector<360x4xf32>
    %c4 = arith.constant 4 : index
    %c0_8 = arith.constant 0 : index
    %16 = vector.load %arg3[%c4, %c0_8] : memref<36x8xf32, #tpu.memory_space<vmem>>, vector<4x8xf32>
    %cst_9 = arith.constant dense<0.000000e+00> : vector<360x8xf32>
    %17 = tpu.matmul %15, %16, %cst_9 {dimension_numbers = #tpu.dot_dimension_numbers<[1], [0], [0], [1], [0, 0, 1, 1], [], []>} : vector<360x4xf32>, vector<4x8xf32>, vector<360x8xf32> -> vector<360x8xf32>
    %18 = arith.addf %10, %17 : vector<360x8xf32>
    %c0_i32_10 = arith.constant 0 : i32
    %19 = arith.addi %1, %c0_i32_10 : i32
    %c2_i32 = arith.constant 2 : i32
    %20 = arith.addi %19, %c2_i32 : i32
    %c0_11 = arith.constant 0 : index
    %21 = arith.index_cast %20 : i32 to index
    %c0_12 = arith.constant 0 : index
    %22 = vector.load %arg2[%c0_11, %21, %c0_12] : memref<1x402x4xf32, #tpu.memory_space<vmem>>, vector<1x360x4xf32>
    %23 = vector.shape_cast %22 : vector<1x360x4xf32> to vector<360x4xf32>
    %c8 = arith.constant 8 : index
    %c0_13 = arith.constant 0 : index
    %24 = vector.load %arg3[%c8, %c0_13] : memref<36x8xf32, #tpu.memory_space<vmem>>, vector<4x8xf32>
    %cst_14 = arith.constant dense<0.000000e+00> : vector<360x8xf32>
    %25 = tpu.matmul %23, %24, %cst_14 {dimension_numbers = #tpu.dot_dimension_numbers<[1], [0], [0], [1], [0, 0, 1, 1], [], []>} : vector<360x4xf32>, vector<4x8xf32>, vector<360x8xf32> -> vector<360x8xf32>
    %26 = arith.addf %18, %25 : vector<360x8xf32>
    %c20_i32_15 = arith.constant 20 : i32
    %27 = arith.addi %1, %c20_i32_15 : i32
    %c0_i32_16 = arith.constant 0 : i32
    %28 = arith.addi %27, %c0_i32_16 : i32
    %c0_17 = arith.constant 0 : index
    %29 = arith.index_cast %28 : i32 to index
    %c0_18 = arith.constant 0 : index
    %30 = vector.load %arg2[%c0_17, %29, %c0_18] : memref<1x402x4xf32, #tpu.memory_space<vmem>>, vector<1x360x4xf32>
    %31 = vector.shape_cast %30 : vector<1x360x4xf32> to vector<360x4xf32>
    %c12 = arith.constant 12 : index
    %c0_19 = arith.constant 0 : index
    %32 = vector.load %arg3[%c12, %c0_19] : memref<36x8xf32, #tpu.memory_space<vmem>>, vector<4x8xf32>
    %cst_20 = arith.constant dense<0.000000e+00> : vector<360x8xf32>
    %33 = tpu.matmul %31, %32, %cst_20 {dimension_numbers = #tpu.dot_dimension_numbers<[1], [0], [0], [1], [0, 0, 1, 1], [], []>} : vector<360x4xf32>, vector<4x8xf32>, vector<360x8xf32> -> vector<360x8xf32>
    %34 = arith.addf %26, %33 : vector<360x8xf32>
    %c20_i32_21 = arith.constant 20 : i32
    %35 = arith.addi %1, %c20_i32_21 : i32
    %c1_i32_22 = arith.constant 1 : i32
    %36 = arith.addi %35, %c1_i32_22 : i32
    %c0_23 = arith.constant 0 : index
    %37 = arith.index_cast %36 : i32 to index
    %c0_24 = arith.constant 0 : index
    %38 = vector.load %arg2[%c0_23, %37, %c0_24] : memref<1x402x4xf32, #tpu.memory_space<vmem>>, vector<1x360x4xf32>
    %39 = vector.shape_cast %38 : vector<1x360x4xf32> to vector<360x4xf32>
    %c16 = arith.constant 16 : index
    %c0_25 = arith.constant 0 : index
    %40 = vector.load %arg3[%c16, %c0_25] : memref<36x8xf32, #tpu.memory_space<vmem>>, vector<4x8xf32>
    %cst_26 = arith.constant dense<0.000000e+00> : vector<360x8xf32>
    %41 = tpu.matmul %39, %40, %cst_26 {dimension_numbers = #tpu.dot_dimension_numbers<[1], [0], [0], [1], [0, 0, 1, 1], [], []>} : vector<360x4xf32>, vector<4x8xf32>, vector<360x8xf32> -> vector<360x8xf32>
    %42 = arith.addf %34, %41 : vector<360x8xf32>
    %c20_i32_27 = arith.constant 20 : i32
    %43 = arith.addi %1, %c20_i32_27 : i32
    %c2_i32_28 = arith.constant 2 : i32
    %44 = arith.addi %43, %c2_i32_28 : i32
    %c0_29 = arith.constant 0 : index
    %45 = arith.index_cast %44 : i32 to index
    %c0_30 = arith.constant 0 : index
    %46 = vector.load %arg2[%c0_29, %45, %c0_30] : memref<1x402x4xf32, #tpu.memory_space<vmem>>, vector<1x360x4xf32>
    %47 = vector.shape_cast %46 : vector<1x360x4xf32> to vector<360x4xf32>
    %c20 = arith.constant 20 : index
    %c0_31 = arith.constant 0 : index
    %48 = vector.load %arg3[%c20, %c0_31] : memref<36x8xf32, #tpu.memory_space<vmem>>, vector<4x8xf32>
    %cst_32 = arith.constant dense<0.000000e+00> : vector<360x8xf32>
    %49 = tpu.matmul %47, %48, %cst_32 {dimension_numbers = #tpu.dot_dimension_numbers<[1], [0], [0], [1], [0, 0, 1, 1], [], []>} : vector<360x4xf32>, vector<4x8xf32>, vector<360x8xf32> -> vector<360x8xf32>
    %50 = arith.addf %42, %49 : vector<360x8xf32>
    %c40_i32 = arith.constant 40 : i32
    %51 = arith.addi %1, %c40_i32 : i32
    %c0_i32_33 = arith.constant 0 : i32
    %52 = arith.addi %51, %c0_i32_33 : i32
    %c0_34 = arith.constant 0 : index
    %53 = arith.index_cast %52 : i32 to index
    %c0_35 = arith.constant 0 : index
    %54 = vector.load %arg2[%c0_34, %53, %c0_35] : memref<1x402x4xf32, #tpu.memory_space<vmem>>, vector<1x360x4xf32>
    %55 = vector.shape_cast %54 : vector<1x360x4xf32> to vector<360x4xf32>
    %c24 = arith.constant 24 : index
    %c0_36 = arith.constant 0 : index
    %56 = vector.load %arg3[%c24, %c0_36] : memref<36x8xf32, #tpu.memory_space<vmem>>, vector<4x8xf32>
    %cst_37 = arith.constant dense<0.000000e+00> : vector<360x8xf32>
    %57 = tpu.matmul %55, %56, %cst_37 {dimension_numbers = #tpu.dot_dimension_numbers<[1], [0], [0], [1], [0, 0, 1, 1], [], []>} : vector<360x4xf32>, vector<4x8xf32>, vector<360x8xf32> -> vector<360x8xf32>
    %58 = arith.addf %50, %57 : vector<360x8xf32>
    %c40_i32_38 = arith.constant 40 : i32
    %59 = arith.addi %1, %c40_i32_38 : i32
    %c1_i32_39 = arith.constant 1 : i32
    %60 = arith.addi %59, %c1_i32_39 : i32
    %c0_40 = arith.constant 0 : index
    %61 = arith.index_cast %60 : i32 to index
    %c0_41 = arith.constant 0 : index
    %62 = vector.load %arg2[%c0_40, %61, %c0_41] : memref<1x402x4xf32, #tpu.memory_space<vmem>>, vector<1x360x4xf32>
    %63 = vector.shape_cast %62 : vector<1x360x4xf32> to vector<360x4xf32>
    %c28 = arith.constant 28 : index
    %c0_42 = arith.constant 0 : index
    %64 = vector.load %arg3[%c28, %c0_42] : memref<36x8xf32, #tpu.memory_space<vmem>>, vector<4x8xf32>
    %cst_43 = arith.constant dense<0.000000e+00> : vector<360x8xf32>
    %65 = tpu.matmul %63, %64, %cst_43 {dimension_numbers = #tpu.dot_dimension_numbers<[1], [0], [0], [1], [0, 0, 1, 1], [], []>} : vector<360x4xf32>, vector<4x8xf32>, vector<360x8xf32> -> vector<360x8xf32>
    %66 = arith.addf %58, %65 : vector<360x8xf32>
    %c40_i32_44 = arith.constant 40 : i32
    %67 = arith.addi %1, %c40_i32_44 : i32
    %c2_i32_45 = arith.constant 2 : i32
    %68 = arith.addi %67, %c2_i32_45 : i32
    %c0_46 = arith.constant 0 : index
    %69 = arith.index_cast %68 : i32 to index
    %c0_47 = arith.constant 0 : index
    %70 = vector.load %arg2[%c0_46, %69, %c0_47] : memref<1x402x4xf32, #tpu.memory_space<vmem>>, vector<1x360x4xf32>
    %71 = vector.shape_cast %70 : vector<1x360x4xf32> to vector<360x4xf32>
    %c32 = arith.constant 32 : index
    %c0_48 = arith.constant 0 : index
    %72 = vector.load %arg3[%c32, %c0_48] : memref<36x8xf32, #tpu.memory_space<vmem>>, vector<4x8xf32>
    %cst_49 = arith.constant dense<0.000000e+00> : vector<360x8xf32>
    %73 = tpu.matmul %71, %72, %cst_49 {dimension_numbers = #tpu.dot_dimension_numbers<[1], [0], [0], [1], [0, 0, 1, 1], [], []>} : vector<360x4xf32>, vector<4x8xf32>, vector<360x8xf32> -> vector<360x8xf32>
    %74 = arith.addf %66, %73 : vector<360x8xf32>
    %c0_50 = arith.constant 0 : index
    %c0_51 = arith.constant 0 : index
    %c0_52 = arith.constant 0 : index
    %75 = vector.load %arg5[%c0_50, %c0_51, %c0_52] : memref<1x360x8xf32, #tpu.memory_space<vmem>>, vector<1x360x8xf32>
    %76 = vector.shape_cast %75 : vector<1x360x8xf32> to vector<360x8xf32>
    %77 = vector.shape_cast %74 : vector<360x8xf32> to vector<1x360x8xf32>
    tpu.vector_store %arg5[%c0_50, %c0_51, %c0_52], %77 {strides = array<i32>} : memref<1x360x8xf32, #tpu.memory_space<vmem>>, vector<1x360x8xf32>,
    %c0_53 = arith.constant 0 : index
    %c0_54 = arith.constant 0 : index
    %78 = vector.load %arg4[%c0_53, %c0_54] : memref<1x360xf32, #tpu.memory_space<vmem>>, vector<1x360xf32>
    %cst_55 = arith.constant dense<0.000000e+00> : vector<1x8xf32>
    %79 = tpu.matmul %78, %74, %cst_55 {dimension_numbers = #tpu.dot_dimension_numbers<[1], [0], [0], [1], [0, 0, 1, 1], [], []>} : vector<1x360xf32>, vector<360x8xf32>, vector<1x8xf32> -> vector<1x8xf32>
    %80 = arith.mulf %74, %74 : vector<360x8xf32>
    %cst_56 = arith.constant dense<0.000000e+00> : vector<1x8xf32>
    %81 = tpu.matmul %78, %80, %cst_56 {dimension_numbers = #tpu.dot_dimension_numbers<[1], [0], [0], [1], [0, 0, 1, 1], [], []>} : vector<1x360xf32>, vector<360x8xf32>, vector<1x8xf32> -> vector<1x8xf32>
    %cst_57 = arith.constant 0.000000e+00 : f32
    %82 = vector.broadcast %cst_57 : f32 to vector<6x8xf32>
    %83 = tpu.concatenate %79, %81, %82 in 0 : vector<1x8xf32>, vector<1x8xf32>, vector<6x8xf32> -> vector<8x8xf32>
    %cst_58 = arith.constant 0.000000e+00 : f32
    %84 = vector.broadcast %cst_58 : f32 to vector<8x120xf32>
    %85 = tpu.concatenate %83, %84 in 1 : vector<8x8xf32>, vector<8x120xf32> -> vector<8x128xf32>
    %c0_59 = arith.constant 0 : index
    %c0_60 = arith.constant 0 : index
    %c0_61 = arith.constant 0 : index
    %86 = vector.load %arg6[%c0_59, %c0_60, %c0_61] : memref<1x8x128xf32, #tpu.memory_space<vmem>>, vector<1x8x128xf32>
    %87 = vector.shape_cast %86 : vector<1x8x128xf32> to vector<8x128xf32>
    %88 = vector.shape_cast %85 : vector<8x128xf32> to vector<1x8x128xf32>
    tpu.vector_store %arg6[%c0_59, %c0_60, %c0_61], %88 {strides = array<i32>} : memref<1x8x128xf32, #tpu.memory_space<vmem>>, vector<1x8x128xf32>,
    return
  }
  func.func @transform_0(%arg0: i32, %arg1: i32) -> (i32, i32, i32) {
    %c0_i32 = arith.constant 0 : i32
    %c0_i32_0 = arith.constant 0 : i32
    %c0_i32_1 = arith.constant 0 : i32
    return %arg0, %c0_i32, %c0_i32_0 : i32, i32, i32
  }
  func.func @transform_1(%arg0: i32, %arg1: i32) -> (i32, i32) {
    %c0_i32 = arith.constant 0 : i32
    %c0_i32_0 = arith.constant 0 : i32
    %c0_i32_1 = arith.constant 0 : i32
    return %c0_i32, %c0_i32_0 : i32, i32
  }
  func.func @transform_2(%arg0: i32, %arg1: i32) -> (i32, i32) {
    %c0_i32 = arith.constant 0 : i32
    %c0_i32_0 = arith.constant 0 : i32
    %c0_i32_1 = arith.constant 0 : i32
    return %c0_i32, %c0_i32_0 : i32, i32
  }
  func.func @transform_3(%arg0: i32, %arg1: i32) -> (i32, i32, i32) {
    %c0_i32 = arith.constant 0 : i32
    %c0_i32_0 = arith.constant 0 : i32
    return %arg0, %arg1, %c0_i32 : i32, i32, i32
  }
  func.func @transform_4(%arg0: i32, %arg1: i32) -> (i32, i32, i32) {
    %c1_i32 = arith.constant 1 : i32
    %0 = arith.muli %arg0, %c1_i32 : i32
    %1 = arith.addi %0, %arg1 : i32
    %c0_i32 = arith.constant 0 : i32
    %c0_i32_0 = arith.constant 0 : i32
    %c0_i32_1 = arith.constant 0 : i32
    return %1, %c0_i32, %c0_i32_0 : i32, i32, i32
  }
}

module attributes {stable_mosaic.version = 11 : i64} {
  func.func @_bn_relu_kernel(%arg0: i32, %arg1: memref<48x128xf32, #tpu.memory_space<vmem>>, %arg2: memref<1x128xf32, #tpu.memory_space<vmem>>, %arg3: memref<1x128xf32, #tpu.memory_space<vmem>>, %arg4: memref<48x128xf32, #tpu.memory_space<vmem>>) attributes {dimension_semantics = [#tpu.dimension_semantics<parallel>], iteration_bounds = array<i64: 1>, scalar_prefetch = 0 : i64, scratch_operands = 0 : i64, tpu.core_type = #tpu.core_type<tc>, window_params = [{transform_indices = @transform_0, window_bounds = array<i64: 48, 128>}, {pipeline_mode = #tpu.pipeline_mode<synchronous>, transform_indices = @transform_1, window_bounds = array<i64: 1, 128>}, {pipeline_mode = #tpu.pipeline_mode<synchronous>, transform_indices = @transform_2, window_bounds = array<i64: 1, 128>}, {transform_indices = @transform_3, window_bounds = array<i64: 48, 128>}]} {
    %c0 = arith.constant 0 : index
    %c0_0 = arith.constant 0 : index
    %0 = vector.load %arg1[%c0, %c0_0] : memref<48x128xf32, #tpu.memory_space<vmem>>, vector<48x128xf32>
    %c0_1 = arith.constant 0 : index
    %c0_2 = arith.constant 0 : index
    %1 = vector.load %arg2[%c0_1, %c0_2] : memref<1x128xf32, #tpu.memory_space<vmem>>, vector<1x128xf32>
    %2 = vector.broadcast %1 : vector<1x128xf32> to vector<48x128xf32>
    %3 = arith.mulf %0, %2 : vector<48x128xf32>
    %c0_3 = arith.constant 0 : index
    %c0_4 = arith.constant 0 : index
    %4 = vector.load %arg3[%c0_3, %c0_4] : memref<1x128xf32, #tpu.memory_space<vmem>>, vector<1x128xf32>
    %5 = vector.broadcast %4 : vector<1x128xf32> to vector<48x128xf32>
    %6 = arith.addf %3, %5 : vector<48x128xf32>
    %cst = arith.constant 0.000000e+00 : f32
    %7 = vector.broadcast %cst : f32 to vector<48x128xf32>
    %8 = arith.maximumf %6, %7 : vector<48x128xf32>
    %c0_5 = arith.constant 0 : index
    %c0_6 = arith.constant 0 : index
    %9 = vector.load %arg4[%c0_5, %c0_6] : memref<48x128xf32, #tpu.memory_space<vmem>>, vector<48x128xf32>
    tpu.vector_store %arg4[%c0_5, %c0_6], %8 {strides = array<i32>} : memref<48x128xf32, #tpu.memory_space<vmem>>, vector<48x128xf32>,
    return
  }
  func.func @transform_0(%arg0: i32) -> (i32, i32) {
    %c0_i32 = arith.constant 0 : i32
    %c0_i32_0 = arith.constant 0 : i32
    return %arg0, %c0_i32 : i32, i32
  }
  func.func @transform_1(%arg0: i32) -> (i32, i32) {
    %c0_i32 = arith.constant 0 : i32
    %c0_i32_0 = arith.constant 0 : i32
    %c0_i32_1 = arith.constant 0 : i32
    return %c0_i32, %c0_i32_0 : i32, i32
  }
  func.func @transform_2(%arg0: i32) -> (i32, i32) {
    %c0_i32 = arith.constant 0 : i32
    %c0_i32_0 = arith.constant 0 : i32
    %c0_i32_1 = arith.constant 0 : i32
    return %c0_i32, %c0_i32_0 : i32, i32
  }
  func.func @transform_3(%arg0: i32) -> (i32, i32) {
    %c0_i32 = arith.constant 0 : i32
    %c0_i32_0 = arith.constant 0 : i32
    return %arg0, %c0_i32 : i32, i32
  }
}

</mosaic_0001>

<llo_original>
// kernel: tile.18
$region0: #{tile.18}
  #allocation0 [shape = 's32[1]{0}', space=sflag, size = 0x4, scoped, tag = 'scoped memory for tile.18']
  %s0 = inlined_call_operand.vmem [shape: f32[8], index: 0, kind: input, shape index: {}]
  %s1 = inlined_call_operand.vmem [shape: f32[16,8], index: 1, kind: output, shape index: {}]
  // Predicated region
  $region2: #{tile.18} parent=0 // pred_check
    _
  $region3: #{tile.18} parent=0 // pred_check_branch
    %3 = sbr.rel (0) target = $region5
  $region4: #{tile.18} parent=0 // pred_region
    _
  $region5: #{tile.18} parent=0 // pred_fallthru
    _
  %v4 = vld [vmem:[%s0] ss:$0 sm:$0xff]
  %5 = vst [vmem:[%s1] sm:$0xff] %v4
  %s6 = scalar_lea.vmem %s1, 8
  %7 = vst [vmem:[%s6] sm:$0xff] %v4

// kernel: tile.19
$region0: #{tile.19}
  %s0 = inlined_call_operand.vmem [shape: f32[16,8], index: 0, kind: input, shape index: {}]
  %s1 = inlined_call_operand.vmem [shape: f32[1,128], index: 1, kind: output, shape index: {}]
  $region1: #{tile.19} parent=0
    #allocation0 [shape = 'u8[4096]{0}', space=vmem, size = 0x1000, scoped, tag = 'scoped mem for output reshape']
    %v2 = vld [vmem:[%s0] sm:$0x1]
    %vm3 = vcmask 64512
    %4 = vst.msk [vmem:[#allocation0] sm:$0x1] %vm3, %v2
    %s5 = scalar_lea.vmem %s0, 15
    %v6 = vld [vmem:[%s5] sm:$0x1]
    %7 = vrot.lane.b32.xlu0 %v6, 120
    %v8 = vpop.permute.xlu0 %7
    %vm9 = vcmask 1048512
    %10 = vst.msk [vmem:[#allocation0] sm:$0x1] %vm9, %v8
    %s11 = scalar_lea.vmem %s0, 14
    %v12 = vld [vmem:[%s11] sm:$0x1]
    %13 = vrot.lane.b32.xlu0 %v12, 112
    %v14 = vpop.permute.xlu0 %13
    %vm15 = vcmask 982912
    %16 = vst.msk [vmem:[#allocation0] sm:$0x1] %vm15, %v14
    %s17 = scalar_lea.vmem %s0, 13
    %v18 = vld [vmem:[%s17] sm:$0x1]
    %19 = vrot.lane.b32.xlu0 %v18, 104
    %v20 = vpop.permute.xlu0 %19
    %vm21 = vcmask 917312
    %22 = vst.msk [vmem:[#allocation0] sm:$0x1] %vm21, %v20
    %s23 = scalar_lea.vmem %s0, 12
    %v24 = vld [vmem:[%s23] sm:$0x1]
    %25 = vrot.lane.b32.xlu0 %v24, 96
    %v26 = vpop.permute.xlu0 %25
    %vm27 = vcmask 851712
    %28 = vst.msk [vmem:[#allocation0] sm:$0x1] %vm27, %v26
    %s29 = scalar_lea.vmem %s0, 11
    %v30 = vld [vmem:[%s29] sm:$0x1]
    %31 = vrot.lane.b32.xlu0 %v30, 88
    %v32 = vpop.permute.xlu0 %31
    %vm33 = vcmask 786112
    %34 = vst.msk [vmem:[#allocation0] sm:$0x1] %vm33, %v32
    %s35 = scalar_lea.vmem %s0, 10
    %v36 = vld [vmem:[%s35] sm:$0x1]
    %37 = vrot.lane.b32.xlu0 %v36, 80
    %v38 = vpop.permute.xlu0 %37
    %vm39 = vcmask 720512
    %40 = vst.msk [vmem:[#allocation0] sm:$0x1] %vm39, %v38
    %s41 = scalar_lea.vmem %s0, 9
    %v42 = vld [vmem:[%s41] sm:$0x1]
    %43 = vrot.lane.b32.xlu0 %v42, 72
    %v44 = vpop.permute.xlu0 %43
    %vm45 = vcmask 654912
    %46 = vst.msk [vmem:[#allocation0] sm:$0x1] %vm45, %v44
    %s47 = scalar_lea.vmem %s0, 8
    %v48 = vld [vmem:[%s47] sm:$0x1]
    %49 = vrot.lane.b32.xlu0 %v48, 64
    %v50 = vpop.permute.xlu0 %49
    %vm51 = vcmask 589312
    %52 = vst.msk [vmem:[#allocation0] sm:$0x1] %vm51, %v50
    %s53 = scalar_lea.vmem %s0, 7
    %v54 = vld [vmem:[%s53] sm:$0x1]
    %55 = vrot.lane.b32.xlu0 %v54, 56
    %v56 = vpop.permute.xlu0 %55
    %vm57 = vcmask 523712
    %58 = vst.msk [vmem:[#allocation0] sm:$0x1] %vm57, %v56
    %s59 = scalar_lea.vmem %s0, 6
    %v60 = vld [vmem:[%s59] sm:$0x1]
    %61 = vrot.lane.b32.xlu0 %v60, 48
    %v62 = vpop.permute.xlu0 %61
    %vm63 = vcmask 458112
    %64 = vst.msk [vmem:[#allocation0] sm:$0x1] %vm63, %v62
    %s65 = scalar_lea.vmem %s0, 5
    %v66 = vld [vmem:[%s65] sm:$0x1]
    %67 = vrot.lane.b32.xlu0 %v66, 40
    %v68 = vpop.permute.xlu0 %67
    %vm69 = vcmask 392512
    %70 = vst.msk [vmem:[#allocation0] sm:$0x1] %vm69, %v68
    %s71 = scalar_lea.vmem %s0, 4
    %v72 = vld [vmem:[%s71] sm:$0x1]
    %73 = vrot.lane.b32.xlu0 %v72, 32
    %v74 = vpop.permute.xlu0 %73
    %vm75 = vcmask 326912
    %76 = vst.msk [vmem:[#allocation0] sm:$0x1] %vm75, %v74
    %s77 = scalar_lea.vmem %s0, 3
    %v78 = vld [vmem:[%s77] sm:$0x1]
    %79 = vrot.lane.b32.xlu0 %v78, 24
    %v80 = vpop.permute.xlu0 %79
    %vm81 = vcmask 261312
    %82 = vst.msk [vmem:[#allocation0] sm:$0x1] %vm81, %v80
    %s83 = scalar_lea.vmem %s0, 2
    %v84 = vld [vmem:[%s83] sm:$0x1]
    %85 = vrot.lane.b32.xlu0 %v84, 16
    %v86 = vpop.permute.xlu0 %85
    %vm87 = vcmask 195712
    %88 = vst.msk [vmem:[#allocation0] sm:$0x1] %vm87, %v86
    %s89 = scalar_lea.vmem %s0, 1
    %v90 = vld [vmem:[%s89] sm:$0x1]
    %91 = vrot.lane.b32.xlu0 %v90, 8
    %v92 = vpop.permute.xlu0 %91
    %vm93 = vcmask 130112
    %94 = vst.msk [vmem:[#allocation0] sm:$0x1] %vm93, %v92
    %s96 = ssub.s32 2, 1
    %v97 = vld [vmem:[#allocation0] sm:%s96]
    %s99 = ssub.s32 2, 1
    %100 = vst [vmem:[%s1] sm:%s99] %v97

// kernel: basic_conv_transpose2d.3
$region0: #{basic_conv_transpose2d.3}
  #allocation0 [shape = 'u32[]', space=smem, size = 0x4, offset = 0x4, fixed_abs, tag = 'smem constant byte address 0x4 - core index']
  #allocation1 [shape = 'u32[72,128]{1,0:T(1,128)}', space=vmem, size = 0x9000, scoped, tag = 'internal scratch']
  %s0 = inlined_call_operand.vmem [shape: f32[45,128], index: 0, kind: input, shape index: {}, may-alias: {0,3}]
  %s1 = inlined_call_operand.vmem [shape: f32[1,128], index: 1, kind: input, shape index: {}]
  %s2 = inlined_call_operand.vmem [shape: f32[1,128], index: 2, kind: input, shape index: {}]
  %s3 = inlined_call_operand.vmem [shape: f32[45,128], index: 3, kind: output, shape index: {}, may-alias: {0,3}]
  %s4 = sld [smem:[#allocation0]]
  $region22: #{basic_conv_transpose2d.3} parent=0
    _
  %s6 = ssub.s32 1, %s4
  %s7 = scalar_select 0, %s6, %s4
  // Predicated region
  $region2: #{basic_conv_transpose2d.3} parent=0 // pred_check
    _
  $region3: #{basic_conv_transpose2d.3} parent=0 // pred_check_branch
    %9 = sbr.rel (0) target = $region5
  $region4: #{basic_conv_transpose2d.3} parent=0 // pred_region
    _
  $region5: #{basic_conv_transpose2d.3} parent=0 // pred_fallthru
    _
  // Predicated region
  $region6: #{basic_conv_transpose2d.3} parent=0 // pred_check
    _
  $region7: #{basic_conv_transpose2d.3} parent=0 // pred_check_branch
    %11 = sbr.rel (0) target = $region9
  $region8: #{basic_conv_transpose2d.3} parent=0 // pred_region
    _
  $region9: #{basic_conv_transpose2d.3} parent=0 // pred_fallthru
    _
  // Predicated region
  $region10: #{basic_conv_transpose2d.3} parent=0 // pred_check
    _
  $region11: #{basic_conv_transpose2d.3} parent=0 // pred_check_branch
    %13 = sbr.rel (0) target = $region13
  $region12: #{basic_conv_transpose2d.3} parent=0 // pred_region
    _
  $region13: #{basic_conv_transpose2d.3} parent=0 // pred_fallthru
    _
  %v14 = vld [vmem:[%s0] sm:$0xff]
  %v15 = vld [vmem:[%s0 + $0x8] sm:$0xff]
  %v16 = vld [vmem:[%s0 + $0x10] sm:$0xff]
  %v17 = vld [vmem:[%s0 + $0x18] sm:$0xff]
  %v18 = vld [vmem:[%s0 + $0x20] sm:$0xff]
  %v19 = vld [vmem:[%s0 + $0x28] sm:$0xff]
  %v20 = vld [vmem:[%s1] sm:$0x1]
  %v22 = vperm.slane %v20, 0
  %v24 = vmul.f32 %v14, %v22
  %v25 = vmul.f32 %v15, %v22
  %v26 = vmul.f32 %v16, %v22
  %v27 = vmul.f32 %v17, %v22
  %v28 = vmul.f32 %v18, %v22
  %v29 = vmul.f32 %v19, %v22
  %v30 = vld [vmem:[%s2] sm:$0x1]
  %v32 = vperm.slane %v30, 0
  %v34 = vadd.f32 %v24, %v32
  %v35 = vadd.f32 %v25, %v32
  %v36 = vadd.f32 %v26, %v32
  %v37 = vadd.f32 %v27, %v32
  %v38 = vadd.f32 %v28, %v32
  %v39 = vadd.f32 %v29, %v32
  %v40 = vmax.f32 %v34, 0.0
  %v41 = vmax.f32 %v35, 0.0
  %v42 = vmax.f32 %v36, 0.0
  %v43 = vmax.f32 %v37, 0.0
  %v44 = vmax.f32 %v38, 0.0
  %v45 = vmax.f32 %v39, 0.0
  %46 = vst [vmem:[%s3] sm:$0xff] %v40
  %47 = vst [vmem:[%s3 + $0x8] sm:$0xff] %v41
  %48 = vst [vmem:[%s3 + $0x10] sm:$0xff] %v42
  %49 = vst [vmem:[%s3 + $0x18] sm:$0xff] %v43
  %50 = vst [vmem:[%s3 + $0x20] sm:$0xff] %v44
  %51 = vst [vmem:[%s3 + $0x28] sm:$0xff] %v45
  // Predicated region
  $region14: #{basic_conv_transpose2d.3} parent=0 // pred_check
    _
  $region15: #{basic_conv_transpose2d.3} parent=0 // pred_check_branch
    %53 = sbr.rel (0) target = $region17
  $region16: #{basic_conv_transpose2d.3} parent=0 // pred_region
    _
  $region17: #{basic_conv_transpose2d.3} parent=0 // pred_fallthru
    _
  // Predicated region
  $region18: #{basic_conv_transpose2d.3} parent=0 // pred_check
    _
  $region19: #{basic_conv_transpose2d.3} parent=0 // pred_check_branch
    %55 = sbr.rel (0) target = $region21
  $region20: #{basic_conv_transpose2d.3} parent=0 // pred_region
    _
  $region21: #{basic_conv_transpose2d.3} parent=0 // pred_fallthru
    _

// kernel: basic_conv_transpose2d.2
$region0: #{basic_conv_transpose2d.2}
  #allocation0 [shape = 'u32[]', space=smem, size = 0x4, offset = 0x4, fixed_abs, tag = 'smem constant byte address 0x4 - core index']
  #allocation1 [shape = 'u32[72,128]{1,0:T(1,128)}', space=vmem, size = 0x9000, scoped, tag = 'internal scratch']
  %s0 = inlined_call_operand.vmem [shape: f32[2,402,4], index: 0, kind: input, shape index: {}]
  %s1 = inlined_call_operand.vmem [shape: f32[36,8], index: 1, kind: input, shape index: {}]
  %s2 = inlined_call_operand.vmem [shape: f32[1,360], index: 2, kind: input, shape index: {}]
  %s3 = inlined_call_operand.vmem [shape: f32[2,360,8], index: 3, kind: output, shape index: {0}]
  %s4 = inlined_call_operand.vmem [shape: f32[2,8,128], index: 4, kind: output, shape index: {1}]
  %5 = xla_tuple %s3, %s4
  %s6 = sld [smem:[#allocation0]]
  $region53: #{basic_conv_transpose2d.2} parent=0
    _
  %s8 = ssub.s32 1, %s6
  %s9 = scalar_select 0, %s8, %s6
  loop: start=0, step=1, limit=4
  $region2: #{basic_conv_transpose2d.2} parent=0 // loop_pre_header
    _
  $region3: #{basic_conv_transpose2d.2} parent=0 // loop_header
    %s11 = sphi 0, %s15
    %p12 = scmp.ge.s32.totalorder %s11, 4
    %s18 = sphi 0, %s30
    %s19 = sphi 0, %s26
    %s20 = sphi 0, %s18
    %s21 = sphi 0, %s19
    %s22 = sphi 0, %s20
    %s23 = sphi 0, %s21
    %s33 = sphi 0, %s35
    %s36 = sphi 0, %s33
    %s37 = sphi 0, %s36
    %s53 = sphi 0, %s37
    %s57 = sphi 0, %s57
    %s59 = sphi 0, %s57
    %s60 = sphi 0, %s59
    %s74 = sphi 0, %s60
    %s78 = sphi 0, %s78
    %s80 = sphi 0, %s78
    %s81 = sphi 0, %s80
    %s95 = sphi 0, %s81
    %s103 = sphi 0, %s105
    %s106 = sphi 0, %s103
    %s107 = sphi 0, %s106
    %s123 = sphi 0, %s107
    %s131 = sphi 0, %s133
    %s134 = sphi 0, %s131
    %s135 = sphi 0, %s134
    %s151 = sphi 0, %s135
  $region4: #{basic_conv_transpose2d.2} parent=0 // loop_header_branch
    %14 = sbr.rel (%p12) target = $region8
  $region5: #{basic_conv_transpose2d.2} parent=0 // loop_body
    %s16 = ssub.s32 %s11, 1
    %s17 = ssub.s32 %s11, 2
    %s24 = sadd.s32 1, %s19
    %p25 = scmp.ge.s32.totalorder %s24, 1
    %s26 = scalar_select %p25, 0, %s24
    %s27 = sadd.s32 1, %s18
    %s28 = scalar_select %p25, %s27, %s18
    %p29 = scmp.ge.s32.totalorder %s28, 2
    %s30 = scalar_select %p29, 0, %s28
    %s31 = ssub.s32 %s18, %s30
    %p32 = scmp.eq.s32.totalorder %s31, 0
    %s34 = sadd.s32 %s33, 1
    %s35 = scalar_select %p32, %s33, %s34
    %p38 = pneg %p32
    %p39 = scmp.eq.s32.totalorder %s11, 1
    %p40 = por %p38, %p39
    %p41 = scmp.ne.s32.totalorder %s33, %s36
    %p42 = scmp.eq.s32.totalorder %s11, 0
    %p43 = por %p41, %p42
    %p44 = scmp.ne.s32.totalorder %s33, %s36
    %p45 = scmp.eq.s32.totalorder %s16, 1
    %p46 = por %p44, %p45
    %p47 = scmp.ne.s32.totalorder %s36, %s37
    %p48 = scmp.eq.s32.totalorder %s16, 0
    %p49 = por %p47, %p48
    %p50 = scmp.ne.s32.totalorder %s36, %s37
    %p51 = scmp.eq.s32.totalorder %s17, 1
    %p52 = por %p50, %p51
    %p54 = scmp.ne.s32.totalorder %s37, %s53
    %p55 = scmp.eq.s32.totalorder %s17, 0
    %p56 = por %p54, %p55
    %s58 = sadd.s32 %s57, 1
    %p61 = scmp.eq.s32.totalorder %s11, 1
    %p62 = scmp.ne.s32.totalorder %s57, %s59
    %p63 = scmp.eq.s32.totalorder %s11, 0
    %p64 = por %p62, %p63
    %p65 = scmp.ne.s32.totalorder %s57, %s59
    %p66 = scmp.eq.s32.totalorder %s16, 1
    %p67 = por %p65, %p66
    %p68 = scmp.ne.s32.totalorder %s59, %s60
    %p69 = scmp.eq.s32.totalorder %s16, 0
    %p70 = por %p68, %p69
    %p71 = scmp.ne.s32.totalorder %s59, %s60
    %p72 = scmp.eq.s32.totalorder %s17, 1
    %p73 = por %p71, %p72
    %p75 = scmp.ne.s32.totalorder %s60, %s74
    %p76 = scmp.eq.s32.totalorder %s17, 0
    %p77 = por %p75, %p76
    %s79 = sadd.s32 %s78, 1
    %p82 = scmp.eq.s32.totalorder %s11, 1
    %p83 = scmp.ne.s32.totalorder %s78, %s80
    %p84 = scmp.eq.s32.totalorder %s11, 0
    %p85 = por %p83, %p84
    %p86 = scmp.ne.s32.totalorder %s78, %s80
    %p87 = scmp.eq.s32.totalorder %s16, 1
    %p88 = por %p86, %p87
    %p89 = scmp.ne.s32.totalorder %s80, %s81
    %p90 = scmp.eq.s32.totalorder %s16, 0
    %p91 = por %p89, %p90
    %p92 = scmp.ne.s32.totalorder %s80, %s81
    %p93 = scmp.eq.s32.totalorder %s17, 1
    %p94 = por %p92, %p93
    %p96 = scmp.ne.s32.totalorder %s81, %s95
    %p97 = scmp.eq.s32.totalorder %s17, 0
    %p98 = por %p96, %p97
    %s99 = ssub.s32 %s18, %s30
    %s100 = ssub.s32 %s19, %s26
    %s101 = sor.u32 %s99, %s100
    %p102 = scmp.eq.s32.totalorder %s101, 0
    %s104 = sadd.s32 %s103, 1
    %s105 = scalar_select %p102, %s103, %s104
    %p108 = pneg %p102
    %p109 = scmp.eq.s32.totalorder %s11, 1
    %p110 = por %p108, %p109
    %p111 = scmp.ne.s32.totalorder %s103, %s106
    %p112 = scmp.eq.s32.totalorder %s11, 0
    %p113 = por %p111, %p112
    %p114 = scmp.ne.s32.totalorder %s103, %s106
    %p115 = scmp.eq.s32.totalorder %s16, 1
    %p116 = por %p114, %p115
    %p117 = scmp.ne.s32.totalorder %s106, %s107
    %p118 = scmp.eq.s32.totalorder %s16, 0
    %p119 = por %p117, %p118
    %p120 = scmp.ne.s32.totalorder %s106, %s107
    %p121 = scmp.eq.s32.totalorder %s17, 1
    %p122 = por %p120, %p121
    %p124 = scmp.ne.s32.totalorder %s107, %s123
    %p125 = scmp.eq.s32.totalorder %s17, 0
    %p126 = por %p124, %p125
    %s127 = sadd.s32 %s18, %s19
    %s128 = sadd.s32 %s30, %s26
    %s129 = ssub.s32 %s127, %s128
    %p130 = scmp.eq.s32.totalorder %s129, 0
    %s132 = sadd.s32 %s131, 1
    %s133 = scalar_select %p130, %s131, %s132
    %p136 = pneg %p130
    %p137 = scmp.eq.s32.totalorder %s11, 1
    %p138 = por %p136, %p137
    %p139 = scmp.ne.s32.totalorder %s131, %s134
    %p140 = scmp.eq.s32.totalorder %s11, 0
    %p141 = por %p139, %p140
    %p142 = scmp.ne.s32.totalorder %s131, %s134
    %p143 = scmp.eq.s32.totalorder %s16, 1
    %p144 = por %p142, %p143
    %p145 = scmp.ne.s32.totalorder %s134, %s135
    %p146 = scmp.eq.s32.totalorder %s16, 0
    %p147 = por %p145, %p146
    %p148 = scmp.ne.s32.totalorder %s134, %s135
    %p149 = scmp.eq.s32.totalorder %s17, 1
    %p150 = por %p148, %p149
    %p152 = scmp.ne.s32.totalorder %s135, %s151
    %p153 = scmp.eq.s32.totalorder %s17, 0
    %p154 = por %p152, %p153
    %p155 = scmp.le.s32.totalorder 1, %s11
    %p156 = scmp.lt.s32.totalorder %s11, 3
    %p157 = pnand %p155, %p156
    %p158 = pneg %p157
    // Predicated region
    $region9: #{basic_conv_transpose2d.2} parent=5 // pred_check
      _
    $region10: #{basic_conv_transpose2d.2} parent=5 // pred_check_branch
      %160 = sbr.rel (%p157) target = $region12
    $region11: #{basic_conv_transpose2d.2} parent=5 // pred_region
      %s161 = ssub.s32 %s11, 1
      // Predicated region
      $region13: #{basic_conv_transpose2d.2} parent=11 // pred_check
        %p162 = pneg %p70
      $region14: #{basic_conv_transpose2d.2} parent=11 // pred_check_branch
        %164 = sbr.rel (%p162) target = $region16
      $region15: #{basic_conv_transpose2d.2} parent=11 // pred_region
        _
      $region16: #{basic_conv_transpose2d.2} parent=11 // pred_fallthru
        _
      // Predicated region
      $region17: #{basic_conv_transpose2d.2} parent=11 // pred_check
        %p165 = pneg %p91
      $region18: #{basic_conv_transpose2d.2} parent=11 // pred_check_branch
        %167 = sbr.rel (%p165) target = $region20
      $region19: #{basic_conv_transpose2d.2} parent=11 // pred_region
        _
      $region20: #{basic_conv_transpose2d.2} parent=11 // pred_fallthru
        _
    $region12: #{basic_conv_transpose2d.2} parent=5 // pred_fallthru
      _
    %p168 = scmp.lt.s32.totalorder %s11, 2
    // Predicated region
    $region21: #{basic_conv_transpose2d.2} parent=5 // pred_check
      %p169 = pneg %p168
    $region22: #{basic_conv_transpose2d.2} parent=5 // pred_check_branch
      %171 = sbr.rel (%p169) target = $region24
    $region23: #{basic_conv_transpose2d.2} parent=5 // pred_region
      // Predicated region
      $region25: #{basic_conv_transpose2d.2} parent=23 // pred_check
        %p172 = pneg %p43
      $region26: #{basic_conv_transpose2d.2} parent=23 // pred_check_branch
        %174 = sbr.rel (%p172) target = $region28
      $region27: #{basic_conv_transpose2d.2} parent=23 // pred_region
        %p175 = scmp.lt.s32.totalorder %s18, 1
        %s176 = scalar_select %p175, %s18, 1
        %s177 = smul.addr %s176, 51
        %s178 = smul.addr %s177, 8
        %s179 = scalar_lea.vmem %s0, %s178
      $region28: #{basic_conv_transpose2d.2} parent=23 // pred_fallthru
        _
    $region24: #{basic_conv_transpose2d.2} parent=5 // pred_fallthru
      _
    %p180 = scmp.le.s32.totalorder 1, %s11
    %p181 = scmp.lt.s32.totalorder %s11, 3
    %p182 = pnand %p180, %p181
    %p183 = pneg %p182
    // Predicated region
    $region29: #{basic_conv_transpose2d.2} parent=5 // pred_check
      _
    $region30: #{basic_conv_transpose2d.2} parent=5 // pred_check_branch
      %185 = sbr.rel (%p182) target = $region32
    $region31: #{basic_conv_transpose2d.2} parent=5 // pred_region
      %s186 = ssub.s32 %s11, 1
      %p187 = scmp.lt.s32.totalorder %s20, 1
      %s188 = scalar_select %p187, %s20, 1
      %s189 = smul.addr %s188, 51
      %s190 = smul.addr %s189, 8
      %s191 = scalar_lea.vmem %s0, %s190
      %p192 = pneg %p49
      %p193 = pneg %p46
      %p194 = pneg %p70
      %p195 = pneg %p67
      %p196 = pneg %p91
      %p197 = pneg %p88
      %p198 = pneg %p119
      %p199 = pneg %p116
      %s200 = smul.u32 45, %s21
      %p201 = scmp.lt.s32.totalorder %s20, 1
      %s202 = scalar_select %p201, %s20, 1
      %p203 = scmp.lt.s32.totalorder %s200, 44
      %s204 = scalar_select %p203, %s200, 44
      %s205 = smul.addr %s202, 45
      %s206 = sadd.s32 %s204, %s205
      %s207 = smul.addr %s206, 8
      %s208 = scalar_lea.vmem %s3, %s207
      %p209 = pneg %p147
      %p210 = pneg %p144
      %s211 = sadd.s32 %s20, %s21
      %p212 = scmp.lt.s32.totalorder %s211, 1
      %s213 = scalar_select %p212, %s211, 1
      %s214 = smul.addr %s213, 8
      %s215 = scalar_lea.vmem %s4, %s214
      %p216 = scmp.lt.s32.totalorder %s20, 1
      %s217 = scalar_select %p216, %s20, 1
      %s218 = smul.addr %s217, 51
      %s219 = smul.addr %s218, 8
      %s220 = scalar_lea.vmem %s0, %s219
      %s221 = smul.u32 45, %s21
      %p222 = scmp.lt.s32.totalorder %s20, 1
      %s223 = scalar_select %p222, %s20, 1
      %p224 = scmp.lt.s32.totalorder %s221, 44
      %s225 = scalar_select %p224, %s221, 44
      %s226 = smul.addr %s223, 45
      %s227 = sadd.s32 %s225, %s226
      %s228 = smul.addr %s227, 8
      %s229 = scalar_lea.vmem %s3, %s228
      %s230 = smul.u32 45, %s21
      %s231 = sadd.s32 %s20, %s21
      %p232 = scmp.lt.s32.totalorder %s231, 1
      %s233 = scalar_select %p232, %s231, 1
      %s234 = smul.addr %s233, 8
      %s235 = scalar_lea.vmem %s4, %s234
      %s236 = sadd.s32 %s20, %s21
      %s237 = smul.u32 %s21, 360
      %s238 = scalar_lea.vmem %s220, %s237
      %v239 = vld [vmem:[%s238] sm:$0xff]
      %v240 = vld [vmem:[%s238 + $0x8] sm:$0xff]
      %v241 = vld [vmem:[%s238 + $0x10] sm:$0xff]
      %v242 = vld [vmem:[%s238 + $0x18] sm:$0xff]
      %v243 = vld [vmem:[%s238 + $0x20] sm:$0xff]
      %v244 = vld [vmem:[%s238 + $0x28] sm:$0xff]
      %v245 = vld [vmem:[%s238 + $0x30] sm:$0xff]
      %v246 = vld [vmem:[%s238 + $0x38] sm:$0xff]
      %v247 = vld [vmem:[%s238 + $0x40] sm:$0xff]
      %v248 = vld [vmem:[%s238 + $0x48] sm:$0xff]
      %v249 = vld [vmem:[%s238 + $0x50] sm:$0xff]
      %v250 = vld [vmem:[%s238 + $0x58] sm:$0xff]
      %v251 = vld [vmem:[%s238 + $0x60] sm:$0xff]
      %v252 = vld [vmem:[%s238 + $0x68] sm:$0xff]
      %v253 = vld [vmem:[%s238 + $0x70] sm:$0xff]
      %v254 = vld [vmem:[%s238 + $0x78] sm:$0xff]
      %v255 = vld [vmem:[%s238 + $0x80] sm:$0xff]
      %v256 = vld [vmem:[%s238 + $0x88] sm:$0xff]
      %v257 = vld [vmem:[%s238 + $0x90] sm:$0xff]
      %v258 = vld [vmem:[%s238 + $0x98] sm:$0xff]
      %v259 = vld [vmem:[%s238 + $0xa0] sm:$0xff]
      %v260 = vld [vmem:[%s238 + $0xa8] sm:$0xff]
      %v261 = vld [vmem:[%s238 + $0xb0] sm:$0xff]
      %v262 = vld [vmem:[%s238 + $0xb8] sm:$0xff]
      %v263 = vld [vmem:[%s238 + $0xc0] sm:$0xff]
      %v264 = vld [vmem:[%s238 + $0xc8] sm:$0xff]
      %v265 = vld [vmem:[%s238 + $0xd0] sm:$0xff]
      %v266 = vld [vmem:[%s238 + $0xd8] sm:$0xff]
      %v267 = vld [vmem:[%s238 + $0xe0] sm:$0xff]
      %v268 = vld [vmem:[%s238 + $0xe8] sm:$0xff]
      %v269 = vld [vmem:[%s238 + $0xf0] sm:$0xff]
      %v270 = vld [vmem:[%s238 + $0xf8] sm:$0xff]
      %v271 = vld [vmem:[%s238 + $0x100] sm:$0xff]
      %v272 = vld [vmem:[%s238 + $0x108] sm:$0xff]
      %v273 = vld [vmem:[%s238 + $0x110] sm:$0xff]
      %v274 = vld [vmem:[%s238 + $0x118] sm:$0xff]
      %v275 = vld [vmem:[%s238 + $0x120] sm:$0xff]
      %v276 = vld [vmem:[%s238 + $0x128] sm:$0xff]
      %v277 = vld [vmem:[%s238 + $0x130] sm:$0xff]
      %v278 = vld [vmem:[%s238 + $0x138] sm:$0xff]
      %v279 = vld [vmem:[%s238 + $0x140] sm:$0xff]
      %v280 = vld [vmem:[%s238 + $0x148] sm:$0xff]
      %v281 = vld [vmem:[%s238 + $0x150] sm:$0xff]
      %v282 = vld [vmem:[%s238 + $0x158] sm:$0xff]
      %v283 = vld [vmem:[%s238 + $0x160] sm:$0xff]
      %v284 = vld [vmem:[%s1] sm:$0xf]
      %s285 = sadd.s32 %s237, 1
      %s286 = scalar_lea.vmem %s220, %s285
      %v287 = vld [vmem:[%s286] sm:$0xff]
      %v288 = vld [vmem:[%s286 + $0x8] sm:$0xff]
      %v289 = vld [vmem:[%s286 + $0x10] sm:$0xff]
      %v290 = vld [vmem:[%s286 + $0x18] sm:$0xff]
      %v291 = vld [vmem:[%s286 + $0x20] sm:$0xff]
      %v292 = vld [vmem:[%s286 + $0x28] sm:$0xff]
      %v293 = vld [vmem:[%s286 + $0x30] sm:$0xff]
      %v294 = vld [vmem:[%s286 + $0x38] sm:$0xff]
      %v295 = vld [vmem:[%s286 + $0x40] sm:$0xff]
      %v296 = vld [vmem:[%s286 + $0x48] sm:$0xff]
      %v297 = vld [vmem:[%s286 + $0x50] sm:$0xff]
      %v298 = vld [vmem:[%s286 + $0x58] sm:$0xff]
      %v299 = vld [vmem:[%s286 + $0x60] sm:$0xff]
      %v300 = vld [vmem:[%s286 + $0x68] sm:$0xff]
      %v301 = vld [vmem:[%s286 + $0x70] sm:$0xff]
      %v302 = vld [vmem:[%s286 + $0x78] sm:$0xff]
      %v303 = vld [vmem:[%s286 + $0x80] sm:$0xff]
      %v304 = vld [vmem:[%s286 + $0x88] sm:$0xff]
      %v305 = vld [vmem:[%s286 + $0x90] sm:$0xff]
      %v306 = vld [vmem:[%s286 + $0x98] sm:$0xff]
      %v307 = vld [vmem:[%s286 + $0xa0] sm:$0xff]
      %v308 = vld [vmem:[%s286 + $0xa8] sm:$0xff]
      %v309 = vld [vmem:[%s286 + $0xb0] sm:$0xff]
      %v310 = vld [vmem:[%s286 + $0xb8] sm:$0xff]
      %v311 = vld [vmem:[%s286 + $0xc0] sm:$0xff]
      %v312 = vld [vmem:[%s286 + $0xc8] sm:$0xff]
      %v313 = vld [vmem:[%s286 + $0xd0] sm:$0xff]
      %v314 = vld [vmem:[%s286 + $0xd8] sm:$0xff]
      %v315 = vld [vmem:[%s286 + $0xe0] sm:$0xff]
      %v316 = vld [vmem:[%s286 + $0xe8] sm:$0xff]
      %v317 = vld [vmem:[%s286 + $0xf0] sm:$0xff]
      %v318 = vld [vmem:[%s286 + $0xf8] sm:$0xff]
      %v319 = vld [vmem:[%s286 + $0x100] sm:$0xff]
      %v320 = vld [vmem:[%s286 + $0x108] sm:$0xff]
      %v321 = vld [vmem:[%s286 + $0x110] sm:$0xff]
      %v322 = vld [vmem:[%s286 + $0x118] sm:$0xff]
      %v323 = vld [vmem:[%s286 + $0x120] sm:$0xff]
      %v324 = vld [vmem:[%s286 + $0x128] sm:$0xff]
      %v325 = vld [vmem:[%s286 + $0x130] sm:$0xff]
      %v326 = vld [vmem:[%s286 + $0x138] sm:$0xff]
      %v327 = vld [vmem:[%s286 + $0x140] sm:$0xff]
      %v328 = vld [vmem:[%s286 + $0x148] sm:$0xff]
      %v329 = vld [vmem:[%s286 + $0x150] sm:$0xff]
      %v330 = vld [vmem:[%s286 + $0x158] sm:$0xff]
      %v331 = vld [vmem:[%s286 + $0x160] sm:$0xff]
      %v332 = vld [vmem:[%s1 + $0x4] sm:$0xf]
      %vm333 = vcmask 31744
      %v335 = vsel %vm333, %v287, 0
      %v338 = vsel %vm333, %v288, 0
      %v341 = vsel %vm333, %v289, 0
      %v344 = vsel %vm333, %v290, 0
      %v347 = vsel %vm333, %v291, 0
      %v350 = vsel %vm333, %v292, 0
      %v353 = vsel %vm333, %v293, 0
      %v356 = vsel %vm333, %v294, 0
      %v359 = vsel %vm333, %v295, 0
      %v362 = vsel %vm333, %v296, 0
      %v365 = vsel %vm333, %v297, 0
      %v368 = vsel %vm333, %v298, 0
      %v371 = vsel %vm333, %v299, 0
      %v374 = vsel %vm333, %v300, 0
      %v377 = vsel %vm333, %v301, 0
      %v380 = vsel %vm333, %v302, 0
      %v383 = vsel %vm333, %v303, 0
      %v386 = vsel %vm333, %v304, 0
      %v389 = vsel %vm333, %v305, 0
      %v392 = vsel %vm333, %v306, 0
      %v395 = vsel %vm333, %v307, 0
      %v398 = vsel %vm333, %v308, 0
      %v401 = vsel %vm333, %v309, 0
      %v404 = vsel %vm333, %v310, 0
      %v407 = vsel %vm333, %v311, 0
      %v410 = vsel %vm333, %v312, 0
      %v413 = vsel %vm333, %v313, 0
      %v416 = vsel %vm333, %v314, 0
      %v419 = vsel %vm333, %v315, 0
      %v422 = vsel %vm333, %v316, 0
      %v425 = vsel %vm333, %v317, 0
      %v428 = vsel %vm333, %v318, 0
      %v431 = vsel %vm333, %v319, 0
      %v434 = vsel %vm333, %v320, 0
      %v437 = vsel %vm333, %v321, 0
      %v440 = vsel %vm333, %v322, 0
      %v443 = vsel %vm333, %v323, 0
      %v446 = vsel %vm333, %v324, 0
      %v449 = vsel %vm333, %v325, 0
      %v452 = vsel %vm333, %v326, 0
      %v455 = vsel %vm333, %v327, 0
      %v458 = vsel %vm333, %v328, 0
      %v461 = vsel %vm333, %v329, 0
      %v464 = vsel %vm333, %v330, 0
      %v467 = vsel %vm333, %v331, 0
      %vm469 = vcmask 1043456
      %v471 = vsel %vm469, %v332, 0
      %473 = vmatpush.msra.mxu0 0.0
      %474 = vmatpush.msra.mxu0 0.0
      %475 = vmatpush.msra.mxu0 0.0
      %476 = vmatpush.msra.mxu0 0.0
      %477 = vmatpush.msra.mxu0 0.0
      %478 = vmatpush.msra.mxu0 0.0
      %479 = vmatpush.msra.mxu0 0.0
      %480 = vmatpush.msra.mxu0 0.0
      %481 = vmatpush.msra.mxu0 0.0
      %482 = vmatpush.msra.mxu0 0.0
      %483 = vmatpush.msra.mxu0 0.0
      %484 = vmatpush.msra.mxu0 0.0
      %485 = vmatpush.msra.mxu0 0.0
      %486 = vmatpush.msra.mxu0 0.0
      %487 = vmatpush.msra.mxu0 0.0
      %488 = vmatpush.msra.mxu0 %v471
      %489 = vmatmul.f32.gmra.mxu0 %v335
      %v490 = vpop.f32.mrf.mxu0
      %v491 = vadd.f32 0.0, %v490
      %492 = vmatmul.f32.gmra.mxu0 %v338
      %v493 = vpop.f32.mrf.mxu0
      %v494 = vadd.f32 0.0, %v493
      %495 = vmatmul.f32.gmra.mxu0 %v341
      %v496 = vpop.f32.mrf.mxu0
      %v497 = vadd.f32 0.0, %v496
      %498 = vmatmul.f32.gmra.mxu0 %v344
      %v499 = vpop.f32.mrf.mxu0
      %v500 = vadd.f32 0.0, %v499
      %501 = vmatmul.f32.gmra.mxu0 %v347
      %v502 = vpop.f32.mrf.mxu0
      %v503 = vadd.f32 0.0, %v502
      %504 = vmatmul.f32.gmra.mxu0 %v350
      %v505 = vpop.f32.mrf.mxu0
      %v506 = vadd.f32 0.0, %v505
      %507 = vmatmul.f32.gmra.mxu0 %v353
      %v508 = vpop.f32.mrf.mxu0
      %v509 = vadd.f32 0.0, %v508
      %510 = vmatmul.f32.gmra.mxu0 %v356
      %v511 = vpop.f32.mrf.mxu0
      %v512 = vadd.f32 0.0, %v511
      %513 = vmatmul.f32.gmra.mxu0 %v359
      %v514 = vpop.f32.mrf.mxu0
      %v515 = vadd.f32 0.0, %v514
      %516 = vmatmul.f32.gmra.mxu0 %v362
      %v517 = vpop.f32.mrf.mxu0
      %v518 = vadd.f32 0.0, %v517
      %519 = vmatmul.f32.gmra.mxu0 %v365
      %v520 = vpop.f32.mrf.mxu0
      %v521 = vadd.f32 0.0, %v520
      %522 = vmatmul.f32.gmra.mxu0 %v368
      %v523 = vpop.f32.mrf.mxu0
      %v524 = vadd.f32 0.0, %v523
      %525 = vmatmul.f32.gmra.mxu0 %v371
      %v526 = vpop.f32.mrf.mxu0
      %v527 = vadd.f32 0.0, %v526
      %528 = vmatmul.f32.gmra.mxu0 %v374
      %v529 = vpop.f32.mrf.mxu0
      %v530 = vadd.f32 0.0, %v529
      %531 = vmatmul.f32.gmra.mxu0 %v377
      %v532 = vpop.f32.mrf.mxu0
      %v533 = vadd.f32 0.0, %v532
      %534 = vmatmul.f32.gmra.mxu0 %v380
      %v535 = vpop.f32.mrf.mxu0
      %v536 = vadd.f32 0.0, %v535
      %537 = vmatmul.f32.gmra.mxu0 %v383
      %v538 = vpop.f32.mrf.mxu0
      %v539 = vadd.f32 0.0, %v538
      %540 = vmatmul.f32.gmra.mxu0 %v386
      %v541 = vpop.f32.mrf.mxu0
      %v542 = vadd.f32 0.0, %v541
      %543 = vmatmul.f32.gmra.mxu0 %v389
      %v544 = vpop.f32.mrf.mxu0
      %v545 = vadd.f32 0.0, %v544
      %546 = vmatmul.f32.gmra.mxu0 %v392
      %v547 = vpop.f32.mrf.mxu0
      %v548 = vadd.f32 0.0, %v547
      %549 = vmatmul.f32.gmra.mxu0 %v395
      %v550 = vpop.f32.mrf.mxu0
      %v551 = vadd.f32 0.0, %v550
      %552 = vmatmul.f32.gmra.mxu0 %v398
      %v553 = vpop.f32.mrf.mxu0
      %v554 = vadd.f32 0.0, %v553
      %555 = vmatmul.f32.gmra.mxu0 %v401
      %v556 = vpop.f32.mrf.mxu0
      %v557 = vadd.f32 0.0, %v556
      %558 = vmatmul.f32.gmra.mxu0 %v404
      %v559 = vpop.f32.mrf.mxu0
      %v560 = vadd.f32 0.0, %v559
      %561 = vmatmul.f32.gmra.mxu0 %v407
      %v562 = vpop.f32.mrf.mxu0
      %v563 = vadd.f32 0.0, %v562
      %564 = vmatmul.f32.gmra.mxu0 %v410
      %v565 = vpop.f32.mrf.mxu0
      %v566 = vadd.f32 0.0, %v565
      %567 = vmatmul.f32.gmra.mxu0 %v413
      %v568 = vpop.f32.mrf.mxu0
      %v569 = vadd.f32 0.0, %v568
      %570 = vmatmul.f32.gmra.mxu0 %v416
      %v571 = vpop.f32.mrf.mxu0
      %v572 = vadd.f32 0.0, %v571
      %573 = vmatmul.f32.gmra.mxu0 %v419
      %v574 = vpop.f32.mrf.mxu0
      %v575 = vadd.f32 0.0, %v574
      %576 = vmatmul.f32.gmra.mxu0 %v422
      %v577 = vpop.f32.mrf.mxu0
      %v578 = vadd.f32 0.0, %v577
      %579 = vmatmul.f32.gmra.mxu0 %v425
      %v580 = vpop.f32.mrf.mxu0
      %v581 = vadd.f32 0.0, %v580
      %582 = vmatmul.f32.gmra.mxu0 %v428
      %v583 = vpop.f32.mrf.mxu0
      %v584 = vadd.f32 0.0, %v583
      %585 = vmatmul.f32.gmra.mxu0 %v431
      %v586 = vpop.f32.mrf.mxu0
      %v587 = vadd.f32 0.0, %v586
      %588 = vmatmul.f32.gmra.mxu0 %v434
      %v589 = vpop.f32.mrf.mxu0
      %v590 = vadd.f32 0.0, %v589
      %591 = vmatmul.f32.gmra.mxu0 %v437
      %v592 = vpop.f32.mrf.mxu0
      %v593 = vadd.f32 0.0, %v592
      %594 = vmatmul.f32.gmra.mxu0 %v440
      %v595 = vpop.f32.mrf.mxu0
      %v596 = vadd.f32 0.0, %v595
      %597 = vmatmul.f32.gmra.mxu0 %v443
      %v598 = vpop.f32.mrf.mxu0
      %v599 = vadd.f32 0.0, %v598
      %600 = vmatmul.f32.gmra.mxu0 %v446
      %v601 = vpop.f32.mrf.mxu0
      %v602 = vadd.f32 0.0, %v601
      %603 = vmatmul.f32.gmra.mxu0 %v449
      %v604 = vpop.f32.mrf.mxu0
      %v605 = vadd.f32 0.0, %v604
      %606 = vmatmul.f32.gmra.mxu0 %v452
      %v607 = vpop.f32.mrf.mxu0
      %v608 = vadd.f32 0.0, %v607
      %609 = vmatmul.f32.gmra.mxu0 %v455
      %v610 = vpop.f32.mrf.mxu0
      %v611 = vadd.f32 0.0, %v610
      %612 = vmatmul.f32.gmra.mxu0 %v458
      %v613 = vpop.f32.mrf.mxu0
      %v614 = vadd.f32 0.0, %v613
      %615 = vmatmul.f32.gmra.mxu0 %v461
      %v616 = vpop.f32.mrf.mxu0
      %v617 = vadd.f32 0.0, %v616
      %618 = vmatmul.f32.gmra.mxu0 %v464
      %v619 = vpop.f32.mrf.mxu0
      %v620 = vadd.f32 0.0, %v619
      %621 = vmatmul.f32.gmra.mxu0 %v467
      %v622 = vpop.f32.mrf.mxu0
      %v623 = vadd.f32 0.0, %v622
      %624 = vdwg.mxu0
      %v626 = vsel %vm333, %v239, 0
      %v629 = vsel %vm333, %v240, 0
      %v632 = vsel %vm333, %v241, 0
      %v635 = vsel %vm333, %v242, 0
      %v638 = vsel %vm333, %v243, 0
      %v641 = vsel %vm333, %v244, 0
      %v644 = vsel %vm333, %v245, 0
      %v647 = vsel %vm333, %v246, 0
      %v650 = vsel %vm333, %v247, 0
      %v653 = vsel %vm333, %v248, 0
      %v656 = vsel %vm333, %v249, 0
      %v659 = vsel %vm333, %v250, 0
      %v662 = vsel %vm333, %v251, 0
      %v665 = vsel %vm333, %v252, 0
      %v668 = vsel %vm333, %v253, 0
      %v671 = vsel %vm333, %v254, 0
      %v674 = vsel %vm333, %v255, 0
      %v677 = vsel %vm333, %v256, 0
      %v680 = vsel %vm333, %v257, 0
      %v683 = vsel %vm333, %v258, 0
      %v686 = vsel %vm333, %v259, 0
      %v689 = vsel %vm333, %v260, 0
      %v692 = vsel %vm333, %v261, 0
      %v695 = vsel %vm333, %v262, 0
      %v698 = vsel %vm333, %v263, 0
      %v701 = vsel %vm333, %v264, 0
      %v704 = vsel %vm333, %v265, 0
      %v707 = vsel %vm333, %v266, 0
      %v710 = vsel %vm333, %v267, 0
      %v713 = vsel %vm333, %v268, 0
      %v716 = vsel %vm333, %v269, 0
      %v719 = vsel %vm333, %v270, 0
      %v722 = vsel %vm333, %v271, 0
      %v725 = vsel %vm333, %v272, 0
      %v728 = vsel %vm333, %v273, 0
      %v731 = vsel %vm333, %v274, 0
      %v734 = vsel %vm333, %v275, 0
      %v737 = vsel %vm333, %v276, 0
      %v740 = vsel %vm333, %v277, 0
      %v743 = vsel %vm333, %v278, 0
      %v746 = vsel %vm333, %v279, 0
      %v749 = vsel %vm333, %v280, 0
      %v752 = vsel %vm333, %v281, 0
      %v755 = vsel %vm333, %v282, 0
      %v758 = vsel %vm333, %v283, 0
      %v761 = vsel %vm469, %v284, 0
      %763 = vmatpush.msra.mxu0 0.0
      %764 = vmatpush.msra.mxu0 0.0
      %765 = vmatpush.msra.mxu0 0.0
      %766 = vmatpush.msra.mxu0 0.0
      %767 = vmatpush.msra.mxu0 0.0
      %768 = vmatpush.msra.mxu0 0.0
      %769 = vmatpush.msra.mxu0 0.0
      %770 = vmatpush.msra.mxu0 0.0
      %771 = vmatpush.msra.mxu0 0.0
      %772 = vmatpush.msra.mxu0 0.0
      %773 = vmatpush.msra.mxu0 0.0
      %774 = vmatpush.msra.mxu0 0.0
      %775 = vmatpush.msra.mxu0 0.0
      %776 = vmatpush.msra.mxu0 0.0
      %777 = vmatpush.msra.mxu0 0.0
      %778 = vmatpush.msra.mxu0 %v761
      %779 = vmatmul.f32.gmra.mxu0 %v626
      %v780 = vpop.f32.mrf.mxu0
      %v781 = vadd.f32 %v491, %v780
      %782 = vmatmul.f32.gmra.mxu0 %v629
      %v783 = vpop.f32.mrf.mxu0
      %v784 = vadd.f32 %v494, %v783
      %785 = vmatmul.f32.gmra.mxu0 %v632
      %v786 = vpop.f32.mrf.mxu0
      %v787 = vadd.f32 %v497, %v786
      %788 = vmatmul.f32.gmra.mxu0 %v635
      %v789 = vpop.f32.mrf.mxu0
      %v790 = vadd.f32 %v500, %v789
      %791 = vmatmul.f32.gmra.mxu0 %v638
      %v792 = vpop.f32.mrf.mxu0
      %v793 = vadd.f32 %v503, %v792
      %794 = vmatmul.f32.gmra.mxu0 %v641
      %v795 = vpop.f32.mrf.mxu0
      %v796 = vadd.f32 %v506, %v795
      %797 = vmatmul.f32.gmra.mxu0 %v644
      %v798 = vpop.f32.mrf.mxu0
      %v799 = vadd.f32 %v509, %v798
      %800 = vmatmul.f32.gmra.mxu0 %v647
      %v801 = vpop.f32.mrf.mxu0
      %v802 = vadd.f32 %v512, %v801
      %803 = vmatmul.f32.gmra.mxu0 %v650
      %v804 = vpop.f32.mrf.mxu0
      %v805 = vadd.f32 %v515, %v804
      %806 = vmatmul.f32.gmra.mxu0 %v653
      %v807 = vpop.f32.mrf.mxu0
      %v808 = vadd.f32 %v518, %v807
      %809 = vmatmul.f32.gmra.mxu0 %v656
      %v810 = vpop.f32.mrf.mxu0
      %v811 = vadd.f32 %v521, %v810
      %812 = vmatmul.f32.gmra.mxu0 %v659
      %v813 = vpop.f32.mrf.mxu0
      %v814 = vadd.f32 %v524, %v813
      %815 = vmatmul.f32.gmra.mxu0 %v662
      %v816 = vpop.f32.mrf.mxu0
      %v817 = vadd.f32 %v527, %v816
      %818 = vmatmul.f32.gmra.mxu0 %v665
      %v819 = vpop.f32.mrf.mxu0
      %v820 = vadd.f32 %v530, %v819
      %821 = vmatmul.f32.gmra.mxu0 %v668
      %v822 = vpop.f32.mrf.mxu0
      %v823 = vadd.f32 %v533, %v822
      %824 = vmatmul.f32.gmra.mxu0 %v671
      %v825 = vpop.f32.mrf.mxu0
      %v826 = vadd.f32 %v536, %v825
      %827 = vmatmul.f32.gmra.mxu0 %v674
      %v828 = vpop.f32.mrf.mxu0
      %v829 = vadd.f32 %v539, %v828
      %830 = vmatmul.f32.gmra.mxu0 %v677
      %v831 = vpop.f32.mrf.mxu0
      %v832 = vadd.f32 %v542, %v831
      %833 = vmatmul.f32.gmra.mxu0 %v680
      %v834 = vpop.f32.mrf.mxu0
      %v835 = vadd.f32 %v545, %v834
      %836 = vmatmul.f32.gmra.mxu0 %v683
      %v837 = vpop.f32.mrf.mxu0
      %v838 = vadd.f32 %v548, %v837
      %839 = vmatmul.f32.gmra.mxu0 %v686
      %v840 = vpop.f32.mrf.mxu0
      %v841 = vadd.f32 %v551, %v840
      %842 = vmatmul.f32.gmra.mxu0 %v689
      %v843 = vpop.f32.mrf.mxu0
      %v844 = vadd.f32 %v554, %v843
      %845 = vmatmul.f32.gmra.mxu0 %v692
      %v846 = vpop.f32.mrf.mxu0
      %v847 = vadd.f32 %v557, %v846
      %848 = vmatmul.f32.gmra.mxu0 %v695
      %v849 = vpop.f32.mrf.mxu0
      %v850 = vadd.f32 %v560, %v849
      %851 = vmatmul.f32.gmra.mxu0 %v698
      %v852 = vpop.f32.mrf.mxu0
      %v853 = vadd.f32 %v563, %v852
      %854 = vmatmul.f32.gmra.mxu0 %v701
      %v855 = vpop.f32.mrf.mxu0
      %v856 = vadd.f32 %v566, %v855
      %857 = vmatmul.f32.gmra.mxu0 %v704
      %v858 = vpop.f32.mrf.mxu0
      %v859 = vadd.f32 %v569, %v858
      %860 = vmatmul.f32.gmra.mxu0 %v707
      %v861 = vpop.f32.mrf.mxu0
      %v862 = vadd.f32 %v572, %v861
      %863 = vmatmul.f32.gmra.mxu0 %v710
      %v864 = vpop.f32.mrf.mxu0
      %v865 = vadd.f32 %v575, %v864
      %866 = vmatmul.f32.gmra.mxu0 %v713
      %v867 = vpop.f32.mrf.mxu0
      %v868 = vadd.f32 %v578, %v867
      %869 = vmatmul.f32.gmra.mxu0 %v716
      %v870 = vpop.f32.mrf.mxu0
      %v871 = vadd.f32 %v581, %v870
      %872 = vmatmul.f32.gmra.mxu0 %v719
      %v873 = vpop.f32.mrf.mxu0
      %v874 = vadd.f32 %v584, %v873
      %875 = vmatmul.f32.gmra.mxu0 %v722
      %v876 = vpop.f32.mrf.mxu0
      %v877 = vadd.f32 %v587, %v876
      %878 = vmatmul.f32.gmra.mxu0 %v725
      %v879 = vpop.f32.mrf.mxu0
      %v880 = vadd.f32 %v590, %v879
      %881 = vmatmul.f32.gmra.mxu0 %v728
      %v882 = vpop.f32.mrf.mxu0
      %v883 = vadd.f32 %v593, %v882
      %884 = vmatmul.f32.gmra.mxu0 %v731
      %v885 = vpop.f32.mrf.mxu0
      %v886 = vadd.f32 %v596, %v885
      %887 = vmatmul.f32.gmra.mxu0 %v734
      %v888 = vpop.f32.mrf.mxu0
      %v889 = vadd.f32 %v599, %v888
      %890 = vmatmul.f32.gmra.mxu0 %v737
      %v891 = vpop.f32.mrf.mxu0
      %v892 = vadd.f32 %v602, %v891
      %893 = vmatmul.f32.gmra.mxu0 %v740
      %v894 = vpop.f32.mrf.mxu0
      %v895 = vadd.f32 %v605, %v894
      %896 = vmatmul.f32.gmra.mxu0 %v743
      %v897 = vpop.f32.mrf.mxu0
      %v898 = vadd.f32 %v608, %v897
      %899 = vmatmul.f32.gmra.mxu0 %v746
      %v900 = vpop.f32.mrf.mxu0
      %v901 = vadd.f32 %v611, %v900
      %902 = vmatmul.f32.gmra.mxu0 %v749
      %v903 = vpop.f32.mrf.mxu0
      %v904 = vadd.f32 %v614, %v903
      %905 = vmatmul.f32.gmra.mxu0 %v752
      %v906 = vpop.f32.mrf.mxu0
      %v907 = vadd.f32 %v617, %v906
      %908 = vmatmul.f32.gmra.mxu0 %v755
      %v909 = vpop.f32.mrf.mxu0
      %v910 = vadd.f32 %v620, %v909
      %911 = vmatmul.f32.gmra.mxu0 %v758
      %v912 = vpop.f32.mrf.mxu0
      %v913 = vadd.f32 %v623, %v912
      %914 = vdwg.mxu0
      %s915 = sadd.s32 %s237, 2
      %s916 = scalar_lea.vmem %s220, %s915
      %v917 = vld [vmem:[%s916] sm:$0xff]
      %v918 = vld [vmem:[%s916 + $0x8] sm:$0xff]
      %v919 = vld [vmem:[%s916 + $0x10] sm:$0xff]
      %v920 = vld [vmem:[%s916 + $0x18] sm:$0xff]
      %v921 = vld [vmem:[%s916 + $0x20] sm:$0xff]
      %v922 = vld [vmem:[%s916 + $0x28] sm:$0xff]
      %v923 = vld [vmem:[%s916 + $0x30] sm:$0xff]
      %v924 = vld [vmem:[%s916 + $0x38] sm:$0xff]
      %v925 = vld [vmem:[%s916 + $0x40] sm:$0xff]
      %v926 = vld [vmem:[%s916 + $0x48] sm:$0xff]
      %v927 = vld [vmem:[%s916 + $0x50] sm:$0xff]
      %v928 = vld [vmem:[%s916 + $0x58] sm:$0xff]
      %v929 = vld [vmem:[%s916 + $0x60] sm:$0xff]
      %v930 = vld [vmem:[%s916 + $0x68] sm:$0xff]
      %v931 = vld [vmem:[%s916 + $0x70] sm:$0xff]
      %v932 = vld [vmem:[%s916 + $0x78] sm:$0xff]
      %v933 = vld [vmem:[%s916 + $0x80] sm:$0xff]
      %v934 = vld [vmem:[%s916 + $0x88] sm:$0xff]
      %v935 = vld [vmem:[%s916 + $0x90] sm:$0xff]
      %v936 = vld [vmem:[%s916 + $0x98] sm:$0xff]
      %v937 = vld [vmem:[%s916 + $0xa0] sm:$0xff]
      %v938 = vld [vmem:[%s916 + $0xa8] sm:$0xff]
      %v939 = vld [vmem:[%s916 + $0xb0] sm:$0xff]
      %v940 = vld [vmem:[%s916 + $0xb8] sm:$0xff]
      %v941 = vld [vmem:[%s916 + $0xc0] sm:$0xff]
      %v942 = vld [vmem:[%s916 + $0xc8] sm:$0xff]
      %v943 = vld [vmem:[%s916 + $0xd0] sm:$0xff]
      %v944 = vld [vmem:[%s916 + $0xd8] sm:$0xff]
      %v945 = vld [vmem:[%s916 + $0xe0] sm:$0xff]
      %v946 = vld [vmem:[%s916 + $0xe8] sm:$0xff]
      %v947 = vld [vmem:[%s916 + $0xf0] sm:$0xff]
      %v948 = vld [vmem:[%s916 + $0xf8] sm:$0xff]
      %v949 = vld [vmem:[%s916 + $0x100] sm:$0xff]
      %v950 = vld [vmem:[%s916 + $0x108] sm:$0xff]
      %v951 = vld [vmem:[%s916 + $0x110] sm:$0xff]
      %v952 = vld [vmem:[%s916 + $0x118] sm:$0xff]
      %v953 = vld [vmem:[%s916 + $0x120] sm:$0xff]
      %v954 = vld [vmem:[%s916 + $0x128] sm:$0xff]
      %v955 = vld [vmem:[%s916 + $0x130] sm:$0xff]
      %v956 = vld [vmem:[%s916 + $0x138] sm:$0xff]
      %v957 = vld [vmem:[%s916 + $0x140] sm:$0xff]
      %v958 = vld [vmem:[%s916 + $0x148] sm:$0xff]
      %v959 = vld [vmem:[%s916 + $0x150] sm:$0xff]
      %v960 = vld [vmem:[%s916 + $0x158] sm:$0xff]
      %v961 = vld [vmem:[%s916 + $0x160] sm:$0xff]
      %v962 = vld [vmem:[%s1 + $0x8] sm:$0xf]
      %v964 = vsel %vm333, %v917, 0
      %v967 = vsel %vm333, %v918, 0
      %v970 = vsel %vm333, %v919, 0
      %v973 = vsel %vm333, %v920, 0
      %v976 = vsel %vm333, %v921, 0
      %v979 = vsel %vm333, %v922, 0
      %v982 = vsel %vm333, %v923, 0
      %v985 = vsel %vm333, %v924, 0
      %v988 = vsel %vm333, %v925, 0
      %v991 = vsel %vm333, %v926, 0
      %v994 = vsel %vm333, %v927, 0
      %v997 = vsel %vm333, %v928, 0
      %v1000 = vsel %vm333, %v929, 0
      %v1003 = vsel %vm333, %v930, 0
      %v1006 = vsel %vm333, %v931, 0
      %v1009 = vsel %vm333, %v932, 0
      %v1012 = vsel %vm333, %v933, 0
      %v1015 = vsel %vm333, %v934, 0
      %v1018 = vsel %vm333, %v935, 0
      %v1021 = vsel %vm333, %v936, 0
      %v1024 = vsel %vm333, %v937, 0
      %v1027 = vsel %vm333, %v938, 0
      %v1030 = vsel %vm333, %v939, 0
      %v1033 = vsel %vm333, %v940, 0
      %v1036 = vsel %vm333, %v941, 0
      %v1039 = vsel %vm333, %v942, 0
      %v1042 = vsel %vm333, %v943, 0
      %v1045 = vsel %vm333, %v944, 0
      %v1048 = vsel %vm333, %v945, 0
      %v1051 = vsel %vm333, %v946, 0
      %v1054 = vsel %vm333, %v947, 0
      %v1057 = vsel %vm333, %v948, 0
      %v1060 = vsel %vm333, %v949, 0
      %v1063 = vsel %vm333, %v950, 0
      %v1066 = vsel %vm333, %v951, 0
      %v1069 = vsel %vm333, %v952, 0
      %v1072 = vsel %vm333, %v953, 0
      %v1075 = vsel %vm333, %v954, 0
      %v1078 = vsel %vm333, %v955, 0
      %v1081 = vsel %vm333, %v956, 0
      %v1084 = vsel %vm333, %v957, 0
      %v1087 = vsel %vm333, %v958, 0
      %v1090 = vsel %vm333, %v959, 0
      %v1093 = vsel %vm333, %v960, 0
      %v1096 = vsel %vm333, %v961, 0
      %v1099 = vsel %vm469, %v962, 0
      %1101 = vmatpush.msra.mxu0 0.0
      %1102 = vmatpush.msra.mxu0 0.0
      %1103 = vmatpush.msra.mxu0 0.0
      %1104 = vmatpush.msra.mxu0 0.0
      %1105 = vmatpush.msra.mxu0 0.0
      %1106 = vmatpush.msra.mxu0 0.0
      %1107 = vmatpush.msra.mxu0 0.0
      %1108 = vmatpush.msra.mxu0 0.0
      %1109 = vmatpush.msra.mxu0 0.0
      %1110 = vmatpush.msra.mxu0 0.0
      %1111 = vmatpush.msra.mxu0 0.0
      %1112 = vmatpush.msra.mxu0 0.0
      %1113 = vmatpush.msra.mxu0 0.0
      %1114 = vmatpush.msra.mxu0 0.0
      %1115 = vmatpush.msra.mxu0 0.0
      %1116 = vmatpush.msra.mxu0 %v1099
      %1117 = vmatmul.f32.gmra.mxu0 %v964
      %v1118 = vpop.f32.mrf.mxu0
      %v1119 = vadd.f32 0.0, %v1118
      %1120 = vmatmul.f32.gmra.mxu0 %v967
      %v1121 = vpop.f32.mrf.mxu0
      %v1122 = vadd.f32 0.0, %v1121
      %1123 = vmatmul.f32.gmra.mxu0 %v970
      %v1124 = vpop.f32.mrf.mxu0
      %v1125 = vadd.f32 0.0, %v1124
      %1126 = vmatmul.f32.gmra.mxu0 %v973
      %v1127 = vpop.f32.mrf.mxu0
      %v1128 = vadd.f32 0.0, %v1127
      %1129 = vmatmul.f32.gmra.mxu0 %v976
      %v1130 = vpop.f32.mrf.mxu0
      %v1131 = vadd.f32 0.0, %v1130
      %1132 = vmatmul.f32.gmra.mxu0 %v979
      %v1133 = vpop.f32.mrf.mxu0
      %v1134 = vadd.f32 0.0, %v1133
      %1135 = vmatmul.f32.gmra.mxu0 %v982
      %v1136 = vpop.f32.mrf.mxu0
      %v1137 = vadd.f32 0.0, %v1136
      %1138 = vmatmul.f32.gmra.mxu0 %v985
      %v1139 = vpop.f32.mrf.mxu0
      %v1140 = vadd.f32 0.0, %v1139
      %1141 = vmatmul.f32.gmra.mxu0 %v988
      %v1142 = vpop.f32.mrf.mxu0
      %v1143 = vadd.f32 0.0, %v1142
      %1144 = vmatmul.f32.gmra.mxu0 %v991
      %v1145 = vpop.f32.mrf.mxu0
      %v1146 = vadd.f32 0.0, %v1145
      %1147 = vmatmul.f32.gmra.mxu0 %v994
      %v1148 = vpop.f32.mrf.mxu0
      %v1149 = vadd.f32 0.0, %v1148
      %1150 = vmatmul.f32.gmra.mxu0 %v997
      %v1151 = vpop.f32.mrf.mxu0
      %v1152 = vadd.f32 0.0, %v1151
      %1153 = vmatmul.f32.gmra.mxu0 %v1000
      %v1154 = vpop.f32.mrf.mxu0
      %v1155 = vadd.f32 0.0, %v1154
      %1156 = vmatmul.f32.gmra.mxu0 %v1003
      %v1157 = vpop.f32.mrf.mxu0
      %v1158 = vadd.f32 0.0, %v1157
      %1159 = vmatmul.f32.gmra.mxu0 %v1006
      %v1160 = vpop.f32.mrf.mxu0
      %v1161 = vadd.f32 0.0, %v1160
      %1162 = vmatmul.f32.gmra.mxu0 %v1009
      %v1163 = vpop.f32.mrf.mxu0
      %v1164 = vadd.f32 0.0, %v1163
      %1165 = vmatmul.f32.gmra.mxu0 %v1012
      %v1166 = vpop.f32.mrf.mxu0
      %v1167 = vadd.f32 0.0, %v1166
      %1168 = vmatmul.f32.gmra.mxu0 %v1015
      %v1169 = vpop.f32.mrf.mxu0
      %v1170 = vadd.f32 0.0, %v1169
      %1171 = vmatmul.f32.gmra.mxu0 %v1018
      %v1172 = vpop.f32.mrf.mxu0
      %v1173 = vadd.f32 0.0, %v1172
      %1174 = vmatmul.f32.gmra.mxu0 %v1021
      %v1175 = vpop.f32.mrf.mxu0
      %v1176 = vadd.f32 0.0, %v1175
      %1177 = vmatmul.f32.gmra.mxu0 %v1024
      %v1178 = vpop.f32.mrf.mxu0
      %v1179 = vadd.f32 0.0, %v1178
      %1180 = vmatmul.f32.gmra.mxu0 %v1027
      %v1181 = vpop.f32.mrf.mxu0
      %v1182 = vadd.f32 0.0, %v1181
      %1183 = vmatmul.f32.gmra.mxu0 %v1030
      %v1184 = vpop.f32.mrf.mxu0
      %v1185 = vadd.f32 0.0, %v1184
      %1186 = vmatmul.f32.gmra.mxu0 %v1033
      %v1187 = vpop.f32.mrf.mxu0
      %v1188 = vadd.f32 0.0, %v1187
      %1189 = vmatmul.f32.gmra.mxu0 %v1036
      %v1190 = vpop.f32.mrf.mxu0
      %v1191 = vadd.f32 0.0, %v1190
      %1192 = vmatmul.f32.gmra.mxu0 %v1039
      %v1193 = vpop.f32.mrf.mxu0
      %v1194 = vadd.f32 0.0, %v1193
      %1195 = vmatmul.f32.gmra.mxu0 %v1042
      %v1196 = vpop.f32.mrf.mxu0
      %v1197 = vadd.f32 0.0, %v1196
      %1198 = vmatmul.f32.gmra.mxu0 %v1045
      %v1199 = vpop.f32.mrf.mxu0
      %v1200 = vadd.f32 0.0, %v1199
      %1201 = vmatmul.f32.gmra.mxu0 %v1048
      %v1202 = vpop.f32.mrf.mxu0
      %v1203 = vadd.f32 0.0, %v1202
      %1204 = vmatmul.f32.gmra.mxu0 %v1051
      %v1205 = vpop.f32.mrf.mxu0
      %v1206 = vadd.f32 0.0, %v1205
      %1207 = vmatmul.f32.gmra.mxu0 %v1054
      %v1208 = vpop.f32.mrf.mxu0
      %v1209 = vadd.f32 0.0, %v1208
      %1210 = vmatmul.f32.gmra.mxu0 %v1057
      %v1211 = vpop.f32.mrf.mxu0
      %v1212 = vadd.f32 0.0, %v1211
      %1213 = vmatmul.f32.gmra.mxu0 %v1060
      %v1214 = vpop.f32.mrf.mxu0
      %v1215 = vadd.f32 0.0, %v1214
      %1216 = vmatmul.f32.gmra.mxu0 %v1063
      %v1217 = vpop.f32.mrf.mxu0
      %v1218 = vadd.f32 0.0, %v1217
      %1219 = vmatmul.f32.gmra.mxu0 %v1066
      %v1220 = vpop.f32.mrf.mxu0
      %v1221 = vadd.f32 0.0, %v1220
      %1222 = vmatmul.f32.gmra.mxu0 %v1069
      %v1223 = vpop.f32.mrf.mxu0
      %v1224 = vadd.f32 0.0, %v1223
      %1225 = vmatmul.f32.gmra.mxu0 %v1072
      %v1226 = vpop.f32.mrf.mxu0
      %v1227 = vadd.f32 0.0, %v1226
      %1228 = vmatmul.f32.gmra.mxu0 %v1075
      %v1229 = vpop.f32.mrf.mxu0
      %v1230 = vadd.f32 0.0, %v1229
      %1231 = vmatmul.f32.gmra.mxu0 %v1078
      %v1232 = vpop.f32.mrf.mxu0
      %v1233 = vadd.f32 0.0, %v1232
      %1234 = vmatmul.f32.gmra.mxu0 %v1081
      %v1235 = vpop.f32.mrf.mxu0
      %v1236 = vadd.f32 0.0, %v1235
      %1237 = vmatmul.f32.gmra.mxu0 %v1084
      %v1238 = vpop.f32.mrf.mxu0
      %v1239 = vadd.f32 0.0, %v1238
      %1240 = vmatmul.f32.gmra.mxu0 %v1087
      %v1241 = vpop.f32.mrf.mxu0
      %v1242 = vadd.f32 0.0, %v1241
      %1243 = vmatmul.f32.gmra.mxu0 %v1090
      %v1244 = vpop.f32.mrf.mxu0
      %v1245 = vadd.f32 0.0, %v1244
      %1246 = vmatmul.f32.gmra.mxu0 %v1093
      %v1247 = vpop.f32.mrf.mxu0
      %v1248 = vadd.f32 0.0, %v1247
      %1249 = vmatmul.f32.gmra.mxu0 %v1096
      %v1250 = vpop.f32.mrf.mxu0
      %v1251 = vadd.f32 0.0, %v1250
      %1252 = vdwg.mxu0
      %v1253 = vadd.f32 %v781, %v1119
      %v1254 = vadd.f32 %v784, %v1122
      %v1255 = vadd.f32 %v787, %v1125
      %v1256 = vadd.f32 %v790, %v1128
      %v1257 = vadd.f32 %v793, %v1131
      %v1258 = vadd.f32 %v796, %v1134
      %v1259 = vadd.f32 %v799, %v1137
      %v1260 = vadd.f32 %v802, %v1140
      %v1261 = vadd.f32 %v805, %v1143
      %v1262 = vadd.f32 %v808, %v1146
      %v1263 = vadd.f32 %v811, %v1149
      %v1264 = vadd.f32 %v814, %v1152
      %v1265 = vadd.f32 %v817, %v1155
      %v1266 = vadd.f32 %v820, %v1158
      %v1267 = vadd.f32 %v823, %v1161
      %v1268 = vadd.f32 %v826, %v1164
      %v1269 = vadd.f32 %v829, %v1167
      %v1270 = vadd.f32 %v832, %v1170
      %v1271 = vadd.f32 %v835, %v1173
      %v1272 = vadd.f32 %v838, %v1176
      %v1273 = vadd.f32 %v841, %v1179
      %v1274 = vadd.f32 %v844, %v1182
      %v1275 = vadd.f32 %v847, %v1185
      %v1276 = vadd.f32 %v850, %v1188
      %v1277 = vadd.f32 %v853, %v1191
      %v1278 = vadd.f32 %v856, %v1194
      %v1279 = vadd.f32 %v859, %v1197
      %v1280 = vadd.f32 %v862, %v1200
      %v1281 = vadd.f32 %v865, %v1203
      %v1282 = vadd.f32 %v868, %v1206
      %v1283 = vadd.f32 %v871, %v1209
      %v1284 = vadd.f32 %v874, %v1212
      %v1285 = vadd.f32 %v877, %v1215
      %v1286 = vadd.f32 %v880, %v1218
      %v1287 = vadd.f32 %v883, %v1221
      %v1288 = vadd.f32 %v886, %v1224
      %v1289 = vadd.f32 %v889, %v1227
      %v1290 = vadd.f32 %v892, %v1230
      %v1291 = vadd.f32 %v895, %v1233
      %v1292 = vadd.f32 %v898, %v1236
      %v1293 = vadd.f32 %v901, %v1239
      %v1294 = vadd.f32 %v904, %v1242
      %v1295 = vadd.f32 %v907, %v1245
      %v1296 = vadd.f32 %v910, %v1248
      %v1297 = vadd.f32 %v913, %v1251
      %s1298 = sadd.s32 %s237, 20
      %s1299 = scalar_lea.vmem %s220, %s1298
      %v1300 = vld [vmem:[%s1299] sm:$0xff]
      %v1301 = vld [vmem:[%s1299 + $0x8] sm:$0xff]
      %v1302 = vld [vmem:[%s1299 + $0x10] sm:$0xff]
      %v1303 = vld [vmem:[%s1299 + $0x18] sm:$0xff]
      %v1304 = vld [vmem:[%s1299 + $0x20] sm:$0xff]
      %v1305 = vld [vmem:[%s1299 + $0x28] sm:$0xff]
      %v1306 = vld [vmem:[%s1299 + $0x30] sm:$0xff]
      %v1307 = vld [vmem:[%s1299 + $0x38] sm:$0xff]
      %v1308 = vld [vmem:[%s1299 + $0x40] sm:$0xff]
      %v1309 = vld [vmem:[%s1299 + $0x48] sm:$0xff]
      %v1310 = vld [vmem:[%s1299 + $0x50] sm:$0xff]
      %v1311 = vld [vmem:[%s1299 + $0x58] sm:$0xff]
      %v1312 = vld [vmem:[%s1299 + $0x60] sm:$0xff]
      %v1313 = vld [vmem:[%s1299 + $0x68] sm:$0xff]
      %v1314 = vld [vmem:[%s1299 + $0x70] sm:$0xff]
      %v1315 = vld [vmem:[%s1299 + $0x78] sm:$0xff]
      %v1316 = vld [vmem:[%s1299 + $0x80] sm:$0xff]
      %v1317 = vld [vmem:[%s1299 + $0x88] sm:$0xff]
      %v1318 = vld [vmem:[%s1299 + $0x90] sm:$0xff]
      %v1319 = vld [vmem:[%s1299 + $0x98] sm:$0xff]
      %v1320 = vld [vmem:[%s1299 + $0xa0] sm:$0xff]
      %v1321 = vld [vmem:[%s1299 + $0xa8] sm:$0xff]
      %v1322 = vld [vmem:[%s1299 + $0xb0] sm:$0xff]
      %v1323 = vld [vmem:[%s1299 + $0xb8] sm:$0xff]
      %v1324 = vld [vmem:[%s1299 + $0xc0] sm:$0xff]
      %v1325 = vld [vmem:[%s1299 + $0xc8] sm:$0xff]
      %v1326 = vld [vmem:[%s1299 + $0xd0] sm:$0xff]
      %v1327 = vld [vmem:[%s1299 + $0xd8] sm:$0xff]
      %v1328 = vld [vmem:[%s1299 + $0xe0] sm:$0xff]
      %v1329 = vld [vmem:[%s1299 + $0xe8] sm:$0xff]
      %v1330 = vld [vmem:[%s1299 + $0xf0] sm:$0xff]
      %v1331 = vld [vmem:[%s1299 + $0xf8] sm:$0xff]
      %v1332 = vld [vmem:[%s1299 + $0x100] sm:$0xff]
      %v1333 = vld [vmem:[%s1299 + $0x108] sm:$0xff]
      %v1334 = vld [vmem:[%s1299 + $0x110] sm:$0xff]
      %v1335 = vld [vmem:[%s1299 + $0x118] sm:$0xff]
      %v1336 = vld [vmem:[%s1299 + $0x120] sm:$0xff]
      %v1337 = vld [vmem:[%s1299 + $0x128] sm:$0xff]
      %v1338 = vld [vmem:[%s1299 + $0x130] sm:$0xff]
      %v1339 = vld [vmem:[%s1299 + $0x138] sm:$0xff]
      %v1340 = vld [vmem:[%s1299 + $0x140] sm:$0xff]
      %v1341 = vld [vmem:[%s1299 + $0x148] sm:$0xff]
      %v1342 = vld [vmem:[%s1299 + $0x150] sm:$0xff]
      %v1343 = vld [vmem:[%s1299 + $0x158] sm:$0xff]
      %v1344 = vld [vmem:[%s1299 + $0x160] sm:$0xff]
      %v1345 = vld [vmem:[%s1 + $0xc] sm:$0xf]
      %v1347 = vsel %vm333, %v1300, 0
      %v1350 = vsel %vm333, %v1301, 0
      %v1353 = vsel %vm333, %v1302, 0
      %v1356 = vsel %vm333, %v1303, 0
      %v1359 = vsel %vm333, %v1304, 0
      %v1362 = vsel %vm333, %v1305, 0
      %v1365 = vsel %vm333, %v1306, 0
      %v1368 = vsel %vm333, %v1307, 0
      %v1371 = vsel %vm333, %v1308, 0
      %v1374 = vsel %vm333, %v1309, 0
      %v1377 = vsel %vm333, %v1310, 0
      %v1380 = vsel %vm333, %v1311, 0
      %v1383 = vsel %vm333, %v1312, 0
      %v1386 = vsel %vm333, %v1313, 0
      %v1389 = vsel %vm333, %v1314, 0
      %v1392 = vsel %vm333, %v1315, 0
      %v1395 = vsel %vm333, %v1316, 0
      %v1398 = vsel %vm333, %v1317, 0
      %v1401 = vsel %vm333, %v1318, 0
      %v1404 = vsel %vm333, %v1319, 0
      %v1407 = vsel %vm333, %v1320, 0
      %v1410 = vsel %vm333, %v1321, 0
      %v1413 = vsel %vm333, %v1322, 0
      %v1416 = vsel %vm333, %v1323, 0
      %v1419 = vsel %vm333, %v1324, 0
      %v1422 = vsel %vm333, %v1325, 0
      %v1425 = vsel %vm333, %v1326, 0
      %v1428 = vsel %vm333, %v1327, 0
      %v1431 = vsel %vm333, %v1328, 0
      %v1434 = vsel %vm333, %v1329, 0
      %v1437 = vsel %vm333, %v1330, 0
      %v1440 = vsel %vm333, %v1331, 0
      %v1443 = vsel %vm333, %v1332, 0
      %v1446 = vsel %vm333, %v1333, 0
      %v1449 = vsel %vm333, %v1334, 0
      %v1452 = vsel %vm333, %v1335, 0
      %v1455 = vsel %vm333, %v1336, 0
      %v1458 = vsel %vm333, %v1337, 0
      %v1461 = vsel %vm333, %v1338, 0
      %v1464 = vsel %vm333, %v1339, 0
      %v1467 = vsel %vm333, %v1340, 0
      %v1470 = vsel %vm333, %v1341, 0
      %v1473 = vsel %vm333, %v1342, 0
      %v1476 = vsel %vm333, %v1343, 0
      %v1479 = vsel %vm333, %v1344, 0
      %v1482 = vsel %vm469, %v1345, 0
      %1484 = vmatpush.msra.mxu0 0.0
      %1485 = vmatpush.msra.mxu0 0.0
      %1486 = vmatpush.msra.mxu0 0.0
      %1487 = vmatpush.msra.mxu0 0.0
      %1488 = vmatpush.msra.mxu0 0.0
      %1489 = vmatpush.msra.mxu0 0.0
      %1490 = vmatpush.msra.mxu0 0.0
      %1491 = vmatpush.msra.mxu0 0.0
      %1492 = vmatpush.msra.mxu0 0.0
      %1493 = vmatpush.msra.mxu0 0.0
      %1494 = vmatpush.msra.mxu0 0.0
      %1495 = vmatpush.msra.mxu0 0.0
      %1496 = vmatpush.msra.mxu0 0.0
      %1497 = vmatpush.msra.mxu0 0.0
      %1498 = vmatpush.msra.mxu0 0.0
      %1499 = vmatpush.msra.mxu0 %v1482
      %1500 = vmatmul.f32.gmra.mxu0 %v1347
      %v1501 = vpop.f32.mrf.mxu0
      %v1502 = vadd.f32 0.0, %v1501
      %1503 = vmatmul.f32.gmra.mxu0 %v1350
      %v1504 = vpop.f32.mrf.mxu0
      %v1505 = vadd.f32 0.0, %v1504
      %1506 = vmatmul.f32.gmra.mxu0 %v1353
      %v1507 = vpop.f32.mrf.mxu0
      %v1508 = vadd.f32 0.0, %v1507
      %1509 = vmatmul.f32.gmra.mxu0 %v1356
      %v1510 = vpop.f32.mrf.mxu0
      %v1511 = vadd.f32 0.0, %v1510
      %1512 = vmatmul.f32.gmra.mxu0 %v1359
      %v1513 = vpop.f32.mrf.mxu0
      %v1514 = vadd.f32 0.0, %v1513
      %1515 = vmatmul.f32.gmra.mxu0 %v1362
      %v1516 = vpop.f32.mrf.mxu0
      %v1517 = vadd.f32 0.0, %v1516
      %1518 = vmatmul.f32.gmra.mxu0 %v1365
      %v1519 = vpop.f32.mrf.mxu0
      %v1520 = vadd.f32 0.0, %v1519
      %1521 = vmatmul.f32.gmra.mxu0 %v1368
      %v1522 = vpop.f32.mrf.mxu0
      %v1523 = vadd.f32 0.0, %v1522
      %1524 = vmatmul.f32.gmra.mxu0 %v1371
      %v1525 = vpop.f32.mrf.mxu0
      %v1526 = vadd.f32 0.0, %v1525
      %1527 = vmatmul.f32.gmra.mxu0 %v1374
      %v1528 = vpop.f32.mrf.mxu0
      %v1529 = vadd.f32 0.0, %v1528
      %1530 = vmatmul.f32.gmra.mxu0 %v1377
      %v1531 = vpop.f32.mrf.mxu0
      %v1532 = vadd.f32 0.0, %v1531
      %1533 = vmatmul.f32.gmra.mxu0 %v1380
      %v1534 = vpop.f32.mrf.mxu0
      %v1535 = vadd.f32 0.0, %v1534
      %1536 = vmatmul.f32.gmra.mxu0 %v1383
      %v1537 = vpop.f32.mrf.mxu0
      %v1538 = vadd.f32 0.0, %v1537
      %1539 = vmatmul.f32.gmra.mxu0 %v1386
      %v1540 = vpop.f32.mrf.mxu0
      %v1541 = vadd.f32 0.0, %v1540
      %1542 = vmatmul.f32.gmra.mxu0 %v1389
      %v1543 = vpop.f32.mrf.mxu0
      %v1544 = vadd.f32 0.0, %v1543
      %1545 = vmatmul.f32.gmra.mxu0 %v1392
      %v1546 = vpop.f32.mrf.mxu0
      %v1547 = vadd.f32 0.0, %v1546
      %1548 = vmatmul.f32.gmra.mxu0 %v1395
      %v1549 = vpop.f32.mrf.mxu0
      %v1550 = vadd.f32 0.0, %v1549
      %1551 = vmatmul.f32.gmra.mxu0 %v1398
      %v1552 = vpop.f32.mrf.mxu0
      %v1553 = vadd.f32 0.0, %v1552
      %1554 = vmatmul.f32.gmra.mxu0 %v1401
      %v1555 = vpop.f32.mrf.mxu0
      %v1556 = vadd.f32 0.0, %v1555
      %1557 = vmatmul.f32.gmra.mxu0 %v1404
      %v1558 = vpop.f32.mrf.mxu0
      %v1559 = vadd.f32 0.0, %v1558
      %1560 = vmatmul.f32.gmra.mxu0 %v1407
      %v1561 = vpop.f32.mrf.mxu0
      %v1562 = vadd.f32 0.0, %v1561
      %1563 = vmatmul.f32.gmra.mxu0 %v1410
      %v1564 = vpop.f32.mrf.mxu0
      %v1565 = vadd.f32 0.0, %v1564
      %1566 = vmatmul.f32.gmra.mxu0 %v1413
      %v1567 = vpop.f32.mrf.mxu0
      %v1568 = vadd.f32 0.0, %v1567
      %1569 = vmatmul.f32.gmra.mxu0 %v1416
      %v1570 = vpop.f32.mrf.mxu0
      %v1571 = vadd.f32 0.0, %v1570
      %1572 = vmatmul.f32.gmra.mxu0 %v1419
      %v1573 = vpop.f32.mrf.mxu0
      %v1574 = vadd.f32 0.0, %v1573
      %1575 = vmatmul.f32.gmra.mxu0 %v1422
      %v1576 = vpop.f32.mrf.mxu0
      %v1577 = vadd.f32 0.0, %v1576
      %1578 = vmatmul.f32.gmra.mxu0 %v1425
      %v1579 = vpop.f32.mrf.mxu0
      %v1580 = vadd.f32 0.0, %v1579
      %1581 = vmatmul.f32.gmra.mxu0 %v1428
      %v1582 = vpop.f32.mrf.mxu0
      %v1583 = vadd.f32 0.0, %v1582
      %1584 = vmatmul.f32.gmra.mxu0 %v1431
      %v1585 = vpop.f32.mrf.mxu0
      %v1586 = vadd.f32 0.0, %v1585
      %1587 = vmatmul.f32.gmra.mxu0 %v1434
      %v1588 = vpop.f32.mrf.mxu0
      %v1589 = vadd.f32 0.0, %v1588
      %1590 = vmatmul.f32.gmra.mxu0 %v1437
      %v1591 = vpop.f32.mrf.mxu0
      %v1592 = vadd.f32 0.0, %v1591
      %1593 = vmatmul.f32.gmra.mxu0 %v1440
      %v1594 = vpop.f32.mrf.mxu0
      %v1595 = vadd.f32 0.0, %v1594
      %1596 = vmatmul.f32.gmra.mxu0 %v1443
      %v1597 = vpop.f32.mrf.mxu0
      %v1598 = vadd.f32 0.0, %v1597
      %1599 = vmatmul.f32.gmra.mxu0 %v1446
      %v1600 = vpop.f32.mrf.mxu0
      %v1601 = vadd.f32 0.0, %v1600
      %1602 = vmatmul.f32.gmra.mxu0 %v1449
      %v1603 = vpop.f32.mrf.mxu0
      %v1604 = vadd.f32 0.0, %v1603
      %1605 = vmatmul.f32.gmra.mxu0 %v1452
      %v1606 = vpop.f32.mrf.mxu0
      %v1607 = vadd.f32 0.0, %v1606
      %1608 = vmatmul.f32.gmra.mxu0 %v1455
      %v1609 = vpop.f32.mrf.mxu0
      %v1610 = vadd.f32 0.0, %v1609
      %1611 = vmatmul.f32.gmra.mxu0 %v1458
      %v1612 = vpop.f32.mrf.mxu0
      %v1613 = vadd.f32 0.0, %v1612
      %1614 = vmatmul.f32.gmra.mxu0 %v1461
      %v1615 = vpop.f32.mrf.mxu0
      %v1616 = vadd.f32 0.0, %v1615
      %1617 = vmatmul.f32.gmra.mxu0 %v1464
      %v1618 = vpop.f32.mrf.mxu0
      %v1619 = vadd.f32 0.0, %v1618
      %1620 = vmatmul.f32.gmra.mxu0 %v1467
      %v1621 = vpop.f32.mrf.mxu0
      %v1622 = vadd.f32 0.0, %v1621
      %1623 = vmatmul.f32.gmra.mxu0 %v1470
      %v1624 = vpop.f32.mrf.mxu0
      %v1625 = vadd.f32 0.0, %v1624
      %1626 = vmatmul.f32.gmra.mxu0 %v1473
      %v1627 = vpop.f32.mrf.mxu0
      %v1628 = vadd.f32 0.0, %v1627
      %1629 = vmatmul.f32.gmra.mxu0 %v1476
      %v1630 = vpop.f32.mrf.mxu0
      %v1631 = vadd.f32 0.0, %v1630
      %1632 = vmatmul.f32.gmra.mxu0 %v1479
      %v1633 = vpop.f32.mrf.mxu0
      %v1634 = vadd.f32 0.0, %v1633
      %1635 = vdwg.mxu0
      %v1636 = vadd.f32 %v1253, %v1502
      %v1637 = vadd.f32 %v1254, %v1505
      %v1638 = vadd.f32 %v1255, %v1508
      %v1639 = vadd.f32 %v1256, %v1511
      %v1640 = vadd.f32 %v1257, %v1514
      %v1641 = vadd.f32 %v1258, %v1517
      %v1642 = vadd.f32 %v1259, %v1520
      %v1643 = vadd.f32 %v1260, %v1523
      %v1644 = vadd.f32 %v1261, %v1526
      %v1645 = vadd.f32 %v1262, %v1529
      %v1646 = vadd.f32 %v1263, %v1532
      %v1647 = vadd.f32 %v1264, %v1535
      %v1648 = vadd.f32 %v1265, %v1538
      %v1649 = vadd.f32 %v1266, %v1541
      %v1650 = vadd.f32 %v1267, %v1544
      %v1651 = vadd.f32 %v1268, %v1547
      %v1652 = vadd.f32 %v1269, %v1550
      %v1653 = vadd.f32 %v1270, %v1553
      %v1654 = vadd.f32 %v1271, %v1556
      %v1655 = vadd.f32 %v1272, %v1559
      %v1656 = vadd.f32 %v1273, %v1562
      %v1657 = vadd.f32 %v1274, %v1565
      %v1658 = vadd.f32 %v1275, %v1568
      %v1659 = vadd.f32 %v1276, %v1571
      %v1660 = vadd.f32 %v1277, %v1574
      %v1661 = vadd.f32 %v1278, %v1577
      %v1662 = vadd.f32 %v1279, %v1580
      %v1663 = vadd.f32 %v1280, %v1583
      %v1664 = vadd.f32 %v1281, %v1586
      %v1665 = vadd.f32 %v1282, %v1589
      %v1666 = vadd.f32 %v1283, %v1592
      %v1667 = vadd.f32 %v1284, %v1595
      %v1668 = vadd.f32 %v1285, %v1598
      %v1669 = vadd.f32 %v1286, %v1601
      %v1670 = vadd.f32 %v1287, %v1604
      %v1671 = vadd.f32 %v1288, %v1607
      %v1672 = vadd.f32 %v1289, %v1610
      %v1673 = vadd.f32 %v1290, %v1613
      %v1674 = vadd.f32 %v1291, %v1616
      %v1675 = vadd.f32 %v1292, %v1619
      %v1676 = vadd.f32 %v1293, %v1622
      %v1677 = vadd.f32 %v1294, %v1625
      %v1678 = vadd.f32 %v1295, %v1628
      %v1679 = vadd.f32 %v1296, %v1631
      %v1680 = vadd.f32 %v1297, %v1634
      %s1681 = sadd.s32 %s237, 21
      %s1682 = scalar_lea.vmem %s220, %s1681
      %v1683 = vld [vmem:[%s1682] sm:$0xff]
      %v1684 = vld [vmem:[%s1682 + $0x8] sm:$0xff]
      %v1685 = vld [vmem:[%s1682 + $0x10] sm:$0xff]
      %v1686 = vld [vmem:[%s1682 + $0x18] sm:$0xff]
      %v1687 = vld [vmem:[%s1682 + $0x20] sm:$0xff]
      %v1688 = vld [vmem:[%s1682 + $0x28] sm:$0xff]
      %v1689 = vld [vmem:[%s1682 + $0x30] sm:$0xff]
      %v1690 = vld [vmem:[%s1682 + $0x38] sm:$0xff]
      %v1691 = vld [vmem:[%s1682 + $0x40] sm:$0xff]
      %v1692 = vld [vmem:[%s1682 + $0x48] sm:$0xff]
      %v1693 = vld [vmem:[%s1682 + $0x50] sm:$0xff]
      %v1694 = vld [vmem:[%s1682 + $0x58] sm:$0xff]
      %v1695 = vld [vmem:[%s1682 + $0x60] sm:$0xff]
      %v1696 = vld [vmem:[%s1682 + $0x68] sm:$0xff]
      %v1697 = vld [vmem:[%s1682 + $0x70] sm:$0xff]
      %v1698 = vld [vmem:[%s1682 + $0x78] sm:$0xff]
      %v1699 = vld [vmem:[%s1682 + $0x80] sm:$0xff]
      %v1700 = vld [vmem:[%s1682 + $0x88] sm:$0xff]
      %v1701 = vld [vmem:[%s1682 + $0x90] sm:$0xff]
      %v1702 = vld [vmem:[%s1682 + $0x98] sm:$0xff]
      %v1703 = vld [vmem:[%s1682 + $0xa0] sm:$0xff]
      %v1704 = vld [vmem:[%s1682 + $0xa8] sm:$0xff]
      %v1705 = vld [vmem:[%s1682 + $0xb0] sm:$0xff]
      %v1706 = vld [vmem:[%s1682 + $0xb8] sm:$0xff]
      %v1707 = vld [vmem:[%s1682 + $0xc0] sm:$0xff]
      %v1708 = vld [vmem:[%s1682 + $0xc8] sm:$0xff]
      %v1709 = vld [vmem:[%s1682 + $0xd0] sm:$0xff]
      %v1710 = vld [vmem:[%s1682 + $0xd8] sm:$0xff]
      %v1711 = vld [vmem:[%s1682 + $0xe0] sm:$0xff]
      %v1712 = vld [vmem:[%s1682 + $0xe8] sm:$0xff]
      %v1713 = vld [vmem:[%s1682 + $0xf0] sm:$0xff]
      %v1714 = vld [vmem:[%s1682 + $0xf8] sm:$0xff]
      %v1715 = vld [vmem:[%s1682 + $0x100] sm:$0xff]
      %v1716 = vld [vmem:[%s1682 + $0x108] sm:$0xff]
      %v1717 = vld [vmem:[%s1682 + $0x110] sm:$0xff]
      %v1718 = vld [vmem:[%s1682 + $0x118] sm:$0xff]
      %v1719 = vld [vmem:[%s1682 + $0x120] sm:$0xff]
      %v1720 = vld [vmem:[%s1682 + $0x128] sm:$0xff]
      %v1721 = vld [vmem:[%s1682 + $0x130] sm:$0xff]
      %v1722 = vld [vmem:[%s1682 + $0x138] sm:$0xff]
      %v1723 = vld [vmem:[%s1682 + $0x140] sm:$0xff]
      %v1724 = vld [vmem:[%s1682 + $0x148] sm:$0xff]
      %v1725 = vld [vmem:[%s1682 + $0x150] sm:$0xff]
      %v1726 = vld [vmem:[%s1682 + $0x158] sm:$0xff]
      %v1727 = vld [vmem:[%s1682 + $0x160] sm:$0xff]
      %v1728 = vld [vmem:[%s1 + $0x10] sm:$0xf]
      %v1730 = vsel %vm333, %v1683, 0
      %v1733 = vsel %vm333, %v1684, 0
      %v1736 = vsel %vm333, %v1685, 0
      %v1739 = vsel %vm333, %v1686, 0
      %v1742 = vsel %vm333, %v1687, 0
      %v1745 = vsel %vm333, %v1688, 0
      %v1748 = vsel %vm333, %v1689, 0
      %v1751 = vsel %vm333, %v1690, 0
      %v1754 = vsel %vm333, %v1691, 0
      %v1757 = vsel %vm333, %v1692, 0
      %v1760 = vsel %vm333, %v1693, 0
      %v1763 = vsel %vm333, %v1694, 0
      %v1766 = vsel %vm333, %v1695, 0
      %v1769 = vsel %vm333, %v1696, 0
      %v1772 = vsel %vm333, %v1697, 0
      %v1775 = vsel %vm333, %v1698, 0
      %v1778 = vsel %vm333, %v1699, 0
      %v1781 = vsel %vm333, %v1700, 0
      %v1784 = vsel %vm333, %v1701, 0
      %v1787 = vsel %vm333, %v1702, 0
      %v1790 = vsel %vm333, %v1703, 0
      %v1793 = vsel %vm333, %v1704, 0
      %v1796 = vsel %vm333, %v1705, 0
      %v1799 = vsel %vm333, %v1706, 0
      %v1802 = vsel %vm333, %v1707, 0
      %v1805 = vsel %vm333, %v1708, 0
      %v1808 = vsel %vm333, %v1709, 0
      %v1811 = vsel %vm333, %v1710, 0
      %v1814 = vsel %vm333, %v1711, 0
      %v1817 = vsel %vm333, %v1712, 0
      %v1820 = vsel %vm333, %v1713, 0
      %v1823 = vsel %vm333, %v1714, 0
      %v1826 = vsel %vm333, %v1715, 0
      %v1829 = vsel %vm333, %v1716, 0
      %v1832 = vsel %vm333, %v1717, 0
      %v1835 = vsel %vm333, %v1718, 0
      %v1838 = vsel %vm333, %v1719, 0
      %v1841 = vsel %vm333, %v1720, 0
      %v1844 = vsel %vm333, %v1721, 0
      %v1847 = vsel %vm333, %v1722, 0
      %v1850 = vsel %vm333, %v1723, 0
      %v1853 = vsel %vm333, %v1724, 0
      %v1856 = vsel %vm333, %v1725, 0
      %v1859 = vsel %vm333, %v1726, 0
      %v1862 = vsel %vm333, %v1727, 0
      %v1865 = vsel %vm469, %v1728, 0
      %1867 = vmatpush.msra.mxu0 0.0
      %1868 = vmatpush.msra.mxu0 0.0
      %1869 = vmatpush.msra.mxu0 0.0
      %1870 = vmatpush.msra.mxu0 0.0
      %1871 = vmatpush.msra.mxu0 0.0
      %1872 = vmatpush.msra.mxu0 0.0
      %1873 = vmatpush.msra.mxu0 0.0
      %1874 = vmatpush.msra.mxu0 0.0
      %1875 = vmatpush.msra.mxu0 0.0
      %1876 = vmatpush.msra.mxu0 0.0
      %1877 = vmatpush.msra.mxu0 0.0
      %1878 = vmatpush.msra.mxu0 0.0
      %1879 = vmatpush.msra.mxu0 0.0
      %1880 = vmatpush.msra.mxu0 0.0
      %1881 = vmatpush.msra.mxu0 0.0
      %1882 = vmatpush.msra.mxu0 %v1865
      %1883 = vmatmul.f32.gmra.mxu0 %v1730
      %v1884 = vpop.f32.mrf.mxu0
      %v1885 = vadd.f32 0.0, %v1884
      %1886 = vmatmul.f32.gmra.mxu0 %v1733
      %v1887 = vpop.f32.mrf.mxu0
      %v1888 = vadd.f32 0.0, %v1887
      %1889 = vmatmul.f32.gmra.mxu0 %v1736
      %v1890 = vpop.f32.mrf.mxu0
      %v1891 = vadd.f32 0.0, %v1890
      %1892 = vmatmul.f32.gmra.mxu0 %v1739
      %v1893 = vpop.f32.mrf.mxu0
      %v1894 = vadd.f32 0.0, %v1893
      %1895 = vmatmul.f32.gmra.mxu0 %v1742
      %v1896 = vpop.f32.mrf.mxu0
      %v1897 = vadd.f32 0.0, %v1896
      %1898 = vmatmul.f32.gmra.mxu0 %v1745
      %v1899 = vpop.f32.mrf.mxu0
      %v1900 = vadd.f32 0.0, %v1899
      %1901 = vmatmul.f32.gmra.mxu0 %v1748
      %v1902 = vpop.f32.mrf.mxu0
      %v1903 = vadd.f32 0.0, %v1902
      %1904 = vmatmul.f32.gmra.mxu0 %v1751
      %v1905 = vpop.f32.mrf.mxu0
      %v1906 = vadd.f32 0.0, %v1905
      %1907 = vmatmul.f32.gmra.mxu0 %v1754
      %v1908 = vpop.f32.mrf.mxu0
      %v1909 = vadd.f32 0.0, %v1908
      %1910 = vmatmul.f32.gmra.mxu0 %v1757
      %v1911 = vpop.f32.mrf.mxu0
      %v1912 = vadd.f32 0.0, %v1911
      %1913 = vmatmul.f32.gmra.mxu0 %v1760
      %v1914 = vpop.f32.mrf.mxu0
      %v1915 = vadd.f32 0.0, %v1914
      %1916 = vmatmul.f32.gmra.mxu0 %v1763
      %v1917 = vpop.f32.mrf.mxu0
      %v1918 = vadd.f32 0.0, %v1917
      %1919 = vmatmul.f32.gmra.mxu0 %v1766
      %v1920 = vpop.f32.mrf.mxu0
      %v1921 = vadd.f32 0.0, %v1920
      %1922 = vmatmul.f32.gmra.mxu0 %v1769
      %v1923 = vpop.f32.mrf.mxu0
      %v1924 = vadd.f32 0.0, %v1923
      %1925 = vmatmul.f32.gmra.mxu0 %v1772
      %v1926 = vpop.f32.mrf.mxu0
      %v1927 = vadd.f32 0.0, %v1926
      %1928 = vmatmul.f32.gmra.mxu0 %v1775
      %v1929 = vpop.f32.mrf.mxu0
      %v1930 = vadd.f32 0.0, %v1929
      %1931 = vmatmul.f32.gmra.mxu0 %v1778
      %v1932 = vpop.f32.mrf.mxu0
      %v1933 = vadd.f32 0.0, %v1932
      %1934 = vmatmul.f32.gmra.mxu0 %v1781
      %v1935 = vpop.f32.mrf.mxu0
      %v1936 = vadd.f32 0.0, %v1935
      %1937 = vmatmul.f32.gmra.mxu0 %v1784
      %v1938 = vpop.f32.mrf.mxu0
      %v1939 = vadd.f32 0.0, %v1938
      %1940 = vmatmul.f32.gmra.mxu0 %v1787
      %v1941 = vpop.f32.mrf.mxu0
      %v1942 = vadd.f32 0.0, %v1941
      %1943 = vmatmul.f32.gmra.mxu0 %v1790
      %v1944 = vpop.f32.mrf.mxu0
      %v1945 = vadd.f32 0.0, %v1944
      %1946 = vmatmul.f32.gmra.mxu0 %v1793
      %v1947 = vpop.f32.mrf.mxu0
      %v1948 = vadd.f32 0.0, %v1947
      %1949 = vmatmul.f32.gmra.mxu0 %v1796
      %v1950 = vpop.f32.mrf.mxu0
      %v1951 = vadd.f32 0.0, %v1950
      %1952 = vmatmul.f32.gmra.mxu0 %v1799
      %v1953 = vpop.f32.mrf.mxu0
      %v1954 = vadd.f32 0.0, %v1953
      %1955 = vmatmul.f32.gmra.mxu0 %v1802
      %v1956 = vpop.f32.mrf.mxu0
      %v1957 = vadd.f32 0.0, %v1956
      %1958 = vmatmul.f32.gmra.mxu0 %v1805
      %v1959 = vpop.f32.mrf.mxu0
      %v1960 = vadd.f32 0.0, %v1959
      %1961 = vmatmul.f32.gmra.mxu0 %v1808
      %v1962 = vpop.f32.mrf.mxu0
      %v1963 = vadd.f32 0.0, %v1962
      %1964 = vmatmul.f32.gmra.mxu0 %v1811
      %v1965 = vpop.f32.mrf.mxu0
      %v1966 = vadd.f32 0.0, %v1965
      %1967 = vmatmul.f32.gmra.mxu0 %v1814
      %v1968 = vpop.f32.mrf.mxu0
      %v1969 = vadd.f32 0.0, %v1968
      %1970 = vmatmul.f32.gmra.mxu0 %v1817
      %v1971 = vpop.f32.mrf.mxu0
      %v1972 = vadd.f32 0.0, %v1971
      %1973 = vmatmul.f32.gmra.mxu0 %v1820
      %v1974 = vpop.f32.mrf.mxu0
      %v1975 = vadd.f32 0.0, %v1974
      %1976 = vmatmul.f32.gmra.mxu0 %v1823
      %v1977 = vpop.f32.mrf.mxu0
      %v1978 = vadd.f32 0.0, %v1977
      %1979 = vmatmul.f32.gmra.mxu0 %v1826
      %v1980 = vpop.f32.mrf.mxu0
      %v1981 = vadd.f32 0.0, %v1980
      %1982 = vmatmul.f32.gmra.mxu0 %v1829
      %v1983 = vpop.f32.mrf.mxu0
      %v1984 = vadd.f32 0.0, %v1983
      %1985 = vmatmul.f32.gmra.mxu0 %v1832
      %v1986 = vpop.f32.mrf.mxu0
      %v1987 = vadd.f32 0.0, %v1986
      %1988 = vmatmul.f32.gmra.mxu0 %v1835
      %v1989 = vpop.f32.mrf.mxu0
      %v1990 = vadd.f32 0.0, %v1989
      %1991 = vmatmul.f32.gmra.mxu0 %v1838
      %v1992 = vpop.f32.mrf.mxu0
      %v1993 = vadd.f32 0.0, %v1992
      %1994 = vmatmul.f32.gmra.mxu0 %v1841
      %v1995 = vpop.f32.mrf.mxu0
      %v1996 = vadd.f32 0.0, %v1995
      %1997 = vmatmul.f32.gmra.mxu0 %v1844
      %v1998 = vpop.f32.mrf.mxu0
      %v1999 = vadd.f32 0.0, %v1998
      %2000 = vmatmul.f32.gmra.mxu0 %v1847
      %v2001 = vpop.f32.mrf.mxu0
      %v2002 = vadd.f32 0.0, %v2001
      %2003 = vmatmul.f32.gmra.mxu0 %v1850
      %v2004 = vpop.f32.mrf.mxu0
      %v2005 = vadd.f32 0.0, %v2004
      %2006 = vmatmul.f32.gmra.mxu0 %v1853
      %v2007 = vpop.f32.mrf.mxu0
      %v2008 = vadd.f32 0.0, %v2007
      %2009 = vmatmul.f32.gmra.mxu0 %v1856
      %v2010 = vpop.f32.mrf.mxu0
      %v2011 = vadd.f32 0.0, %v2010
      %2012 = vmatmul.f32.gmra.mxu0 %v1859
      %v2013 = vpop.f32.mrf.mxu0
      %v2014 = vadd.f32 0.0, %v2013
      %2015 = vmatmul.f32.gmra.mxu0 %v1862
      %v2016 = vpop.f32.mrf.mxu0
      %v2017 = vadd.f32 0.0, %v2016
      %2018 = vdwg.mxu0
      %v2019 = vadd.f32 %v1636, %v1885
      %v2020 = vadd.f32 %v1637, %v1888
      %v2021 = vadd.f32 %v1638, %v1891
      %v2022 = vadd.f32 %v1639, %v1894
      %v2023 = vadd.f32 %v1640, %v1897
      %v2024 = vadd.f32 %v1641, %v1900
      %v2025 = vadd.f32 %v1642, %v1903
      %v2026 = vadd.f32 %v1643, %v1906
      %v2027 = vadd.f32 %v1644, %v1909
      %v2028 = vadd.f32 %v1645, %v1912
      %v2029 = vadd.f32 %v1646, %v1915
      %v2030 = vadd.f32 %v1647, %v1918
      %v2031 = vadd.f32 %v1648, %v1921
      %v2032 = vadd.f32 %v1649, %v1924
      %v2033 = vadd.f32 %v1650, %v1927
      %v2034 = vadd.f32 %v1651, %v1930
      %v2035 = vadd.f32 %v1652, %v1933
      %v2036 = vadd.f32 %v1653, %v1936
      %v2037 = vadd.f32 %v1654, %v1939
      %v2038 = vadd.f32 %v1655, %v1942
      %v2039 = vadd.f32 %v1656, %v1945
      %v2040 = vadd.f32 %v1657, %v1948
      %v2041 = vadd.f32 %v1658, %v1951
      %v2042 = vadd.f32 %v1659, %v1954
      %v2043 = vadd.f32 %v1660, %v1957
      %v2044 = vadd.f32 %v1661, %v1960
      %v2045 = vadd.f32 %v1662, %v1963
      %v2046 = vadd.f32 %v1663, %v1966
      %v2047 = vadd.f32 %v1664, %v1969
      %v2048 = vadd.f32 %v1665, %v1972
      %v2049 = vadd.f32 %v1666, %v1975
      %v2050 = vadd.f32 %v1667, %v1978
      %v2051 = vadd.f32 %v1668, %v1981
      %v2052 = vadd.f32 %v1669, %v1984
      %v2053 = vadd.f32 %v1670, %v1987
      %v2054 = vadd.f32 %v1671, %v1990
      %v2055 = vadd.f32 %v1672, %v1993
      %v2056 = vadd.f32 %v1673, %v1996
      %v2057 = vadd.f32 %v1674, %v1999
      %v2058 = vadd.f32 %v1675, %v2002
      %v2059 = vadd.f32 %v1676, %v2005
      %v2060 = vadd.f32 %v1677, %v2008
      %v2061 = vadd.f32 %v1678, %v2011
      %v2062 = vadd.f32 %v1679, %v2014
      %v2063 = vadd.f32 %v1680, %v2017
      %s2064 = sadd.s32 %s237, 22
      %s2065 = scalar_lea.vmem %s220, %s2064
      %v2066 = vld [vmem:[%s2065] sm:$0xff]
      %v2067 = vld [vmem:[%s2065 + $0x8] sm:$0xff]
      %v2068 = vld [vmem:[%s2065 + $0x10] sm:$0xff]
      %v2069 = vld [vmem:[%s2065 + $0x18] sm:$0xff]
      %v2070 = vld [vmem:[%s2065 + $0x20] sm:$0xff]
      %v2071 = vld [vmem:[%s2065 + $0x28] sm:$0xff]
      %v2072 = vld [vmem:[%s2065 + $0x30] sm:$0xff]
      %v2073 = vld [vmem:[%s2065 + $0x38] sm:$0xff]
      %v2074 = vld [vmem:[%s2065 + $0x40] sm:$0xff]
      %v2075 = vld [vmem:[%s2065 + $0x48] sm:$0xff]
      %v2076 = vld [vmem:[%s2065 + $0x50] sm:$0xff]
      %v2077 = vld [vmem:[%s2065 + $0x58] sm:$0xff]
      %v2078 = vld [vmem:[%s2065 + $0x60] sm:$0xff]
      %v2079 = vld [vmem:[%s2065 + $0x68] sm:$0xff]
      %v2080 = vld [vmem:[%s2065 + $0x70] sm:$0xff]
      %v2081 = vld [vmem:[%s2065 + $0x78] sm:$0xff]
      %v2082 = vld [vmem:[%s2065 + $0x80] sm:$0xff]
      %v2083 = vld [vmem:[%s2065 + $0x88] sm:$0xff]
      %v2084 = vld [vmem:[%s2065 + $0x90] sm:$0xff]
      %v2085 = vld [vmem:[%s2065 + $0x98] sm:$0xff]
      %v2086 = vld [vmem:[%s2065 + $0xa0] sm:$0xff]
      %v2087 = vld [vmem:[%s2065 + $0xa8] sm:$0xff]
      %v2088 = vld [vmem:[%s2065 + $0xb0] sm:$0xff]
      %v2089 = vld [vmem:[%s2065 + $0xb8] sm:$0xff]
      %v2090 = vld [vmem:[%s2065 + $0xc0] sm:$0xff]
      %v2091 = vld [vmem:[%s2065 + $0xc8] sm:$0xff]
      %v2092 = vld [vmem:[%s2065 + $0xd0] sm:$0xff]
      %v2093 = vld [vmem:[%s2065 + $0xd8] sm:$0xff]
      %v2094 = vld [vmem:[%s2065 + $0xe0] sm:$0xff]
      %v2095 = vld [vmem:[%s2065 + $0xe8] sm:$0xff]
      %v2096 = vld [vmem:[%s2065 + $0xf0] sm:$0xff]
      %v2097 = vld [vmem:[%s2065 + $0xf8] sm:$0xff]
      %v2098 = vld [vmem:[%s2065 + $0x100] sm:$0xff]
      %v2099 = vld [vmem:[%s2065 + $0x108] sm:$0xff]
      %v2100 = vld [vmem:[%s2065 + $0x110] sm:$0xff]
      %v2101 = vld [vmem:[%s2065 + $0x118] sm:$0xff]
      %v2102 = vld [vmem:[%s2065 + $0x120] sm:$0xff]
      %v2103 = vld [vmem:[%s2065 + $0x128] sm:$0xff]
      %v2104 = vld [vmem:[%s2065 + $0x130] sm:$0xff]
      %v2105 = vld [vmem:[%s2065 + $0x138] sm:$0xff]
      %v2106 = vld [vmem:[%s2065 + $0x140] sm:$0xff]
      %v2107 = vld [vmem:[%s2065 + $0x148] sm:$0xff]
      %v2108 = vld [vmem:[%s2065 + $0x150] sm:$0xff]
      %v2109 = vld [vmem:[%s2065 + $0x158] sm:$0xff]
      %v2110 = vld [vmem:[%s2065 + $0x160] sm:$0xff]
      %v2111 = vld [vmem:[%s1 + $0x14] sm:$0xf]
      %v2113 = vsel %vm333, %v2066, 0
      %v2116 = vsel %vm333, %v2067, 0
      %v2119 = vsel %vm333, %v2068, 0
      %v2122 = vsel %vm333, %v2069, 0
      %v2125 = vsel %vm333, %v2070, 0
      %v2128 = vsel %vm333, %v2071, 0
      %v2131 = vsel %vm333, %v2072, 0
      %v2134 = vsel %vm333, %v2073, 0
      %v2137 = vsel %vm333, %v2074, 0
      %v2140 = vsel %vm333, %v2075, 0
      %v2143 = vsel %vm333, %v2076, 0
      %v2146 = vsel %vm333, %v2077, 0
      %v2149 = vsel %vm333, %v2078, 0
      %v2152 = vsel %vm333, %v2079, 0
      %v2155 = vsel %vm333, %v2080, 0
      %v2158 = vsel %vm333, %v2081, 0
      %v2161 = vsel %vm333, %v2082, 0
      %v2164 = vsel %vm333, %v2083, 0
      %v2167 = vsel %vm333, %v2084, 0
      %v2170 = vsel %vm333, %v2085, 0
      %v2173 = vsel %vm333, %v2086, 0
      %v2176 = vsel %vm333, %v2087, 0
      %v2179 = vsel %vm333, %v2088, 0
      %v2182 = vsel %vm333, %v2089, 0
      %v2185 = vsel %vm333, %v2090, 0
      %v2188 = vsel %vm333, %v2091, 0
      %v2191 = vsel %vm333, %v2092, 0
      %v2194 = vsel %vm333, %v2093, 0
      %v2197 = vsel %vm333, %v2094, 0
      %v2200 = vsel %vm333, %v2095, 0
      %v2203 = vsel %vm333, %v2096, 0
      %v2206 = vsel %vm333, %v2097, 0
      %v2209 = vsel %vm333, %v2098, 0
      %v2212 = vsel %vm333, %v2099, 0
      %v2215 = vsel %vm333, %v2100, 0
      %v2218 = vsel %vm333, %v2101, 0
      %v2221 = vsel %vm333, %v2102, 0
      %v2224 = vsel %vm333, %v2103, 0
      %v2227 = vsel %vm333, %v2104, 0
      %v2230 = vsel %vm333, %v2105, 0
      %v2233 = vsel %vm333, %v2106, 0
      %v2236 = vsel %vm333, %v2107, 0
      %v2239 = vsel %vm333, %v2108, 0
      %v2242 = vsel %vm333, %v2109, 0
      %v2245 = vsel %vm333, %v2110, 0
      %v2248 = vsel %vm469, %v2111, 0
      %2250 = vmatpush.msra.mxu0 0.0
      %2251 = vmatpush.msra.mxu0 0.0
      %2252 = vmatpush.msra.mxu0 0.0
      %2253 = vmatpush.msra.mxu0 0.0
      %2254 = vmatpush.msra.mxu0 0.0
      %2255 = vmatpush.msra.mxu0 0.0
      %2256 = vmatpush.msra.mxu0 0.0
      %2257 = vmatpush.msra.mxu0 0.0
      %2258 = vmatpush.msra.mxu0 0.0
      %2259 = vmatpush.msra.mxu0 0.0
      %2260 = vmatpush.msra.mxu0 0.0
      %2261 = vmatpush.msra.mxu0 0.0
      %2262 = vmatpush.msra.mxu0 0.0
      %2263 = vmatpush.msra.mxu0 0.0
      %2264 = vmatpush.msra.mxu0 0.0
      %2265 = vmatpush.msra.mxu0 %v2248
      %2266 = vmatmul.f32.gmra.mxu0 %v2113
      %v2267 = vpop.f32.mrf.mxu0
      %v2268 = vadd.f32 0.0, %v2267
      %2269 = vmatmul.f32.gmra.mxu0 %v2116
      %v2270 = vpop.f32.mrf.mxu0
      %v2271 = vadd.f32 0.0, %v2270
      %2272 = vmatmul.f32.gmra.mxu0 %v2119
      %v2273 = vpop.f32.mrf.mxu0
      %v2274 = vadd.f32 0.0, %v2273
      %2275 = vmatmul.f32.gmra.mxu0 %v2122
      %v2276 = vpop.f32.mrf.mxu0
      %v2277 = vadd.f32 0.0, %v2276
      %2278 = vmatmul.f32.gmra.mxu0 %v2125
      %v2279 = vpop.f32.mrf.mxu0
      %v2280 = vadd.f32 0.0, %v2279
      %2281 = vmatmul.f32.gmra.mxu0 %v2128
      %v2282 = vpop.f32.mrf.mxu0
      %v2283 = vadd.f32 0.0, %v2282
      %2284 = vmatmul.f32.gmra.mxu0 %v2131
      %v2285 = vpop.f32.mrf.mxu0
      %v2286 = vadd.f32 0.0, %v2285
      %2287 = vmatmul.f32.gmra.mxu0 %v2134
      %v2288 = vpop.f32.mrf.mxu0
      %v2289 = vadd.f32 0.0, %v2288
      %2290 = vmatmul.f32.gmra.mxu0 %v2137
      %v2291 = vpop.f32.mrf.mxu0
      %v2292 = vadd.f32 0.0, %v2291
      %2293 = vmatmul.f32.gmra.mxu0 %v2140
      %v2294 = vpop.f32.mrf.mxu0
      %v2295 = vadd.f32 0.0, %v2294
      %2296 = vmatmul.f32.gmra.mxu0 %v2143
      %v2297 = vpop.f32.mrf.mxu0
      %v2298 = vadd.f32 0.0, %v2297
      %2299 = vmatmul.f32.gmra.mxu0 %v2146
      %v2300 = vpop.f32.mrf.mxu0
      %v2301 = vadd.f32 0.0, %v2300
      %2302 = vmatmul.f32.gmra.mxu0 %v2149
      %v2303 = vpop.f32.mrf.mxu0
      %v2304 = vadd.f32 0.0, %v2303
      %2305 = vmatmul.f32.gmra.mxu0 %v2152
      %v2306 = vpop.f32.mrf.mxu0
      %v2307 = vadd.f32 0.0, %v2306
      %2308 = vmatmul.f32.gmra.mxu0 %v2155
      %v2309 = vpop.f32.mrf.mxu0
      %v2310 = vadd.f32 0.0, %v2309
      %2311 = vmatmul.f32.gmra.mxu0 %v2158
      %v2312 = vpop.f32.mrf.mxu0
      %v2313 = vadd.f32 0.0, %v2312
      %2314 = vmatmul.f32.gmra.mxu0 %v2161
      %v2315 = vpop.f32.mrf.mxu0
      %v2316 = vadd.f32 0.0, %v2315
      %2317 = vmatmul.f32.gmra.mxu0 %v2164
      %v2318 = vpop.f32.mrf.mxu0
      %v2319 = vadd.f32 0.0, %v2318
      %2320 = vmatmul.f32.gmra.mxu0 %v2167
      %v2321 = vpop.f32.mrf.mxu0
      %v2322 = vadd.f32 0.0, %v2321
      %2323 = vmatmul.f32.gmra.mxu0 %v2170
      %v2324 = vpop.f32.mrf.mxu0
      %v2325 = vadd.f32 0.0, %v2324
      %2326 = vmatmul.f32.gmra.mxu0 %v2173
      %v2327 = vpop.f32.mrf.mxu0
      %v2328 = vadd.f32 0.0, %v2327
      %2329 = vmatmul.f32.gmra.mxu0 %v2176
      %v2330 = vpop.f32.mrf.mxu0
      %v2331 = vadd.f32 0.0, %v2330
      %2332 = vmatmul.f32.gmra.mxu0 %v2179
      %v2333 = vpop.f32.mrf.mxu0
      %v2334 = vadd.f32 0.0, %v2333
      %2335 = vmatmul.f32.gmra.mxu0 %v2182
      %v2336 = vpop.f32.mrf.mxu0
      %v2337 = vadd.f32 0.0, %v2336
      %2338 = vmatmul.f32.gmra.mxu0 %v2185
      %v2339 = vpop.f32.mrf.mxu0
      %v2340 = vadd.f32 0.0, %v2339
      %2341 = vmatmul.f32.gmra.mxu0 %v2188
      %v2342 = vpop.f32.mrf.mxu0
      %v2343 = vadd.f32 0.0, %v2342
      %2344 = vmatmul.f32.gmra.mxu0 %v2191
      %v2345 = vpop.f32.mrf.mxu0
      %v2346 = vadd.f32 0.0, %v2345
      %2347 = vmatmul.f32.gmra.mxu0 %v2194
      %v2348 = vpop.f32.mrf.mxu0
      %v2349 = vadd.f32 0.0, %v2348
      %2350 = vmatmul.f32.gmra.mxu0 %v2197
      %v2351 = vpop.f32.mrf.mxu0
      %v2352 = vadd.f32 0.0, %v2351
      %2353 = vmatmul.f32.gmra.mxu0 %v2200
      %v2354 = vpop.f32.mrf.mxu0
      %v2355 = vadd.f32 0.0, %v2354
      %2356 = vmatmul.f32.gmra.mxu0 %v2203
      %v2357 = vpop.f32.mrf.mxu0
      %v2358 = vadd.f32 0.0, %v2357
      %2359 = vmatmul.f32.gmra.mxu0 %v2206
      %v2360 = vpop.f32.mrf.mxu0
      %v2361 = vadd.f32 0.0, %v2360
      %2362 = vmatmul.f32.gmra.mxu0 %v2209
      %v2363 = vpop.f32.mrf.mxu0
      %v2364 = vadd.f32 0.0, %v2363
      %2365 = vmatmul.f32.gmra.mxu0 %v2212
      %v2366 = vpop.f32.mrf.mxu0
      %v2367 = vadd.f32 0.0, %v2366
      %2368 = vmatmul.f32.gmra.mxu0 %v2215
      %v2369 = vpop.f32.mrf.mxu0
      %v2370 = vadd.f32 0.0, %v2369
      %2371 = vmatmul.f32.gmra.mxu0 %v2218
      %v2372 = vpop.f32.mrf.mxu0
      %v2373 = vadd.f32 0.0, %v2372
      %2374 = vmatmul.f32.gmra.mxu0 %v2221
      %v2375 = vpop.f32.mrf.mxu0
      %v2376 = vadd.f32 0.0, %v2375
      %2377 = vmatmul.f32.gmra.mxu0 %v2224
      %v2378 = vpop.f32.mrf.mxu0
      %v2379 = vadd.f32 0.0, %v2378
      %2380 = vmatmul.f32.gmra.mxu0 %v2227
      %v2381 = vpop.f32.mrf.mxu0
      %v2382 = vadd.f32 0.0, %v2381
      %2383 = vmatmul.f32.gmra.mxu0 %v2230
      %v2384 = vpop.f32.mrf.mxu0
      %v2385 = vadd.f32 0.0, %v2384
      %2386 = vmatmul.f32.gmra.mxu0 %v2233
      %v2387 = vpop.f32.mrf.mxu0
      %v2388 = vadd.f32 0.0, %v2387
      %2389 = vmatmul.f32.gmra.mxu0 %v2236
      %v2390 = vpop.f32.mrf.mxu0
      %v2391 = vadd.f32 0.0, %v2390
      %2392 = vmatmul.f32.gmra.mxu0 %v2239
      %v2393 = vpop.f32.mrf.mxu0
      %v2394 = vadd.f32 0.0, %v2393
      %2395 = vmatmul.f32.gmra.mxu0 %v2242
      %v2396 = vpop.f32.mrf.mxu0
      %v2397 = vadd.f32 0.0, %v2396
      %2398 = vmatmul.f32.gmra.mxu0 %v2245
      %v2399 = vpop.f32.mrf.mxu0
      %v2400 = vadd.f32 0.0, %v2399
      %2401 = vdwg.mxu0
      %v2402 = vadd.f32 %v2019, %v2268
      %v2403 = vadd.f32 %v2020, %v2271
      %v2404 = vadd.f32 %v2021, %v2274
      %v2405 = vadd.f32 %v2022, %v2277
      %v2406 = vadd.f32 %v2023, %v2280
      %v2407 = vadd.f32 %v2024, %v2283
      %v2408 = vadd.f32 %v2025, %v2286
      %v2409 = vadd.f32 %v2026, %v2289
      %v2410 = vadd.f32 %v2027, %v2292
      %v2411 = vadd.f32 %v2028, %v2295
      %v2412 = vadd.f32 %v2029, %v2298
      %v2413 = vadd.f32 %v2030, %v2301
      %v2414 = vadd.f32 %v2031, %v2304
      %v2415 = vadd.f32 %v2032, %v2307
      %v2416 = vadd.f32 %v2033, %v2310
      %v2417 = vadd.f32 %v2034, %v2313
      %v2418 = vadd.f32 %v2035, %v2316
      %v2419 = vadd.f32 %v2036, %v2319
      %v2420 = vadd.f32 %v2037, %v2322
      %v2421 = vadd.f32 %v2038, %v2325
      %v2422 = vadd.f32 %v2039, %v2328
      %v2423 = vadd.f32 %v2040, %v2331
      %v2424 = vadd.f32 %v2041, %v2334
      %v2425 = vadd.f32 %v2042, %v2337
      %v2426 = vadd.f32 %v2043, %v2340
      %v2427 = vadd.f32 %v2044, %v2343
      %v2428 = vadd.f32 %v2045, %v2346
      %v2429 = vadd.f32 %v2046, %v2349
      %v2430 = vadd.f32 %v2047, %v2352
      %v2431 = vadd.f32 %v2048, %v2355
      %v2432 = vadd.f32 %v2049, %v2358
      %v2433 = vadd.f32 %v2050, %v2361
      %v2434 = vadd.f32 %v2051, %v2364
      %v2435 = vadd.f32 %v2052, %v2367
      %v2436 = vadd.f32 %v2053, %v2370
      %v2437 = vadd.f32 %v2054, %v2373
      %v2438 = vadd.f32 %v2055, %v2376
      %v2439 = vadd.f32 %v2056, %v2379
      %v2440 = vadd.f32 %v2057, %v2382
      %v2441 = vadd.f32 %v2058, %v2385
      %v2442 = vadd.f32 %v2059, %v2388
      %v2443 = vadd.f32 %v2060, %v2391
      %v2444 = vadd.f32 %v2061, %v2394
      %v2445 = vadd.f32 %v2062, %v2397
      %v2446 = vadd.f32 %v2063, %v2400
      %s2447 = sadd.s32 %s237, 40
      %s2448 = scalar_lea.vmem %s220, %s2447
      %v2449 = vld [vmem:[%s2448] sm:$0xff]
      %v2450 = vld [vmem:[%s2448 + $0x8] sm:$0xff]
      %v2451 = vld [vmem:[%s2448 + $0x10] sm:$0xff]
      %v2452 = vld [vmem:[%s2448 + $0x18] sm:$0xff]
      %v2453 = vld [vmem:[%s2448 + $0x20] sm:$0xff]
      %v2454 = vld [vmem:[%s2448 + $0x28] sm:$0xff]
      %v2455 = vld [vmem:[%s2448 + $0x30] sm:$0xff]
      %v2456 = vld [vmem:[%s2448 + $0x38] sm:$0xff]
      %v2457 = vld [vmem:[%s2448 + $0x40] sm:$0xff]
      %v2458 = vld [vmem:[%s2448 + $0x48] sm:$0xff]
      %v2459 = vld [vmem:[%s2448 + $0x50] sm:$0xff]
      %v2460 = vld [vmem:[%s2448 + $0x58] sm:$0xff]
      %v2461 = vld [vmem:[%s2448 + $0x60] sm:$0xff]
      %v2462 = vld [vmem:[%s2448 + $0x68] sm:$0xff]
      %v2463 = vld [vmem:[%s2448 + $0x70] sm:$0xff]
      %v2464 = vld [vmem:[%s2448 + $0x78] sm:$0xff]
      %v2465 = vld [vmem:[%s2448 + $0x80] sm:$0xff]
      %v2466 = vld [vmem:[%s2448 + $0x88] sm:$0xff]
      %v2467 = vld [vmem:[%s2448 + $0x90] sm:$0xff]
      %v2468 = vld [vmem:[%s2448 + $0x98] sm:$0xff]
      %v2469 = vld [vmem:[%s2448 + $0xa0] sm:$0xff]
      %v2470 = vld [vmem:[%s2448 + $0xa8] sm:$0xff]
      %v2471 = vld [vmem:[%s2448 + $0xb0] sm:$0xff]
      %v2472 = vld [vmem:[%s2448 + $0xb8] sm:$0xff]
      %v2473 = vld [vmem:[%s2448 + $0xc0] sm:$0xff]
      %v2474 = vld [vmem:[%s2448 + $0xc8] sm:$0xff]
      %v2475 = vld [vmem:[%s2448 + $0xd0] sm:$0xff]
      %v2476 = vld [vmem:[%s2448 + $0xd8] sm:$0xff]
      %v2477 = vld [vmem:[%s2448 + $0xe0] sm:$0xff]
      %v2478 = vld [vmem:[%s2448 + $0xe8] sm:$0xff]
      %v2479 = vld [vmem:[%s2448 + $0xf0] sm:$0xff]
      %v2480 = vld [vmem:[%s2448 + $0xf8] sm:$0xff]
      %v2481 = vld [vmem:[%s2448 + $0x100] sm:$0xff]
      %v2482 = vld [vmem:[%s2448 + $0x108] sm:$0xff]
      %v2483 = vld [vmem:[%s2448 + $0x110] sm:$0xff]
      %v2484 = vld [vmem:[%s2448 + $0x118] sm:$0xff]
      %v2485 = vld [vmem:[%s2448 + $0x120] sm:$0xff]
      %v2486 = vld [vmem:[%s2448 + $0x128] sm:$0xff]
      %v2487 = vld [vmem:[%s2448 + $0x130] sm:$0xff]
      %v2488 = vld [vmem:[%s2448 + $0x138] sm:$0xff]
      %v2489 = vld [vmem:[%s2448 + $0x140] sm:$0xff]
      %v2490 = vld [vmem:[%s2448 + $0x148] sm:$0xff]
      %v2491 = vld [vmem:[%s2448 + $0x150] sm:$0xff]
      %v2492 = vld [vmem:[%s2448 + $0x158] sm:$0xff]
      %v2493 = vld [vmem:[%s2448 + $0x160] sm:$0xff]
      %v2494 = vld [vmem:[%s1 + $0x18] sm:$0xf]
      %v2496 = vsel %vm333, %v2449, 0
      %v2499 = vsel %vm333, %v2450, 0
      %v2502 = vsel %vm333, %v2451, 0
      %v2505 = vsel %vm333, %v2452, 0
      %v2508 = vsel %vm333, %v2453, 0
      %v2511 = vsel %vm333, %v2454, 0
      %v2514 = vsel %vm333, %v2455, 0
      %v2517 = vsel %vm333, %v2456, 0
      %v2520 = vsel %vm333, %v2457, 0
      %v2523 = vsel %vm333, %v2458, 0
      %v2526 = vsel %vm333, %v2459, 0
      %v2529 = vsel %vm333, %v2460, 0
      %v2532 = vsel %vm333, %v2461, 0
      %v2535 = vsel %vm333, %v2462, 0
      %v2538 = vsel %vm333, %v2463, 0
      %v2541 = vsel %vm333, %v2464, 0
      %v2544 = vsel %vm333, %v2465, 0
      %v2547 = vsel %vm333, %v2466, 0
      %v2550 = vsel %vm333, %v2467, 0
      %v2553 = vsel %vm333, %v2468, 0
      %v2556 = vsel %vm333, %v2469, 0
      %v2559 = vsel %vm333, %v2470, 0
      %v2562 = vsel %vm333, %v2471, 0
      %v2565 = vsel %vm333, %v2472, 0
      %v2568 = vsel %vm333, %v2473, 0
      %v2571 = vsel %vm333, %v2474, 0
      %v2574 = vsel %vm333, %v2475, 0
      %v2577 = vsel %vm333, %v2476, 0
      %v2580 = vsel %vm333, %v2477, 0
      %v2583 = vsel %vm333, %v2478, 0
      %v2586 = vsel %vm333, %v2479, 0
      %v2589 = vsel %vm333, %v2480, 0
      %v2592 = vsel %vm333, %v2481, 0
      %v2595 = vsel %vm333, %v2482, 0
      %v2598 = vsel %vm333, %v2483, 0
      %v2601 = vsel %vm333, %v2484, 0
      %v2604 = vsel %vm333, %v2485, 0
      %v2607 = vsel %vm333, %v2486, 0
      %v2610 = vsel %vm333, %v2487, 0
      %v2613 = vsel %vm333, %v2488, 0
      %v2616 = vsel %vm333, %v2489, 0
      %v2619 = vsel %vm333, %v2490, 0
      %v2622 = vsel %vm333, %v2491, 0
      %v2625 = vsel %vm333, %v2492, 0
      %v2628 = vsel %vm333, %v2493, 0
      %v2631 = vsel %vm469, %v2494, 0
      %2633 = vmatpush.msra.mxu0 0.0
      %2634 = vmatpush.msra.mxu0 0.0
      %2635 = vmatpush.msra.mxu0 0.0
      %2636 = vmatpush.msra.mxu0 0.0
      %2637 = vmatpush.msra.mxu0 0.0
      %2638 = vmatpush.msra.mxu0 0.0
      %2639 = vmatpush.msra.mxu0 0.0
      %2640 = vmatpush.msra.mxu0 0.0
      %2641 = vmatpush.msra.mxu0 0.0
      %2642 = vmatpush.msra.mxu0 0.0
      %2643 = vmatpush.msra.mxu0 0.0
      %2644 = vmatpush.msra.mxu0 0.0
      %2645 = vmatpush.msra.mxu0 0.0
      %2646 = vmatpush.msra.mxu0 0.0
      %2647 = vmatpush.msra.mxu0 0.0
      %2648 = vmatpush.msra.mxu0 %v2631
      %2649 = vmatmul.f32.gmra.mxu0 %v2496
      %v2650 = vpop.f32.mrf.mxu0
      %v2651 = vadd.f32 0.0, %v2650
      %2652 = vmatmul.f32.gmra.mxu0 %v2499
      %v2653 = vpop.f32.mrf.mxu0
      %v2654 = vadd.f32 0.0, %v2653
      %2655 = vmatmul.f32.gmra.mxu0 %v2502
      %v2656 = vpop.f32.mrf.mxu0
      %v2657 = vadd.f32 0.0, %v2656
      %2658 = vmatmul.f32.gmra.mxu0 %v2505
      %v2659 = vpop.f32.mrf.mxu0
      %v2660 = vadd.f32 0.0, %v2659
      %2661 = vmatmul.f32.gmra.mxu0 %v2508
      %v2662 = vpop.f32.mrf.mxu0
      %v2663 = vadd.f32 0.0, %v2662
      %2664 = vmatmul.f32.gmra.mxu0 %v2511
      %v2665 = vpop.f32.mrf.mxu0
      %v2666 = vadd.f32 0.0, %v2665
      %2667 = vmatmul.f32.gmra.mxu0 %v2514
      %v2668 = vpop.f32.mrf.mxu0
      %v2669 = vadd.f32 0.0, %v2668
      %2670 = vmatmul.f32.gmra.mxu0 %v2517
      %v2671 = vpop.f32.mrf.mxu0
      %v2672 = vadd.f32 0.0, %v2671
      %2673 = vmatmul.f32.gmra.mxu0 %v2520
      %v2674 = vpop.f32.mrf.mxu0
      %v2675 = vadd.f32 0.0, %v2674
      %2676 = vmatmul.f32.gmra.mxu0 %v2523
      %v2677 = vpop.f32.mrf.mxu0
      %v2678 = vadd.f32 0.0, %v2677
      %2679 = vmatmul.f32.gmra.mxu0 %v2526
      %v2680 = vpop.f32.mrf.mxu0
      %v2681 = vadd.f32 0.0, %v2680
      %2682 = vmatmul.f32.gmra.mxu0 %v2529
      %v2683 = vpop.f32.mrf.mxu0
      %v2684 = vadd.f32 0.0, %v2683
      %2685 = vmatmul.f32.gmra.mxu0 %v2532
      %v2686 = vpop.f32.mrf.mxu0
      %v2687 = vadd.f32 0.0, %v2686
      %2688 = vmatmul.f32.gmra.mxu0 %v2535
      %v2689 = vpop.f32.mrf.mxu0
      %v2690 = vadd.f32 0.0, %v2689
      %2691 = vmatmul.f32.gmra.mxu0 %v2538
      %v2692 = vpop.f32.mrf.mxu0
      %v2693 = vadd.f32 0.0, %v2692
      %2694 = vmatmul.f32.gmra.mxu0 %v2541
      %v2695 = vpop.f32.mrf.mxu0
      %v2696 = vadd.f32 0.0, %v2695
      %2697 = vmatmul.f32.gmra.mxu0 %v2544
      %v2698 = vpop.f32.mrf.mxu0
      %v2699 = vadd.f32 0.0, %v2698
      %2700 = vmatmul.f32.gmra.mxu0 %v2547
      %v2701 = vpop.f32.mrf.mxu0
      %v2702 = vadd.f32 0.0, %v2701
      %2703 = vmatmul.f32.gmra.mxu0 %v2550
      %v2704 = vpop.f32.mrf.mxu0
      %v2705 = vadd.f32 0.0, %v2704
      %2706 = vmatmul.f32.gmra.mxu0 %v2553
      %v2707 = vpop.f32.mrf.mxu0
      %v2708 = vadd.f32 0.0, %v2707
      %2709 = vmatmul.f32.gmra.mxu0 %v2556
      %v2710 = vpop.f32.mrf.mxu0
      %v2711 = vadd.f32 0.0, %v2710
      %2712 = vmatmul.f32.gmra.mxu0 %v2559
      %v2713 = vpop.f32.mrf.mxu0
      %v2714 = vadd.f32 0.0, %v2713
      %2715 = vmatmul.f32.gmra.mxu0 %v2562
      %v2716 = vpop.f32.mrf.mxu0
      %v2717 = vadd.f32 0.0, %v2716
      %2718 = vmatmul.f32.gmra.mxu0 %v2565
      %v2719 = vpop.f32.mrf.mxu0
      %v2720 = vadd.f32 0.0, %v2719
      %2721 = vmatmul.f32.gmra.mxu0 %v2568
      %v2722 = vpop.f32.mrf.mxu0
      %v2723 = vadd.f32 0.0, %v2722
      %2724 = vmatmul.f32.gmra.mxu0 %v2571
      %v2725 = vpop.f32.mrf.mxu0
      %v2726 = vadd.f32 0.0, %v2725
      %2727 = vmatmul.f32.gmra.mxu0 %v2574
      %v2728 = vpop.f32.mrf.mxu0
      %v2729 = vadd.f32 0.0, %v2728
      %2730 = vmatmul.f32.gmra.mxu0 %v2577
      %v2731 = vpop.f32.mrf.mxu0
      %v2732 = vadd.f32 0.0, %v2731
      %2733 = vmatmul.f32.gmra.mxu0 %v2580
      %v2734 = vpop.f32.mrf.mxu0
      %v2735 = vadd.f32 0.0, %v2734
      %2736 = vmatmul.f32.gmra.mxu0 %v2583
      %v2737 = vpop.f32.mrf.mxu0
      %v2738 = vadd.f32 0.0, %v2737
      %2739 = vmatmul.f32.gmra.mxu0 %v2586
      %v2740 = vpop.f32.mrf.mxu0
      %v2741 = vadd.f32 0.0, %v2740
      %2742 = vmatmul.f32.gmra.mxu0 %v2589
      %v2743 = vpop.f32.mrf.mxu0
      %v2744 = vadd.f32 0.0, %v2743
      %2745 = vmatmul.f32.gmra.mxu0 %v2592
      %v2746 = vpop.f32.mrf.mxu0
      %v2747 = vadd.f32 0.0, %v2746
      %2748 = vmatmul.f32.gmra.mxu0 %v2595
      %v2749 = vpop.f32.mrf.mxu0
      %v2750 = vadd.f32 0.0, %v2749
      %2751 = vmatmul.f32.gmra.mxu0 %v2598
      %v2752 = vpop.f32.mrf.mxu0
      %v2753 = vadd.f32 0.0, %v2752
      %2754 = vmatmul.f32.gmra.mxu0 %v2601
      %v2755 = vpop.f32.mrf.mxu0
      %v2756 = vadd.f32 0.0, %v2755
      %2757 = vmatmul.f32.gmra.mxu0 %v2604
      %v2758 = vpop.f32.mrf.mxu0
      %v2759 = vadd.f32 0.0, %v2758
      %2760 = vmatmul.f32.gmra.mxu0 %v2607
      %v2761 = vpop.f32.mrf.mxu0
      %v2762 = vadd.f32 0.0, %v2761
      %2763 = vmatmul.f32.gmra.mxu0 %v2610
      %v2764 = vpop.f32.mrf.mxu0
      %v2765 = vadd.f32 0.0, %v2764
      %2766 = vmatmul.f32.gmra.mxu0 %v2613
      %v2767 = vpop.f32.mrf.mxu0
      %v2768 = vadd.f32 0.0, %v2767
      %2769 = vmatmul.f32.gmra.mxu0 %v2616
      %v2770 = vpop.f32.mrf.mxu0
      %v2771 = vadd.f32 0.0, %v2770
      %2772 = vmatmul.f32.gmra.mxu0 %v2619
      %v2773 = vpop.f32.mrf.mxu0
      %v2774 = vadd.f32 0.0, %v2773
      %2775 = vmatmul.f32.gmra.mxu0 %v2622
      %v2776 = vpop.f32.mrf.mxu0
      %v2777 = vadd.f32 0.0, %v2776
      %2778 = vmatmul.f32.gmra.mxu0 %v2625
      %v2779 = vpop.f32.mrf.mxu0
      %v2780 = vadd.f32 0.0, %v2779
      %2781 = vmatmul.f32.gmra.mxu0 %v2628
      %v2782 = vpop.f32.mrf.mxu0
      %v2783 = vadd.f32 0.0, %v2782
      %2784 = vdwg.mxu0
      %v2785 = vadd.f32 %v2402, %v2651
      %v2786 = vadd.f32 %v2403, %v2654
      %v2787 = vadd.f32 %v2404, %v2657
      %v2788 = vadd.f32 %v2405, %v2660
      %v2789 = vadd.f32 %v2406, %v2663
      %v2790 = vadd.f32 %v2407, %v2666
      %v2791 = vadd.f32 %v2408, %v2669
      %v2792 = vadd.f32 %v2409, %v2672
      %v2793 = vadd.f32 %v2410, %v2675
      %v2794 = vadd.f32 %v2411, %v2678
      %v2795 = vadd.f32 %v2412, %v2681
      %v2796 = vadd.f32 %v2413, %v2684
      %v2797 = vadd.f32 %v2414, %v2687
      %v2798 = vadd.f32 %v2415, %v2690
      %v2799 = vadd.f32 %v2416, %v2693
      %v2800 = vadd.f32 %v2417, %v2696
      %v2801 = vadd.f32 %v2418, %v2699
      %v2802 = vadd.f32 %v2419, %v2702
      %v2803 = vadd.f32 %v2420, %v2705
      %v2804 = vadd.f32 %v2421, %v2708
      %v2805 = vadd.f32 %v2422, %v2711
      %v2806 = vadd.f32 %v2423, %v2714
      %v2807 = vadd.f32 %v2424, %v2717
      %v2808 = vadd.f32 %v2425, %v2720
      %v2809 = vadd.f32 %v2426, %v2723
      %v2810 = vadd.f32 %v2427, %v2726
      %v2811 = vadd.f32 %v2428, %v2729
      %v2812 = vadd.f32 %v2429, %v2732
      %v2813 = vadd.f32 %v2430, %v2735
      %v2814 = vadd.f32 %v2431, %v2738
      %v2815 = vadd.f32 %v2432, %v2741
      %v2816 = vadd.f32 %v2433, %v2744
      %v2817 = vadd.f32 %v2434, %v2747
      %v2818 = vadd.f32 %v2435, %v2750
      %v2819 = vadd.f32 %v2436, %v2753
      %v2820 = vadd.f32 %v2437, %v2756
      %v2821 = vadd.f32 %v2438, %v2759
      %v2822 = vadd.f32 %v2439, %v2762
      %v2823 = vadd.f32 %v2440, %v2765
      %v2824 = vadd.f32 %v2441, %v2768
      %v2825 = vadd.f32 %v2442, %v2771
      %v2826 = vadd.f32 %v2443, %v2774
      %v2827 = vadd.f32 %v2444, %v2777
      %v2828 = vadd.f32 %v2445, %v2780
      %v2829 = vadd.f32 %v2446, %v2783
      %s2830 = sadd.s32 %s237, 41
      %s2831 = scalar_lea.vmem %s220, %s2830
      %v2832 = vld [vmem:[%s2831] sm:$0xff]
      %v2833 = vld [vmem:[%s2831 + $0x8] sm:$0xff]
      %v2834 = vld [vmem:[%s2831 + $0x10] sm:$0xff]
      %v2835 = vld [vmem:[%s2831 + $0x18] sm:$0xff]
      %v2836 = vld [vmem:[%s2831 + $0x20] sm:$0xff]
      %v2837 = vld [vmem:[%s2831 + $0x28] sm:$0xff]
      %v2838 = vld [vmem:[%s2831 + $0x30] sm:$0xff]
      %v2839 = vld [vmem:[%s2831 + $0x38] sm:$0xff]
      %v2840 = vld [vmem:[%s2831 + $0x40] sm:$0xff]
      %v2841 = vld [vmem:[%s2831 + $0x48] sm:$0xff]
      %v2842 = vld [vmem:[%s2831 + $0x50] sm:$0xff]
      %v2843 = vld [vmem:[%s2831 + $0x58] sm:$0xff]
      %v2844 = vld [vmem:[%s2831 + $0x60] sm:$0xff]
      %v2845 = vld [vmem:[%s2831 + $0x68] sm:$0xff]
      %v2846 = vld [vmem:[%s2831 + $0x70] sm:$0xff]
      %v2847 = vld [vmem:[%s2831 + $0x78] sm:$0xff]
      %v2848 = vld [vmem:[%s2831 + $0x80] sm:$0xff]
      %v2849 = vld [vmem:[%s2831 + $0x88] sm:$0xff]
      %v2850 = vld [vmem:[%s2831 + $0x90] sm:$0xff]
      %v2851 = vld [vmem:[%s2831 + $0x98] sm:$0xff]
      %v2852 = vld [vmem:[%s2831 + $0xa0] sm:$0xff]
      %v2853 = vld [vmem:[%s2831 + $0xa8] sm:$0xff]
      %v2854 = vld [vmem:[%s2831 + $0xb0] sm:$0xff]
      %v2855 = vld [vmem:[%s2831 + $0xb8] sm:$0xff]
      %v2856 = vld [vmem:[%s2831 + $0xc0] sm:$0xff]
      %v2857 = vld [vmem:[%s2831 + $0xc8] sm:$0xff]
      %v2858 = vld [vmem:[%s2831 + $0xd0] sm:$0xff]
      %v2859 = vld [vmem:[%s2831 + $0xd8] sm:$0xff]
      %v2860 = vld [vmem:[%s2831 + $0xe0] sm:$0xff]
      %v2861 = vld [vmem:[%s2831 + $0xe8] sm:$0xff]
      %v2862 = vld [vmem:[%s2831 + $0xf0] sm:$0xff]
      %v2863 = vld [vmem:[%s2831 + $0xf8] sm:$0xff]
      %v2864 = vld [vmem:[%s2831 + $0x100] sm:$0xff]
      %v2865 = vld [vmem:[%s2831 + $0x108] sm:$0xff]
      %v2866 = vld [vmem:[%s2831 + $0x110] sm:$0xff]
      %v2867 = vld [vmem:[%s2831 + $0x118] sm:$0xff]
      %v2868 = vld [vmem:[%s2831 + $0x120] sm:$0xff]
      %v2869 = vld [vmem:[%s2831 + $0x128] sm:$0xff]
      %v2870 = vld [vmem:[%s2831 + $0x130] sm:$0xff]
      %v2871 = vld [vmem:[%s2831 + $0x138] sm:$0xff]
      %v2872 = vld [vmem:[%s2831 + $0x140] sm:$0xff]
      %v2873 = vld [vmem:[%s2831 + $0x148] sm:$0xff]
      %v2874 = vld [vmem:[%s2831 + $0x150] sm:$0xff]
      %v2875 = vld [vmem:[%s2831 + $0x158] sm:$0xff]
      %v2876 = vld [vmem:[%s2831 + $0x160] sm:$0xff]
      %v2877 = vld [vmem:[%s1 + $0x1c] sm:$0xf]
      %v2879 = vsel %vm333, %v2832, 0
      %v2882 = vsel %vm333, %v2833, 0
      %v2885 = vsel %vm333, %v2834, 0
      %v2888 = vsel %vm333, %v2835, 0
      %v2891 = vsel %vm333, %v2836, 0
      %v2894 = vsel %vm333, %v2837, 0
      %v2897 = vsel %vm333, %v2838, 0
      %v2900 = vsel %vm333, %v2839, 0
      %v2903 = vsel %vm333, %v2840, 0
      %v2906 = vsel %vm333, %v2841, 0
      %v2909 = vsel %vm333, %v2842, 0
      %v2912 = vsel %vm333, %v2843, 0
      %v2915 = vsel %vm333, %v2844, 0
      %v2918 = vsel %vm333, %v2845, 0
      %v2921 = vsel %vm333, %v2846, 0
      %v2924 = vsel %vm333, %v2847, 0
      %v2927 = vsel %vm333, %v2848, 0
      %v2930 = vsel %vm333, %v2849, 0
      %v2933 = vsel %vm333, %v2850, 0
      %v2936 = vsel %vm333, %v2851, 0
      %v2939 = vsel %vm333, %v2852, 0
      %v2942 = vsel %vm333, %v2853, 0
      %v2945 = vsel %vm333, %v2854, 0
      %v2948 = vsel %vm333, %v2855, 0
      %v2951 = vsel %vm333, %v2856, 0
      %v2954 = vsel %vm333, %v2857, 0
      %v2957 = vsel %vm333, %v2858, 0
      %v2960 = vsel %vm333, %v2859, 0
      %v2963 = vsel %vm333, %v2860, 0
      %v2966 = vsel %vm333, %v2861, 0
      %v2969 = vsel %vm333, %v2862, 0
      %v2972 = vsel %vm333, %v2863, 0
      %v2975 = vsel %vm333, %v2864, 0
      %v2978 = vsel %vm333, %v2865, 0
      %v2981 = vsel %vm333, %v2866, 0
      %v2984 = vsel %vm333, %v2867, 0
      %v2987 = vsel %vm333, %v2868, 0
      %v2990 = vsel %vm333, %v2869, 0
      %v2993 = vsel %vm333, %v2870, 0
      %v2996 = vsel %vm333, %v2871, 0
      %v2999 = vsel %vm333, %v2872, 0
      %v3002 = vsel %vm333, %v2873, 0
      %v3005 = vsel %vm333, %v2874, 0
      %v3008 = vsel %vm333, %v2875, 0
      %v3011 = vsel %vm333, %v2876, 0
      %v3014 = vsel %vm469, %v2877, 0
      %3016 = vmatpush.msra.mxu0 0.0
      %3017 = vmatpush.msra.mxu0 0.0
      %3018 = vmatpush.msra.mxu0 0.0
      %3019 = vmatpush.msra.mxu0 0.0
      %3020 = vmatpush.msra.mxu0 0.0
      %3021 = vmatpush.msra.mxu0 0.0
      %3022 = vmatpush.msra.mxu0 0.0
      %3023 = vmatpush.msra.mxu0 0.0
      %3024 = vmatpush.msra.mxu0 0.0
      %3025 = vmatpush.msra.mxu0 0.0
      %3026 = vmatpush.msra.mxu0 0.0
      %3027 = vmatpush.msra.mxu0 0.0
      %3028 = vmatpush.msra.mxu0 0.0
      %3029 = vmatpush.msra.mxu0 0.0
      %3030 = vmatpush.msra.mxu0 0.0
      %3031 = vmatpush.msra.mxu0 %v3014
      %3032 = vmatmul.f32.gmra.mxu0 %v2879
      %v3033 = vpop.f32.mrf.mxu0
      %v3034 = vadd.f32 0.0, %v3033
      %3035 = vmatmul.f32.gmra.mxu0 %v2882
      %v3036 = vpop.f32.mrf.mxu0
      %v3037 = vadd.f32 0.0, %v3036
      %3038 = vmatmul.f32.gmra.mxu0 %v2885
      %v3039 = vpop.f32.mrf.mxu0
      %v3040 = vadd.f32 0.0, %v3039
      %3041 = vmatmul.f32.gmra.mxu0 %v2888
      %v3042 = vpop.f32.mrf.mxu0
      %v3043 = vadd.f32 0.0, %v3042
      %3044 = vmatmul.f32.gmra.mxu0 %v2891
      %v3045 = vpop.f32.mrf.mxu0
      %v3046 = vadd.f32 0.0, %v3045
      %3047 = vmatmul.f32.gmra.mxu0 %v2894
      %v3048 = vpop.f32.mrf.mxu0
      %v3049 = vadd.f32 0.0, %v3048
      %3050 = vmatmul.f32.gmra.mxu0 %v2897
      %v3051 = vpop.f32.mrf.mxu0
      %v3052 = vadd.f32 0.0, %v3051
      %3053 = vmatmul.f32.gmra.mxu0 %v2900
      %v3054 = vpop.f32.mrf.mxu0
      %v3055 = vadd.f32 0.0, %v3054
      %3056 = vmatmul.f32.gmra.mxu0 %v2903
      %v3057 = vpop.f32.mrf.mxu0
      %v3058 = vadd.f32 0.0, %v3057
      %3059 = vmatmul.f32.gmra.mxu0 %v2906
      %v3060 = vpop.f32.mrf.mxu0
      %v3061 = vadd.f32 0.0, %v3060
      %3062 = vmatmul.f32.gmra.mxu0 %v2909
      %v3063 = vpop.f32.mrf.mxu0
      %v3064 = vadd.f32 0.0, %v3063
      %3065 = vmatmul.f32.gmra.mxu0 %v2912
      %v3066 = vpop.f32.mrf.mxu0
      %v3067 = vadd.f32 0.0, %v3066
      %3068 = vmatmul.f32.gmra.mxu0 %v2915
      %v3069 = vpop.f32.mrf.mxu0
      %v3070 = vadd.f32 0.0, %v3069
      %3071 = vmatmul.f32.gmra.mxu0 %v2918
      %v3072 = vpop.f32.mrf.mxu0
      %v3073 = vadd.f32 0.0, %v3072
      %3074 = vmatmul.f32.gmra.mxu0 %v2921
      %v3075 = vpop.f32.mrf.mxu0
      %v3076 = vadd.f32 0.0, %v3075
      %3077 = vmatmul.f32.gmra.mxu0 %v2924
      %v3078 = vpop.f32.mrf.mxu0
      %v3079 = vadd.f32 0.0, %v3078
      %3080 = vmatmul.f32.gmra.mxu0 %v2927
      %v3081 = vpop.f32.mrf.mxu0
      %v3082 = vadd.f32 0.0, %v3081
      %3083 = vmatmul.f32.gmra.mxu0 %v2930
      %v3084 = vpop.f32.mrf.mxu0
      %v3085 = vadd.f32 0.0, %v3084
      %3086 = vmatmul.f32.gmra.mxu0 %v2933
      %v3087 = vpop.f32.mrf.mxu0
      %v3088 = vadd.f32 0.0, %v3087
      %3089 = vmatmul.f32.gmra.mxu0 %v2936
      %v3090 = vpop.f32.mrf.mxu0
      %v3091 = vadd.f32 0.0, %v3090
      %3092 = vmatmul.f32.gmra.mxu0 %v2939
      %v3093 = vpop.f32.mrf.mxu0
      %v3094 = vadd.f32 0.0, %v3093
      %3095 = vmatmul.f32.gmra.mxu0 %v2942
      %v3096 = vpop.f32.mrf.mxu0
      %v3097 = vadd.f32 0.0, %v3096
      %3098 = vmatmul.f32.gmra.mxu0 %v2945
      %v3099 = vpop.f32.mrf.mxu0
      %v3100 = vadd.f32 0.0, %v3099
      %3101 = vmatmul.f32.gmra.mxu0 %v2948
      %v3102 = vpop.f32.mrf.mxu0
      %v3103 = vadd.f32 0.0, %v3102
      %3104 = vmatmul.f32.gmra.mxu0 %v2951
      %v3105 = vpop.f32.mrf.mxu0
      %v3106 = vadd.f32 0.0, %v3105
      %3107 = vmatmul.f32.gmra.mxu0 %v2954
      %v3108 = vpop.f32.mrf.mxu0
      %v3109 = vadd.f32 0.0, %v3108
      %3110 = vmatmul.f32.gmra.mxu0 %v2957
      %v3111 = vpop.f32.mrf.mxu0
      %v3112 = vadd.f32 0.0, %v3111
      %3113 = vmatmul.f32.gmra.mxu0 %v2960
      %v3114 = vpop.f32.mrf.mxu0
      %v3115 = vadd.f32 0.0, %v3114
      %3116 = vmatmul.f32.gmra.mxu0 %v2963
      %v3117 = vpop.f32.mrf.mxu0
      %v3118 = vadd.f32 0.0, %v3117
      %3119 = vmatmul.f32.gmra.mxu0 %v2966
      %v3120 = vpop.f32.mrf.mxu0
      %v3121 = vadd.f32 0.0, %v3120
      %3122 = vmatmul.f32.gmra.mxu0 %v2969
      %v3123 = vpop.f32.mrf.mxu0
      %v3124 = vadd.f32 0.0, %v3123
      %3125 = vmatmul.f32.gmra.mxu0 %v2972
      %v3126 = vpop.f32.mrf.mxu0
      %v3127 = vadd.f32 0.0, %v3126
      %3128 = vmatmul.f32.gmra.mxu0 %v2975
      %v3129 = vpop.f32.mrf.mxu0
      %v3130 = vadd.f32 0.0, %v3129
      %3131 = vmatmul.f32.gmra.mxu0 %v2978
      %v3132 = vpop.f32.mrf.mxu0
      %v3133 = vadd.f32 0.0, %v3132
      %3134 = vmatmul.f32.gmra.mxu0 %v2981
      %v3135 = vpop.f32.mrf.mxu0
      %v3136 = vadd.f32 0.0, %v3135
      %3137 = vmatmul.f32.gmra.mxu0 %v2984
      %v3138 = vpop.f32.mrf.mxu0
      %v3139 = vadd.f32 0.0, %v3138
      %3140 = vmatmul.f32.gmra.mxu0 %v2987
      %v3141 = vpop.f32.mrf.mxu0
      %v3142 = vadd.f32 0.0, %v3141
      %3143 = vmatmul.f32.gmra.mxu0 %v2990
      %v3144 = vpop.f32.mrf.mxu0
      %v3145 = vadd.f32 0.0, %v3144
      %3146 = vmatmul.f32.gmra.mxu0 %v2993
      %v3147 = vpop.f32.mrf.mxu0
      %v3148 = vadd.f32 0.0, %v3147
      %3149 = vmatmul.f32.gmra.mxu0 %v2996
      %v3150 = vpop.f32.mrf.mxu0
      %v3151 = vadd.f32 0.0, %v3150
      %3152 = vmatmul.f32.gmra.mxu0 %v2999
      %v3153 = vpop.f32.mrf.mxu0
      %v3154 = vadd.f32 0.0, %v3153
      %3155 = vmatmul.f32.gmra.mxu0 %v3002
      %v3156 = vpop.f32.mrf.mxu0
      %v3157 = vadd.f32 0.0, %v3156
      %3158 = vmatmul.f32.gmra.mxu0 %v3005
      %v3159 = vpop.f32.mrf.mxu0
      %v3160 = vadd.f32 0.0, %v3159
      %3161 = vmatmul.f32.gmra.mxu0 %v3008
      %v3162 = vpop.f32.mrf.mxu0
      %v3163 = vadd.f32 0.0, %v3162
      %3164 = vmatmul.f32.gmra.mxu0 %v3011
      %v3165 = vpop.f32.mrf.mxu0
      %v3166 = vadd.f32 0.0, %v3165
      %3167 = vdwg.mxu0
      %v3168 = vadd.f32 %v2785, %v3034
      %v3169 = vadd.f32 %v2786, %v3037
      %v3170 = vadd.f32 %v2787, %v3040
      %v3171 = vadd.f32 %v2788, %v3043
      %v3172 = vadd.f32 %v2789, %v3046
      %v3173 = vadd.f32 %v2790, %v3049
      %v3174 = vadd.f32 %v2791, %v3052
      %v3175 = vadd.f32 %v2792, %v3055
      %v3176 = vadd.f32 %v2793, %v3058
      %v3177 = vadd.f32 %v2794, %v3061
      %v3178 = vadd.f32 %v2795, %v3064
      %v3179 = vadd.f32 %v2796, %v3067
      %v3180 = vadd.f32 %v2797, %v3070
      %v3181 = vadd.f32 %v2798, %v3073
      %v3182 = vadd.f32 %v2799, %v3076
      %v3183 = vadd.f32 %v2800, %v3079
      %v3184 = vadd.f32 %v2801, %v3082
      %v3185 = vadd.f32 %v2802, %v3085
      %v3186 = vadd.f32 %v2803, %v3088
      %v3187 = vadd.f32 %v2804, %v3091
      %v3188 = vadd.f32 %v2805, %v3094
      %v3189 = vadd.f32 %v2806, %v3097
      %v3190 = vadd.f32 %v2807, %v3100
      %v3191 = vadd.f32 %v2808, %v3103
      %v3192 = vadd.f32 %v2809, %v3106
      %v3193 = vadd.f32 %v2810, %v3109
      %v3194 = vadd.f32 %v2811, %v3112
      %v3195 = vadd.f32 %v2812, %v3115
      %v3196 = vadd.f32 %v2813, %v3118
      %v3197 = vadd.f32 %v2814, %v3121
      %v3198 = vadd.f32 %v2815, %v3124
      %v3199 = vadd.f32 %v2816, %v3127
      %v3200 = vadd.f32 %v2817, %v3130
      %v3201 = vadd.f32 %v2818, %v3133
      %v3202 = vadd.f32 %v2819, %v3136
      %v3203 = vadd.f32 %v2820, %v3139
      %v3204 = vadd.f32 %v2821, %v3142
      %v3205 = vadd.f32 %v2822, %v3145
      %v3206 = vadd.f32 %v2823, %v3148
      %v3207 = vadd.f32 %v2824, %v3151
      %v3208 = vadd.f32 %v2825, %v3154
      %v3209 = vadd.f32 %v2826, %v3157
      %v3210 = vadd.f32 %v2827, %v3160
      %v3211 = vadd.f32 %v2828, %v3163
      %v3212 = vadd.f32 %v2829, %v3166
      %s3213 = sadd.s32 %s237, 42
      %s3214 = scalar_lea.vmem %s220, %s3213
      %v3215 = vld [vmem:[%s3214] sm:$0xff]
      %v3216 = vld [vmem:[%s3214 + $0x8] sm:$0xff]
      %v3217 = vld [vmem:[%s3214 + $0x10] sm:$0xff]
      %v3218 = vld [vmem:[%s3214 + $0x18] sm:$0xff]
      %v3219 = vld [vmem:[%s3214 + $0x20] sm:$0xff]
      %v3220 = vld [vmem:[%s3214 + $0x28] sm:$0xff]
      %v3221 = vld [vmem:[%s3214 + $0x30] sm:$0xff]
      %v3222 = vld [vmem:[%s3214 + $0x38] sm:$0xff]
      %v3223 = vld [vmem:[%s3214 + $0x40] sm:$0xff]
      %v3224 = vld [vmem:[%s3214 + $0x48] sm:$0xff]
      %v3225 = vld [vmem:[%s3214 + $0x50] sm:$0xff]
      %v3226 = vld [vmem:[%s3214 + $0x58] sm:$0xff]
      %v3227 = vld [vmem:[%s3214 + $0x60] sm:$0xff]
      %v3228 = vld [vmem:[%s3214 + $0x68] sm:$0xff]
      %v3229 = vld [vmem:[%s3214 + $0x70] sm:$0xff]
      %v3230 = vld [vmem:[%s3214 + $0x78] sm:$0xff]
      %v3231 = vld [vmem:[%s3214 + $0x80] sm:$0xff]
      %v3232 = vld [vmem:[%s3214 + $0x88] sm:$0xff]
      %v3233 = vld [vmem:[%s3214 + $0x90] sm:$0xff]
      %v3234 = vld [vmem:[%s3214 + $0x98] sm:$0xff]
      %v3235 = vld [vmem:[%s3214 + $0xa0] sm:$0xff]
      %v3236 = vld [vmem:[%s3214 + $0xa8] sm:$0xff]
      %v3237 = vld [vmem:[%s3214 + $0xb0] sm:$0xff]
      %v3238 = vld [vmem:[%s3214 + $0xb8] sm:$0xff]
      %v3239 = vld [vmem:[%s3214 + $0xc0] sm:$0xff]
      %v3240 = vld [vmem:[%s3214 + $0xc8] sm:$0xff]
      %v3241 = vld [vmem:[%s3214 + $0xd0] sm:$0xff]
      %v3242 = vld [vmem:[%s3214 + $0xd8] sm:$0xff]
      %v3243 = vld [vmem:[%s3214 + $0xe0] sm:$0xff]
      %v3244 = vld [vmem:[%s3214 + $0xe8] sm:$0xff]
      %v3245 = vld [vmem:[%s3214 + $0xf0] sm:$0xff]
      %v3246 = vld [vmem:[%s3214 + $0xf8] sm:$0xff]
      %v3247 = vld [vmem:[%s3214 + $0x100] sm:$0xff]
      %v3248 = vld [vmem:[%s3214 + $0x108] sm:$0xff]
      %v3249 = vld [vmem:[%s3214 + $0x110] sm:$0xff]
      %v3250 = vld [vmem:[%s3214 + $0x118] sm:$0xff]
      %v3251 = vld [vmem:[%s3214 + $0x120] sm:$0xff]
      %v3252 = vld [vmem:[%s3214 + $0x128] sm:$0xff]
      %v3253 = vld [vmem:[%s3214 + $0x130] sm:$0xff]
      %v3254 = vld [vmem:[%s3214 + $0x138] sm:$0xff]
      %v3255 = vld [vmem:[%s3214 + $0x140] sm:$0xff]
      %v3256 = vld [vmem:[%s3214 + $0x148] sm:$0xff]
      %v3257 = vld [vmem:[%s3214 + $0x150] sm:$0xff]
      %v3258 = vld [vmem:[%s3214 + $0x158] sm:$0xff]
      %v3259 = vld [vmem:[%s3214 + $0x160] sm:$0xff]
      %v3260 = vld [vmem:[%s1 + $0x20] sm:$0xf]
      %v3262 = vsel %vm333, %v3215, 0
      %v3265 = vsel %vm333, %v3216, 0
      %v3268 = vsel %vm333, %v3217, 0
      %v3271 = vsel %vm333, %v3218, 0
      %v3274 = vsel %vm333, %v3219, 0
      %v3277 = vsel %vm333, %v3220, 0
      %v3280 = vsel %vm333, %v3221, 0
      %v3283 = vsel %vm333, %v3222, 0
      %v3286 = vsel %vm333, %v3223, 0
      %v3289 = vsel %vm333, %v3224, 0
      %v3292 = vsel %vm333, %v3225, 0
      %v3295 = vsel %vm333, %v3226, 0
      %v3298 = vsel %vm333, %v3227, 0
      %v3301 = vsel %vm333, %v3228, 0
      %v3304 = vsel %vm333, %v3229, 0
      %v3307 = vsel %vm333, %v3230, 0
      %v3310 = vsel %vm333, %v3231, 0
      %v3313 = vsel %vm333, %v3232, 0
      %v3316 = vsel %vm333, %v3233, 0
      %v3319 = vsel %vm333, %v3234, 0
      %v3322 = vsel %vm333, %v3235, 0
      %v3325 = vsel %vm333, %v3236, 0
      %v3328 = vsel %vm333, %v3237, 0
      %v3331 = vsel %vm333, %v3238, 0
      %v3334 = vsel %vm333, %v3239, 0
      %v3337 = vsel %vm333, %v3240, 0
      %v3340 = vsel %vm333, %v3241, 0
      %v3343 = vsel %vm333, %v3242, 0
      %v3346 = vsel %vm333, %v3243, 0
      %v3349 = vsel %vm333, %v3244, 0
      %v3352 = vsel %vm333, %v3245, 0
      %v3355 = vsel %vm333, %v3246, 0
      %v3358 = vsel %vm333, %v3247, 0
      %v3361 = vsel %vm333, %v3248, 0
      %v3364 = vsel %vm333, %v3249, 0
      %v3367 = vsel %vm333, %v3250, 0
      %v3370 = vsel %vm333, %v3251, 0
      %v3373 = vsel %vm333, %v3252, 0
      %v3376 = vsel %vm333, %v3253, 0
      %v3379 = vsel %vm333, %v3254, 0
      %v3382 = vsel %vm333, %v3255, 0
      %v3385 = vsel %vm333, %v3256, 0
      %v3388 = vsel %vm333, %v3257, 0
      %v3391 = vsel %vm333, %v3258, 0
      %v3394 = vsel %vm333, %v3259, 0
      %v3397 = vsel %vm469, %v3260, 0
      %3399 = vmatpush.msra.mxu0 0.0
      %3400 = vmatpush.msra.mxu0 0.0
      %3401 = vmatpush.msra.mxu0 0.0
      %3402 = vmatpush.msra.mxu0 0.0
      %3403 = vmatpush.msra.mxu0 0.0
      %3404 = vmatpush.msra.mxu0 0.0
      %3405 = vmatpush.msra.mxu0 0.0
      %3406 = vmatpush.msra.mxu0 0.0
      %3407 = vmatpush.msra.mxu0 0.0
      %3408 = vmatpush.msra.mxu0 0.0
      %3409 = vmatpush.msra.mxu0 0.0
      %3410 = vmatpush.msra.mxu0 0.0
      %3411 = vmatpush.msra.mxu0 0.0
      %3412 = vmatpush.msra.mxu0 0.0
      %3413 = vmatpush.msra.mxu0 0.0
      %3414 = vmatpush.msra.mxu0 %v3397
      %3415 = vmatmul.f32.gmra.mxu0 %v3262
      %v3416 = vpop.f32.mrf.mxu0
      %v3417 = vadd.f32 0.0, %v3416
      %3418 = vmatmul.f32.gmra.mxu0 %v3265
      %v3419 = vpop.f32.mrf.mxu0
      %v3420 = vadd.f32 0.0, %v3419
      %3421 = vmatmul.f32.gmra.mxu0 %v3268
      %v3422 = vpop.f32.mrf.mxu0
      %v3423 = vadd.f32 0.0, %v3422
      %3424 = vmatmul.f32.gmra.mxu0 %v3271
      %v3425 = vpop.f32.mrf.mxu0
      %v3426 = vadd.f32 0.0, %v3425
      %3427 = vmatmul.f32.gmra.mxu0 %v3274
      %v3428 = vpop.f32.mrf.mxu0
      %v3429 = vadd.f32 0.0, %v3428
      %3430 = vmatmul.f32.gmra.mxu0 %v3277
      %v3431 = vpop.f32.mrf.mxu0
      %v3432 = vadd.f32 0.0, %v3431
      %3433 = vmatmul.f32.gmra.mxu0 %v3280
      %v3434 = vpop.f32.mrf.mxu0
      %v3435 = vadd.f32 0.0, %v3434
      %3436 = vmatmul.f32.gmra.mxu0 %v3283
      %v3437 = vpop.f32.mrf.mxu0
      %v3438 = vadd.f32 0.0, %v3437
      %3439 = vmatmul.f32.gmra.mxu0 %v3286
      %v3440 = vpop.f32.mrf.mxu0
      %v3441 = vadd.f32 0.0, %v3440
      %3442 = vmatmul.f32.gmra.mxu0 %v3289
      %v3443 = vpop.f32.mrf.mxu0
      %v3444 = vadd.f32 0.0, %v3443
      %3445 = vmatmul.f32.gmra.mxu0 %v3292
      %v3446 = vpop.f32.mrf.mxu0
      %v3447 = vadd.f32 0.0, %v3446
      %3448 = vmatmul.f32.gmra.mxu0 %v3295
      %v3449 = vpop.f32.mrf.mxu0
      %v3450 = vadd.f32 0.0, %v3449
      %3451 = vmatmul.f32.gmra.mxu0 %v3298
      %v3452 = vpop.f32.mrf.mxu0
      %v3453 = vadd.f32 0.0, %v3452
      %3454 = vmatmul.f32.gmra.mxu0 %v3301
      %v3455 = vpop.f32.mrf.mxu0
      %v3456 = vadd.f32 0.0, %v3455
      %3457 = vmatmul.f32.gmra.mxu0 %v3304
      %v3458 = vpop.f32.mrf.mxu0
      %v3459 = vadd.f32 0.0, %v3458
      %3460 = vmatmul.f32.gmra.mxu0 %v3307
      %v3461 = vpop.f32.mrf.mxu0
      %v3462 = vadd.f32 0.0, %v3461
      %3463 = vmatmul.f32.gmra.mxu0 %v3310
      %v3464 = vpop.f32.mrf.mxu0
      %v3465 = vadd.f32 0.0, %v3464
      %3466 = vmatmul.f32.gmra.mxu0 %v3313
      %v3467 = vpop.f32.mrf.mxu0
      %v3468 = vadd.f32 0.0, %v3467
      %3469 = vmatmul.f32.gmra.mxu0 %v3316
      %v3470 = vpop.f32.mrf.mxu0
      %v3471 = vadd.f32 0.0, %v3470
      %3472 = vmatmul.f32.gmra.mxu0 %v3319
      %v3473 = vpop.f32.mrf.mxu0
      %v3474 = vadd.f32 0.0, %v3473
      %3475 = vmatmul.f32.gmra.mxu0 %v3322
      %v3476 = vpop.f32.mrf.mxu0
      %v3477 = vadd.f32 0.0, %v3476
      %3478 = vmatmul.f32.gmra.mxu0 %v3325
      %v3479 = vpop.f32.mrf.mxu0
      %v3480 = vadd.f32 0.0, %v3479
      %3481 = vmatmul.f32.gmra.mxu0 %v3328
      %v3482 = vpop.f32.mrf.mxu0
      %v3483 = vadd.f32 0.0, %v3482
      %3484 = vmatmul.f32.gmra.mxu0 %v3331
      %v3485 = vpop.f32.mrf.mxu0
      %v3486 = vadd.f32 0.0, %v3485
      %3487 = vmatmul.f32.gmra.mxu0 %v3334
      %v3488 = vpop.f32.mrf.mxu0
      %v3489 = vadd.f32 0.0, %v3488
      %3490 = vmatmul.f32.gmra.mxu0 %v3337
      %v3491 = vpop.f32.mrf.mxu0
      %v3492 = vadd.f32 0.0, %v3491
      %3493 = vmatmul.f32.gmra.mxu0 %v3340
      %v3494 = vpop.f32.mrf.mxu0
      %v3495 = vadd.f32 0.0, %v3494
      %3496 = vmatmul.f32.gmra.mxu0 %v3343
      %v3497 = vpop.f32.mrf.mxu0
      %v3498 = vadd.f32 0.0, %v3497
      %3499 = vmatmul.f32.gmra.mxu0 %v3346
      %v3500 = vpop.f32.mrf.mxu0
      %v3501 = vadd.f32 0.0, %v3500
      %3502 = vmatmul.f32.gmra.mxu0 %v3349
      %v3503 = vpop.f32.mrf.mxu0
      %v3504 = vadd.f32 0.0, %v3503
      %3505 = vmatmul.f32.gmra.mxu0 %v3352
      %v3506 = vpop.f32.mrf.mxu0
      %v3507 = vadd.f32 0.0, %v3506
      %3508 = vmatmul.f32.gmra.mxu0 %v3355
      %v3509 = vpop.f32.mrf.mxu0
      %v3510 = vadd.f32 0.0, %v3509
      %3511 = vmatmul.f32.gmra.mxu0 %v3358
      %v3512 = vpop.f32.mrf.mxu0
      %v3513 = vadd.f32 0.0, %v3512
      %3514 = vmatmul.f32.gmra.mxu0 %v3361
      %v3515 = vpop.f32.mrf.mxu0
      %v3516 = vadd.f32 0.0, %v3515
      %3517 = vmatmul.f32.gmra.mxu0 %v3364
      %v3518 = vpop.f32.mrf.mxu0
      %v3519 = vadd.f32 0.0, %v3518
      %3520 = vmatmul.f32.gmra.mxu0 %v3367
      %v3521 = vpop.f32.mrf.mxu0
      %v3522 = vadd.f32 0.0, %v3521
      %3523 = vmatmul.f32.gmra.mxu0 %v3370
      %v3524 = vpop.f32.mrf.mxu0
      %v3525 = vadd.f32 0.0, %v3524
      %3526 = vmatmul.f32.gmra.mxu0 %v3373
      %v3527 = vpop.f32.mrf.mxu0
      %v3528 = vadd.f32 0.0, %v3527
      %3529 = vmatmul.f32.gmra.mxu0 %v3376
      %v3530 = vpop.f32.mrf.mxu0
      %v3531 = vadd.f32 0.0, %v3530
      %3532 = vmatmul.f32.gmra.mxu0 %v3379
      %v3533 = vpop.f32.mrf.mxu0
      %v3534 = vadd.f32 0.0, %v3533
      %3535 = vmatmul.f32.gmra.mxu0 %v3382
      %v3536 = vpop.f32.mrf.mxu0
      %v3537 = vadd.f32 0.0, %v3536
      %3538 = vmatmul.f32.gmra.mxu0 %v3385
      %v3539 = vpop.f32.mrf.mxu0
      %v3540 = vadd.f32 0.0, %v3539
      %3541 = vmatmul.f32.gmra.mxu0 %v3388
      %v3542 = vpop.f32.mrf.mxu0
      %v3543 = vadd.f32 0.0, %v3542
      %3544 = vmatmul.f32.gmra.mxu0 %v3391
      %v3545 = vpop.f32.mrf.mxu0
      %v3546 = vadd.f32 0.0, %v3545
      %3547 = vmatmul.f32.gmra.mxu0 %v3394
      %v3548 = vpop.f32.mrf.mxu0
      %v3549 = vadd.f32 0.0, %v3548
      %3550 = vdwg.mxu0
      %v3551 = vadd.f32 %v3168, %v3417
      %v3552 = vadd.f32 %v3169, %v3420
      %v3553 = vadd.f32 %v3170, %v3423
      %v3554 = vadd.f32 %v3171, %v3426
      %v3555 = vadd.f32 %v3172, %v3429
      %v3556 = vadd.f32 %v3173, %v3432
      %v3557 = vadd.f32 %v3174, %v3435
      %v3558 = vadd.f32 %v3175, %v3438
      %v3559 = vadd.f32 %v3176, %v3441
      %v3560 = vadd.f32 %v3177, %v3444
      %v3561 = vadd.f32 %v3178, %v3447
      %v3562 = vadd.f32 %v3179, %v3450
      %v3563 = vadd.f32 %v3180, %v3453
      %v3564 = vadd.f32 %v3181, %v3456
      %v3565 = vadd.f32 %v3182, %v3459
      %v3566 = vadd.f32 %v3183, %v3462
      %v3567 = vadd.f32 %v3184, %v3465
      %v3568 = vadd.f32 %v3185, %v3468
      %v3569 = vadd.f32 %v3186, %v3471
      %v3570 = vadd.f32 %v3187, %v3474
      %v3571 = vadd.f32 %v3188, %v3477
      %v3572 = vadd.f32 %v3189, %v3480
      %v3573 = vadd.f32 %v3190, %v3483
      %v3574 = vadd.f32 %v3191, %v3486
      %v3575 = vadd.f32 %v3192, %v3489
      %v3576 = vadd.f32 %v3193, %v3492
      %v3577 = vadd.f32 %v3194, %v3495
      %v3578 = vadd.f32 %v3195, %v3498
      %v3579 = vadd.f32 %v3196, %v3501
      %v3580 = vadd.f32 %v3197, %v3504
      %v3581 = vadd.f32 %v3198, %v3507
      %v3582 = vadd.f32 %v3199, %v3510
      %v3583 = vadd.f32 %v3200, %v3513
      %v3584 = vadd.f32 %v3201, %v3516
      %v3585 = vadd.f32 %v3202, %v3519
      %v3586 = vadd.f32 %v3203, %v3522
      %v3587 = vadd.f32 %v3204, %v3525
      %v3588 = vadd.f32 %v3205, %v3528
      %v3589 = vadd.f32 %v3206, %v3531
      %v3590 = vadd.f32 %v3207, %v3534
      %v3591 = vadd.f32 %v3208, %v3537
      %v3592 = vadd.f32 %v3209, %v3540
      %v3593 = vadd.f32 %v3210, %v3543
      %v3594 = vadd.f32 %v3211, %v3546
      %v3595 = vadd.f32 %v3212, %v3549
      %vm3596 = vcmask 64512
      %3597 = vst.msk [vmem:[%s229] sm:$0xff] %vm3596, %v3551
      %3598 = vst.msk [vmem:[%s229 + $0x8] sm:$0xff] %vm3596, %v3552
      %3599 = vst.msk [vmem:[%s229 + $0x10] sm:$0xff] %vm3596, %v3553
      %3600 = vst.msk [vmem:[%s229 + $0x18] sm:$0xff] %vm3596, %v3554
      %3601 = vst.msk [vmem:[%s229 + $0x20] sm:$0xff] %vm3596, %v3555
      %3602 = vst.msk [vmem:[%s229 + $0x28] sm:$0xff] %vm3596, %v3556
      %3603 = vst.msk [vmem:[%s229 + $0x30] sm:$0xff] %vm3596, %v3557
      %3604 = vst.msk [vmem:[%s229 + $0x38] sm:$0xff] %vm3596, %v3558
      %3605 = vst.msk [vmem:[%s229 + $0x40] sm:$0xff] %vm3596, %v3559
      %3606 = vst.msk [vmem:[%s229 + $0x48] sm:$0xff] %vm3596, %v3560
      %3607 = vst.msk [vmem:[%s229 + $0x50] sm:$0xff] %vm3596, %v3561
      %3608 = vst.msk [vmem:[%s229 + $0x58] sm:$0xff] %vm3596, %v3562
      %3609 = vst.msk [vmem:[%s229 + $0x60] sm:$0xff] %vm3596, %v3563
      %3610 = vst.msk [vmem:[%s229 + $0x68] sm:$0xff] %vm3596, %v3564
      %3611 = vst.msk [vmem:[%s229 + $0x70] sm:$0xff] %vm3596, %v3565
      %3612 = vst.msk [vmem:[%s229 + $0x78] sm:$0xff] %vm3596, %v3566
      %3613 = vst.msk [vmem:[%s229 + $0x80] sm:$0xff] %vm3596, %v3567
      %3614 = vst.msk [vmem:[%s229 + $0x88] sm:$0xff] %vm3596, %v3568
      %3615 = vst.msk [vmem:[%s229 + $0x90] sm:$0xff] %vm3596, %v3569
      %3616 = vst.msk [vmem:[%s229 + $0x98] sm:$0xff] %vm3596, %v3570
      %3617 = vst.msk [vmem:[%s229 + $0xa0] sm:$0xff] %vm3596, %v3571
      %3618 = vst.msk [vmem:[%s229 + $0xa8] sm:$0xff] %vm3596, %v3572
      %3619 = vst.msk [vmem:[%s229 + $0xb0] sm:$0xff] %vm3596, %v3573
      %3620 = vst.msk [vmem:[%s229 + $0xb8] sm:$0xff] %vm3596, %v3574
      %3621 = vst.msk [vmem:[%s229 + $0xc0] sm:$0xff] %vm3596, %v3575
      %3622 = vst.msk [vmem:[%s229 + $0xc8] sm:$0xff] %vm3596, %v3576
      %3623 = vst.msk [vmem:[%s229 + $0xd0] sm:$0xff] %vm3596, %v3577
      %3624 = vst.msk [vmem:[%s229 + $0xd8] sm:$0xff] %vm3596, %v3578
      %3625 = vst.msk [vmem:[%s229 + $0xe0] sm:$0xff] %vm3596, %v3579
      %3626 = vst.msk [vmem:[%s229 + $0xe8] sm:$0xff] %vm3596, %v3580
      %3627 = vst.msk [vmem:[%s229 + $0xf0] sm:$0xff] %vm3596, %v3581
      %3628 = vst.msk [vmem:[%s229 + $0xf8] sm:$0xff] %vm3596, %v3582
      %3629 = vst.msk [vmem:[%s229 + $0x100] sm:$0xff] %vm3596, %v3583
      %3630 = vst.msk [vmem:[%s229 + $0x108] sm:$0xff] %vm3596, %v3584
      %3631 = vst.msk [vmem:[%s229 + $0x110] sm:$0xff] %vm3596, %v3585
      %3632 = vst.msk [vmem:[%s229 + $0x118] sm:$0xff] %vm3596, %v3586
      %3633 = vst.msk [vmem:[%s229 + $0x120] sm:$0xff] %vm3596, %v3587
      %3634 = vst.msk [vmem:[%s229 + $0x128] sm:$0xff] %vm3596, %v3588
      %3635 = vst.msk [vmem:[%s229 + $0x130] sm:$0xff] %vm3596, %v3589
      %3636 = vst.msk [vmem:[%s229 + $0x138] sm:$0xff] %vm3596, %v3590
      %3637 = vst.msk [vmem:[%s229 + $0x140] sm:$0xff] %vm3596, %v3591
      %3638 = vst.msk [vmem:[%s229 + $0x148] sm:$0xff] %vm3596, %v3592
      %3639 = vst.msk [vmem:[%s229 + $0x150] sm:$0xff] %vm3596, %v3593
      %3640 = vst.msk [vmem:[%s229 + $0x158] sm:$0xff] %vm3596, %v3594
      %3641 = vst.msk [vmem:[%s229 + $0x160] sm:$0xff] %vm3596, %v3595
      %v3642 = vld [vmem:[%s2] sm:$0x7]
      %v3644 = vperm.slane %v3642, 0
      %v3645 = vperm.slane %v3642, 1
      %v3646 = vperm.slane %v3642, 2
      %vm3649 = vcmask 850944
      %v3650 = vsel %vm3649, %v3646, 0
      %3652 = vmatpush.msra.mxu0 %v3566
      %3653 = vmatpush.msra.mxu0 %v3565
      %3654 = vmatpush.msra.mxu0 %v3564
      %3655 = vmatpush.msra.mxu0 %v3563
      %3656 = vmatpush.msra.mxu0 %v3562
      %3657 = vmatpush.msra.mxu0 %v3561
      %3658 = vmatpush.msra.mxu0 %v3560
      %3659 = vmatpush.msra.mxu0 %v3559
      %3660 = vmatpush.msra.mxu0 %v3558
      %3661 = vmatpush.msra.mxu0 %v3557
      %3662 = vmatpush.msra.mxu0 %v3556
      %3663 = vmatpush.msra.mxu0 %v3555
      %3664 = vmatpush.msra.mxu0 %v3554
      %3665 = vmatpush.msra.mxu0 %v3553
      %3666 = vmatpush.msra.mxu0 %v3552
      %3667 = vmatpush.msra.mxu0 %v3551
      %3668 = vmatmul.f32.gmra.mxu0 %v3644
      %v3669 = vpop.f32.mrf.mxu0
      %v3670 = vadd.f32 0.0, %v3669
      %3671 = vdwg.mxu0
      %3672 = vmatpush.msra.mxu0 %v3582
      %3673 = vmatpush.msra.mxu0 %v3581
      %3674 = vmatpush.msra.mxu0 %v3580
      %3675 = vmatpush.msra.mxu0 %v3579
      %3676 = vmatpush.msra.mxu0 %v3578
      %3677 = vmatpush.msra.mxu0 %v3577
      %3678 = vmatpush.msra.mxu0 %v3576
      %3679 = vmatpush.msra.mxu0 %v3575
      %3680 = vmatpush.msra.mxu0 %v3574
      %3681 = vmatpush.msra.mxu0 %v3573
      %3682 = vmatpush.msra.mxu0 %v3572
      %3683 = vmatpush.msra.mxu0 %v3571
      %3684 = vmatpush.msra.mxu0 %v3570
      %3685 = vmatpush.msra.mxu0 %v3569
      %3686 = vmatpush.msra.mxu0 %v3568
      %3687 = vmatpush.msra.mxu0 %v3567
      %3688 = vmatmul.f32.gmra.mxu0 %v3645
      %v3689 = vpop.f32.mrf.mxu0
      %v3690 = vadd.f32 %v3670, %v3689
      %3691 = vdwg.mxu0
      %3692 = vmatpush.msra.mxu0 0.0
      %3693 = vmatpush.msra.mxu0 0.0
      %3694 = vmatpush.msra.mxu0 0.0
      %3695 = vmatpush.msra.mxu0 %v3595
      %3696 = vmatpush.msra.mxu0 %v3594
      %3697 = vmatpush.msra.mxu0 %v3593
      %3698 = vmatpush.msra.mxu0 %v3592
      %3699 = vmatpush.msra.mxu0 %v3591
      %3700 = vmatpush.msra.mxu0 %v3590
      %3701 = vmatpush.msra.mxu0 %v3589
      %3702 = vmatpush.msra.mxu0 %v3588
      %3703 = vmatpush.msra.mxu0 %v3587
      %3704 = vmatpush.msra.mxu0 %v3586
      %3705 = vmatpush.msra.mxu0 %v3585
      %3706 = vmatpush.msra.mxu0 %v3584
      %3707 = vmatpush.msra.mxu0 %v3583
      %3708 = vmatmul.f32.gmra.mxu0 %v3650
      %v3709 = vpop.f32.mrf.mxu0
      %v3710 = vadd.f32 %v3690, %v3709
      %3711 = vdwg.mxu0
      %v3712 = vmul.f32 %v3551, %v3551
      %v3713 = vmul.f32 %v3552, %v3552
      %v3714 = vmul.f32 %v3553, %v3553
      %v3715 = vmul.f32 %v3554, %v3554
      %v3716 = vmul.f32 %v3555, %v3555
      %v3717 = vmul.f32 %v3556, %v3556
      %v3718 = vmul.f32 %v3557, %v3557
      %v3719 = vmul.f32 %v3558, %v3558
      %v3720 = vmul.f32 %v3559, %v3559
      %v3721 = vmul.f32 %v3560, %v3560
      %v3722 = vmul.f32 %v3561, %v3561
      %v3723 = vmul.f32 %v3562, %v3562
      %v3724 = vmul.f32 %v3563, %v3563
      %v3725 = vmul.f32 %v3564, %v3564
      %v3726 = vmul.f32 %v3565, %v3565
      %v3727 = vmul.f32 %v3566, %v3566
      %v3728 = vmul.f32 %v3567, %v3567
      %v3729 = vmul.f32 %v3568, %v3568
      %v3730 = vmul.f32 %v3569, %v3569
      %v3731 = vmul.f32 %v3570, %v3570
      %v3732 = vmul.f32 %v3571, %v3571
      %v3733 = vmul.f32 %v3572, %v3572
      %v3734 = vmul.f32 %v3573, %v3573
      %v3735 = vmul.f32 %v3574, %v3574
      %v3736 = vmul.f32 %v3575, %v3575
      %v3737 = vmul.f32 %v3576, %v3576
      %v3738 = vmul.f32 %v3577, %v3577
      %v3739 = vmul.f32 %v3578, %v3578
      %v3740 = vmul.f32 %v3579, %v3579
      %v3741 = vmul.f32 %v3580, %v3580
      %v3742 = vmul.f32 %v3581, %v3581
      %v3743 = vmul.f32 %v3582, %v3582
      %v3744 = vmul.f32 %v3583, %v3583
      %v3745 = vmul.f32 %v3584, %v3584
      %v3746 = vmul.f32 %v3585, %v3585
      %v3747 = vmul.f32 %v3586, %v3586
      %v3748 = vmul.f32 %v3587, %v3587
      %v3749 = vmul.f32 %v3588, %v3588
      %v3750 = vmul.f32 %v3589, %v3589
      %v3751 = vmul.f32 %v3590, %v3590
      %v3752 = vmul.f32 %v3591, %v3591
      %v3753 = vmul.f32 %v3592, %v3592
      %v3754 = vmul.f32 %v3593, %v3593
      %v3755 = vmul.f32 %v3594, %v3594
      %v3756 = vmul.f32 %v3595, %v3595
      %3757 = vmatpush.msra.mxu0 %v3727
      %3758 = vmatpush.msra.mxu0 %v3726
      %3759 = vmatpush.msra.mxu0 %v3725
      %3760 = vmatpush.msra.mxu0 %v3724
      %3761 = vmatpush.msra.mxu0 %v3723
      %3762 = vmatpush.msra.mxu0 %v3722
      %3763 = vmatpush.msra.mxu0 %v3721
      %3764 = vmatpush.msra.mxu0 %v3720
      %3765 = vmatpush.msra.mxu0 %v3719
      %3766 = vmatpush.msra.mxu0 %v3718
      %3767 = vmatpush.msra.mxu0 %v3717
      %3768 = vmatpush.msra.mxu0 %v3716
      %3769 = vmatpush.msra.mxu0 %v3715
      %3770 = vmatpush.msra.mxu0 %v3714
      %3771 = vmatpush.msra.mxu0 %v3713
      %3772 = vmatpush.msra.mxu0 %v3712
      %3773 = vmatmul.f32.gmra.mxu0 %v3644
      %v3774 = vpop.f32.mrf.mxu0
      %v3775 = vadd.f32 0.0, %v3774
      %3776 = vdwg.mxu0
      %3777 = vmatpush.msra.mxu0 %v3743
      %3778 = vmatpush.msra.mxu0 %v3742
      %3779 = vmatpush.msra.mxu0 %v3741
      %3780 = vmatpush.msra.mxu0 %v3740
      %3781 = vmatpush.msra.mxu0 %v3739
      %3782 = vmatpush.msra.mxu0 %v3738
      %3783 = vmatpush.msra.mxu0 %v3737
      %3784 = vmatpush.msra.mxu0 %v3736
      %3785 = vmatpush.msra.mxu0 %v3735
      %3786 = vmatpush.msra.mxu0 %v3734
      %3787 = vmatpush.msra.mxu0 %v3733
      %3788 = vmatpush.msra.mxu0 %v3732
      %3789 = vmatpush.msra.mxu0 %v3731
      %3790 = vmatpush.msra.mxu0 %v3730
      %3791 = vmatpush.msra.mxu0 %v3729
      %3792 = vmatpush.msra.mxu0 %v3728
      %3793 = vmatmul.f32.gmra.mxu0 %v3645
      %v3794 = vpop.f32.mrf.mxu0
      %v3795 = vadd.f32 %v3775, %v3794
      %3796 = vdwg.mxu0
      %3797 = vmatpush.msra.mxu0 0.0
      %3798 = vmatpush.msra.mxu0 0.0
      %3799 = vmatpush.msra.mxu0 0.0
      %3800 = vmatpush.msra.mxu0 %v3756
      %3801 = vmatpush.msra.mxu0 %v3755
      %3802 = vmatpush.msra.mxu0 %v3754
      %3803 = vmatpush.msra.mxu0 %v3753
      %3804 = vmatpush.msra.mxu0 %v3752
      %3805 = vmatpush.msra.mxu0 %v3751
      %3806 = vmatpush.msra.mxu0 %v3750
      %3807 = vmatpush.msra.mxu0 %v3749
      %3808 = vmatpush.msra.mxu0 %v3748
      %3809 = vmatpush.msra.mxu0 %v3747
      %3810 = vmatpush.msra.mxu0 %v3746
      %3811 = vmatpush.msra.mxu0 %v3745
      %3812 = vmatpush.msra.mxu0 %v3744
      %3813 = vmatmul.f32.gmra.mxu0 %v3650
      %v3814 = vpop.f32.mrf.mxu0
      %v3815 = vadd.f32 %v3795, %v3814
      %3816 = vdwg.mxu0
      %v3818 = vrot.slane %v3815, 7
      %vm3820 = vcmask 1040384
      %v3821 = vsel %vm3820, %v3710, %v3818
      %vm3822 = vcmask 1041408
      %v3823 = vsel %vm3822, %v3821, 0.0
      %v3824 = vsel %vm3596, %v3823, 0.0
      %3825 = vst [vmem:[%s235] sm:$0xff] %v3824
      %s3826 = smul.u32 45, %s21
      %p3827 = scmp.lt.s32.totalorder %s20, 1
      %s3828 = scalar_select %p3827, %s20, 1
      %p3829 = scmp.lt.s32.totalorder %s3826, 44
      %s3830 = scalar_select %p3829, %s3826, 44
      %s3831 = smul.addr %s3828, 45
      %s3832 = sadd.s32 %s3830, %s3831
      %s3833 = smul.addr %s3832, 8
      %s3834 = scalar_lea.vmem %s3, %s3833
      %s3835 = sadd.s32 %s20, %s21
      %p3836 = scmp.lt.s32.totalorder %s3835, 1
      %s3837 = scalar_select %p3836, %s3835, 1
      %s3838 = smul.addr %s3837, 8
      %s3839 = scalar_lea.vmem %s4, %s3838
      // Predicated region
      $region33: #{basic_conv_transpose2d.2} parent=31 // pred_check
        %p3840 = pneg %p116
      $region34: #{basic_conv_transpose2d.2} parent=31 // pred_check_branch
        %3842 = sbr.rel (%p3840) target = $region36
      $region35: #{basic_conv_transpose2d.2} parent=31 // pred_region
        %s3843 = smul.u32 45, %s21
      $region36: #{basic_conv_transpose2d.2} parent=31 // pred_fallthru
        _
      // Predicated region
      $region37: #{basic_conv_transpose2d.2} parent=31 // pred_check
        %p3844 = pneg %p144
      $region38: #{basic_conv_transpose2d.2} parent=31 // pred_check_branch
        %3846 = sbr.rel (%p3844) target = $region40
      $region39: #{basic_conv_transpose2d.2} parent=31 // pred_region
        %s3847 = sadd.s32 %s20, %s21
      $region40: #{basic_conv_transpose2d.2} parent=31 // pred_fallthru
        _
    $region32: #{basic_conv_transpose2d.2} parent=5 // pred_fallthru
      _
    %p3848 = scmp.le.s32.totalorder 2, %s11
    // Predicated region
    $region41: #{basic_conv_transpose2d.2} parent=5 // pred_check
      %p3849 = pneg %p3848
    $region42: #{basic_conv_transpose2d.2} parent=5 // pred_check_branch
      %3851 = sbr.rel (%p3849) target = $region44
    $region43: #{basic_conv_transpose2d.2} parent=5 // pred_region
      %s3852 = ssub.s32 %s11, 2
      // Predicated region
      $region45: #{basic_conv_transpose2d.2} parent=43 // pred_check
        %p3853 = pneg %p122
      $region46: #{basic_conv_transpose2d.2} parent=43 // pred_check_branch
        %3855 = sbr.rel (%p3853) target = $region48
      $region47: #{basic_conv_transpose2d.2} parent=43 // pred_region
        %s3856 = smul.u32 45, %s23
        %p3857 = scmp.lt.s32.totalorder %s22, 1
        %s3858 = scalar_select %p3857, %s22, 1
        %p3859 = scmp.lt.s32.totalorder %s3856, 44
        %s3860 = scalar_select %p3859, %s3856, 44
        %s3861 = smul.addr %s3858, 45
        %s3862 = sadd.s32 %s3860, %s3861
        %s3863 = smul.addr %s3862, 8
        %s3864 = scalar_lea.vmem %s3, %s3863
      $region48: #{basic_conv_transpose2d.2} parent=43 // pred_fallthru
        _
      // Predicated region
      $region49: #{basic_conv_transpose2d.2} parent=43 // pred_check
        %p3865 = pneg %p150
      $region50: #{basic_conv_transpose2d.2} parent=43 // pred_check_branch
        %3867 = sbr.rel (%p3865) target = $region52
      $region51: #{basic_conv_transpose2d.2} parent=43 // pred_region
        %s3868 = sadd.s32 %s22, %s23
        %p3869 = scmp.lt.s32.totalorder %s3868, 1
        %s3870 = scalar_select %p3869, %s3868, 1
        %s3871 = smul.addr %s3870, 8
        %s3872 = scalar_lea.vmem %s4, %s3871
      $region52: #{basic_conv_transpose2d.2} parent=43 // pred_fallthru
        _
    $region44: #{basic_conv_transpose2d.2} parent=5 // pred_fallthru
      _
  $region6: #{basic_conv_transpose2d.2} parent=0 // loop_footer
    %s15 = sadd.s32 1, %s11
  $region7: #{basic_conv_transpose2d.2} parent=0 // loop_footer_branch
    %10 = sbr.rel target = $region3
  $region8: #{basic_conv_transpose2d.2} parent=0 // loop_exit
    _

</llo_original>
